<compile_context>
chip_gen: v6e
topology: v6e:2x2x1
jax: 0.10.0
libtpu: 0.0.40
codegen_flags: <defaults>
</compile_context>

<pallas_src>
import jax
import jax.numpy as jnp
from jax import lax
from jax.experimental import pallas as pl
from jax.experimental.pallas import tpu as pltpu


def _make_resblock_kernel(H, W, C, Co):
    assert Co == C, "residual path requires Co == C (stride=1, no downsample)"
    HW = H * W
    OFF = W + 1                 # interior offset inside the flat padded buffer
    PADDED = HW + 2 * W + 2     # flat padded buffer length (exactly fits all 9 taps)

    def kernel(x_ref, w1_ref, w2_ref, s1_ref, b1_ref, s2_ref, b2_ref,
               out_ref, xpad_ref):
        # per-pixel x-coordinate; masks kill the row-major wrap-around of taps dx=0/dx=2
        col = lax.broadcasted_iota(jnp.int32, (HW, 1), 0) % W
        mask_l = col != 0          # tap dx==0 is invalid at image column x == 0
        mask_r = col != (W - 1)    # tap dx==2 is invalid at image column x == W-1

        # zero the whole padded scratch (halo rows), then drop the image into the interior
        xpad_ref[...] = jnp.zeros_like(xpad_ref)
        xpad_ref[pl.ds(OFF, HW), :] = x_ref[...]

        def conv3x3(w_ref):
            # Output pixel p = y*W + x needs input pixel (y+dy-1, x+dx-1), which sits at
            # flat scratch row p + dy*W + dx.  All 9 taps are static contiguous slices.
            cols = []
            for dy in range(3):
                for dx in range(3):
                    v = xpad_ref[pl.ds(dy * W + dx, HW), :]          # (HW, C) bf16
                    if dx == 0:
                        v = jnp.where(mask_l, v, jnp.zeros_like(v))
                    elif dx == 2:
                        v = jnp.where(mask_r, v, jnp.zeros_like(v))
                    cols.append(v)
            patch = jnp.concatenate(cols, axis=-1)                   # (HW, 9C) bf16
            return jnp.dot(patch, w_ref[...],
                           preferred_element_type=jnp.float32)       # (HW, Co) f32

        # conv1 + BN1 + ReLU; h stays in VMEM (re-uses the padded scratch, halo stays 0)
        h = jnp.maximum(conv3x3(w1_ref) * s1_ref[...] + b1_ref[...], 0.0)
        xpad_ref[pl.ds(OFF, HW), :] = h.astype(xpad_ref.dtype)

        # conv2 + BN2 + residual + ReLU
        y = conv3x3(w2_ref) * s2_ref[...] + b2_ref[...]
        y = y + x_ref[...].astype(jnp.float32)                       # residual
        out_ref[...] = jnp.maximum(y, 0.0).astype(out_ref.dtype)

    return kernel, PADDED


def fold_bn(gamma, beta, running_mean, running_var, eps=1e-5):
    scale = gamma / jnp.sqrt(running_var + eps)
    shift = beta - running_mean * scale
    return scale, shift


@jax.jit
def resblock_forward(x_nchw, params):
    """Fused Pallas ResBlock forward. Input/output are NCHW (PyTorch convention)."""
    N, C, H, W = x_nchw.shape
    Co = params["w1"].shape[-1]

    # NCHW -> (N, H*W, C) rows-of-pixels layout; bf16 activations/weights halve HBM
    # traffic (the kernel accumulates in f32 and keeps BN/residual/ReLU in f32).
    x = jnp.transpose(x_nchw, (0, 2, 3, 1)).reshape(N, H * W, C).astype(jnp.bfloat16)
    w1 = params["w1"].astype(jnp.bfloat16).reshape(9 * C, Co)     # HWIO -> (9C, Co)
    w2 = params["w2"].astype(jnp.bfloat16).reshape(9 * Co, Co)

    s1, b1 = fold_bn(params["gamma1"], params["beta1"], params["mean1"], params["var1"])
    s2, b2 = fold_bn(params["gamma2"], params["beta2"], params["mean2"], params["var2"])
    s1 = s1.reshape(1, Co).astype(jnp.float32)
    b1 = b1.reshape(1, Co).astype(jnp.float32)
    s2 = s2.reshape(1, Co).astype(jnp.float32)
    b2 = b2.reshape(1, Co).astype(jnp.float32)

    kernel, padded = _make_resblock_kernel(H, W, C, Co)

    out = pl.pallas_call(
        kernel,
        out_shape=jax.ShapeDtypeStruct((N, H * W, Co), jnp.float32),
        grid=(N,),
        in_specs=[
            pl.BlockSpec((None, H * W, C), lambda n: (n, 0, 0)),   # x (also residual)
            pl.BlockSpec((9 * C, Co), lambda n: (0, 0)),           # w1
            pl.BlockSpec((9 * Co, Co), lambda n: (0, 0)),          # w2
            pl.BlockSpec((1, Co), lambda n: (0, 0)),               # bn1 scale
            pl.BlockSpec((1, Co), lambda n: (0, 0)),               # bn1 shift
            pl.BlockSpec((1, Co), lambda n: (0, 0)),               # bn2 scale
            pl.BlockSpec((1, Co), lambda n: (0, 0)),               # bn2 shift
        ],
        out_specs=pl.BlockSpec((None, H * W, Co), lambda n: (n, 0, 0)),
        scratch_shapes=[pltpu.VMEM((padded, C), jnp.bfloat16)],    # flat padded image
        compiler_params=pltpu.CompilerParams(
            dimension_semantics=("parallel",)),   # split the batch across TensorCores
    )(x, w1, w2, s1, b1, s2, b2)

    out = out.reshape(N, H, W, Co)
    return jnp.transpose(out, (0, 3, 1, 2))       # NHWC -> NCHW


def resblock_reference(x_nchw, params):
    """Pure-JAX reference (lax.conv) mirroring the kernel's bf16-in / f32-accumulate
    quantization, so the comparison isolates implementation correctness."""
    x = jnp.transpose(x_nchw, (0, 2, 3, 1))
    x_b = x.astype(jnp.bfloat16)
    dn = lax.conv_dimension_numbers(x.shape, params["w1"].shape, ("NHWC", "HWIO", "NHWC"))

    def conv(inp, w):
        return lax.conv_general_dilated(
            inp.astype(jnp.bfloat16), w.astype(jnp.bfloat16), (1, 1), "SAME",
            dimension_numbers=dn, preferred_element_type=jnp.float32)

    s1, b1 = fold_bn(params["gamma1"], params["beta1"], params["mean1"], params["var1"])
    s2, b2 = fold_bn(params["gamma2"], params["beta2"], params["mean2"], params["var2"])
    h = jnp.maximum(conv(x_b, params["w1"]) * s1 + b1, 0.0)
    o = jnp.maximum(conv(h, params["w2"]) * s2 + b2 + x_b.astype(jnp.float32), 0.0)
    return jnp.transpose(o, (0, 3, 1, 2))


if __name__ == "__main__":
    # Small shapes consistent with the module (inplanes=planes, stride=1).
    N, C, H, W = 2, 32, 16, 16

    key = jax.random.PRNGKey(0)
    kx, kw1, kw2 = jax.random.split(key, 3)

    x = jax.random.normal(kx, (N, C, H, W), jnp.float32)   # NCHW, like PyTorch

    params = {
        # conv weights in HWIO layout (3,3,Cin,Cout), no bias (matches bias=False)
        "w1": jax.random.normal(kw1, (3, 3, C, C), jnp.float32) * 0.05,
        "w2": jax.random.normal(kw2, (3, 3, C, C), jnp.float32) * 0.05,
        # BatchNorm2d default init: weight=1, bias=0, running_mean=0, running_var=1
        "gamma1": jnp.ones((C,), jnp.float32), "beta1": jnp.zeros((C,), jnp.float32),
        "mean1": jnp.zeros((C,), jnp.float32), "var1": jnp.ones((C,), jnp.float32),
        "gamma2": jnp.ones((C,), jnp.float32), "beta2": jnp.zeros((C,), jnp.float32),
        "mean2": jnp.zeros((C,), jnp.float32), "var2": jnp.ones((C,), jnp.float32),
    }

    out = jax.block_until_ready(resblock_forward(x, params))
    ref = resblock_reference(x, params)

    assert out.shape == (N, C, H, W)
    assert jnp.allclose(out, ref, atol=1e-2, rtol=1e-2), "mismatch vs JAX reference"

    print("KERNEL_OK")
</pallas_src>

<mosaic_0001>
module attributes {stable_mosaic.version = 11 : i64} {
  func.func @kernel(%arg0: i32, %arg1: memref<1x256x32xbf16, #tpu.memory_space<vmem>>, %arg2: memref<288x32xbf16, #tpu.memory_space<vmem>>, %arg3: memref<288x32xbf16, #tpu.memory_space<vmem>>, %arg4: memref<1x32xf32, #tpu.memory_space<vmem>>, %arg5: memref<1x32xf32, #tpu.memory_space<vmem>>, %arg6: memref<1x32xf32, #tpu.memory_space<vmem>>, %arg7: memref<1x32xf32, #tpu.memory_space<vmem>>, %arg8: memref<1x256x32xf32, #tpu.memory_space<vmem>>, %arg9: memref<290x32xbf16, #tpu.memory_space<vmem>>) attributes {dimension_semantics = [#tpu.dimension_semantics<parallel>], iteration_bounds = array<i64: 2>, scalar_prefetch = 0 : i64, scratch_operands = 1 : i64, tpu.core_type = #tpu.core_type<tc>, window_params = [{transform_indices = @transform_0, window_bounds = array<i64: 1, 256, 32>}, {pipeline_mode = #tpu.pipeline_mode<synchronous>, transform_indices = @transform_1, window_bounds = array<i64: 288, 32>}, {pipeline_mode = #tpu.pipeline_mode<synchronous>, transform_indices = @transform_2, window_bounds = array<i64: 288, 32>}, {pipeline_mode = #tpu.pipeline_mode<synchronous>, transform_indices = @transform_3, window_bounds = array<i64: 1, 32>}, {pipeline_mode = #tpu.pipeline_mode<synchronous>, transform_indices = @transform_4, window_bounds = array<i64: 1, 32>}, {pipeline_mode = #tpu.pipeline_mode<synchronous>, transform_indices = @transform_5, window_bounds = array<i64: 1, 32>}, {pipeline_mode = #tpu.pipeline_mode<synchronous>, transform_indices = @transform_6, window_bounds = array<i64: 1, 32>}, {transform_indices = @transform_7, window_bounds = array<i64: 1, 256, 32>}]} {
    %0 = tpu.iota {dimensions = array<i32: 0>} : vector<256x1xi32>
    %c16_i32 = arith.constant 16 : i32
    %c0_i32 = arith.constant 0 : i32
    %1 = arith.cmpi eq, %c16_i32, %c0_i32 : i32
    %c1_i32 = arith.constant 1 : i32
    %2 = arith.select %1, %c1_i32, %c16_i32 : i32
    %3 = vector.broadcast %2 : i32 to vector<256x1xi32>
    %4 = arith.remsi %0, %3 : vector<256x1xi32>
    %c0_i32_0 = arith.constant 0 : i32
    %5 = vector.broadcast %c0_i32_0 : i32 to vector<256x1xi32>
    %6 = arith.cmpi ne, %4, %5 : vector<256x1xi32>
    %c0_i32_1 = arith.constant 0 : i32
    %7 = vector.broadcast %c0_i32_1 : i32 to vector<256x1xi32>
    %8 = arith.cmpi slt, %4, %7 : vector<256x1xi32>
    %c0_i32_2 = arith.constant 0 : i32
    %9 = arith.cmpi slt, %2, %c0_i32_2 : i32
    %10 = vector.broadcast %9 : i1 to vector<256x1xi1>
    %11 = vector.broadcast %10 : vector<256x1xi1> to vector<256x1xi1>
    %12 = arith.xori %8, %11 : vector<256x1xi1>
    %13 = arith.andi %12, %6 : vector<256x1xi1>
    %14 = vector.broadcast %2 : i32 to vector<256x1xi32>
    %15 = arith.addi %4, %14 : vector<256x1xi32>
    %16 = arith.select %13, %15, %4 : vector<256x1xi1>, vector<256x1xi32>
    %c0_i32_3 = arith.constant 0 : i32
    %17 = vector.broadcast %c0_i32_3 : i32 to vector<256x1xi32>
    %18 = arith.cmpi ne, %16, %17 : vector<256x1xi32>
    %c15_i32 = arith.constant 15 : i32
    %19 = vector.broadcast %c15_i32 : i32 to vector<256x1xi32>
    %20 = arith.cmpi ne, %16, %19 : vector<256x1xi32>
    %cst = arith.constant 0.000000e+00 : bf16
    %21 = vector.broadcast %cst : bf16 to vector<290x32xbf16>
    %c0 = arith.constant 0 : index
    %c0_4 = arith.constant 0 : index
    %22 = vector.load %arg9[%c0, %c0_4] : memref<290x32xbf16, #tpu.memory_space<vmem>>, vector<290x32xbf16>
    tpu.vector_store %arg9[%c0, %c0_4], %21 {strides = array<i32>} : memref<290x32xbf16, #tpu.memory_space<vmem>>, vector<290x32xbf16>,
    %c0_5 = arith.constant 0 : index
    %c0_6 = arith.constant 0 : index
    %c0_7 = arith.constant 0 : index
    %23 = vector.load %arg1[%c0_5, %c0_6, %c0_7] : memref<1x256x32xbf16, #tpu.memory_space<vmem>>, vector<1x256x32xbf16>
    %24 = vector.shape_cast %23 : vector<1x256x32xbf16> to vector<256x32xbf16>
    %c17 = arith.constant 17 : index
    %c0_8 = arith.constant 0 : index
    %25 = vector.load %arg9[%c17, %c0_8] : memref<290x32xbf16, #tpu.memory_space<vmem>>, vector<256x32xbf16>
    tpu.vector_store %arg9[%c17, %c0_8], %24 {strides = array<i32>} : memref<290x32xbf16, #tpu.memory_space<vmem>>, vector<256x32xbf16>,
    %c0_9 = arith.constant 0 : index
    %c0_10 = arith.constant 0 : index
    %26 = vector.load %arg9[%c0_9, %c0_10] : memref<290x32xbf16, #tpu.memory_space<vmem>>, vector<256x32xbf16>
    %cst_11 = arith.constant 0.000000e+00 : bf16
    %27 = vector.broadcast %cst_11 : bf16 to vector<256x32xbf16>
    %28 = vector.shape_cast %18 : vector<256x1xi1> to vector<256x1xi1>
    %29 = vector.broadcast %28 : vector<256x1xi1> to vector<256x32xi1>
    %30 = arith.select %29, %26, %27 : vector<256x32xi1>, vector<256x32xbf16>
    %c1 = arith.constant 1 : index
    %c0_12 = arith.constant 0 : index
    %31 = vector.load %arg9[%c1, %c0_12] : memref<290x32xbf16, #tpu.memory_space<vmem>>, vector<256x32xbf16>
    %c2 = arith.constant 2 : index
    %c0_13 = arith.constant 0 : index
    %32 = vector.load %arg9[%c2, %c0_13] : memref<290x32xbf16, #tpu.memory_space<vmem>>, vector<256x32xbf16>
    %cst_14 = arith.constant 0.000000e+00 : bf16
    %33 = vector.broadcast %cst_14 : bf16 to vector<256x32xbf16>
    %34 = vector.shape_cast %20 : vector<256x1xi1> to vector<256x1xi1>
    %35 = vector.broadcast %34 : vector<256x1xi1> to vector<256x32xi1>
    %36 = arith.select %35, %32, %33 : vector<256x32xi1>, vector<256x32xbf16>
    %c16 = arith.constant 16 : index
    %c0_15 = arith.constant 0 : index
    %37 = vector.load %arg9[%c16, %c0_15] : memref<290x32xbf16, #tpu.memory_space<vmem>>, vector<256x32xbf16>
    %cst_16 = arith.constant 0.000000e+00 : bf16
    %38 = vector.broadcast %cst_16 : bf16 to vector<256x32xbf16>
    %39 = vector.shape_cast %18 : vector<256x1xi1> to vector<256x1xi1>
    %40 = vector.broadcast %39 : vector<256x1xi1> to vector<256x32xi1>
    %41 = arith.select %40, %37, %38 : vector<256x32xi1>, vector<256x32xbf16>
    %c17_17 = arith.constant 17 : index
    %c0_18 = arith.constant 0 : index
    %42 = vector.load %arg9[%c17_17, %c0_18] : memref<290x32xbf16, #tpu.memory_space<vmem>>, vector<256x32xbf16>
    %c18 = arith.constant 18 : index
    %c0_19 = arith.constant 0 : index
    %43 = vector.load %arg9[%c18, %c0_19] : memref<290x32xbf16, #tpu.memory_space<vmem>>, vector<256x32xbf16>
    %cst_20 = arith.constant 0.000000e+00 : bf16
    %44 = vector.broadcast %cst_20 : bf16 to vector<256x32xbf16>
    %45 = vector.shape_cast %20 : vector<256x1xi1> to vector<256x1xi1>
    %46 = vector.broadcast %45 : vector<256x1xi1> to vector<256x32xi1>
    %47 = arith.select %46, %43, %44 : vector<256x32xi1>, vector<256x32xbf16>
    %c32 = arith.constant 32 : index
    %c0_21 = arith.constant 0 : index
    %48 = vector.load %arg9[%c32, %c0_21] : memref<290x32xbf16, #tpu.memory_space<vmem>>, vector<256x32xbf16>
    %cst_22 = arith.constant 0.000000e+00 : bf16
    %49 = vector.broadcast %cst_22 : bf16 to vector<256x32xbf16>
    %50 = vector.shape_cast %18 : vector<256x1xi1> to vector<256x1xi1>
    %51 = vector.broadcast %50 : vector<256x1xi1> to vector<256x32xi1>
    %52 = arith.select %51, %48, %49 : vector<256x32xi1>, vector<256x32xbf16>
    %c33 = arith.constant 33 : index
    %c0_23 = arith.constant 0 : index
    %53 = vector.load %arg9[%c33, %c0_23] : memref<290x32xbf16, #tpu.memory_space<vmem>>, vector<256x32xbf16>
    %c34 = arith.constant 34 : index
    %c0_24 = arith.constant 0 : index
    %54 = vector.load %arg9[%c34, %c0_24] : memref<290x32xbf16, #tpu.memory_space<vmem>>, vector<256x32xbf16>
    %cst_25 = arith.constant 0.000000e+00 : bf16
    %55 = vector.broadcast %cst_25 : bf16 to vector<256x32xbf16>
    %56 = vector.shape_cast %20 : vector<256x1xi1> to vector<256x1xi1>
    %57 = vector.broadcast %56 : vector<256x1xi1> to vector<256x32xi1>
    %58 = arith.select %57, %54, %55 : vector<256x32xi1>, vector<256x32xbf16>
    %59 = tpu.concatenate %30, %31, %36, %41, %42, %47, %52, %53, %58 in 1 : vector<256x32xbf16>, vector<256x32xbf16>, vector<256x32xbf16>, vector<256x32xbf16>, vector<256x32xbf16>, vector<256x32xbf16>, vector<256x32xbf16>, vector<256x32xbf16>, vector<256x32xbf16> -> vector<256x288xbf16>
    %c0_26 = arith.constant 0 : index
    %c0_27 = arith.constant 0 : index
    %60 = vector.load %arg2[%c0_26, %c0_27] : memref<288x32xbf16, #tpu.memory_space<vmem>>, vector<288x32xbf16>
    %cst_28 = arith.constant dense<0.000000e+00> : vector<256x32xf32>
    %61 = tpu.matmul %59, %60, %cst_28 {dimension_numbers = #tpu.dot_dimension_numbers<[1], [0], [0], [1], [0, 0, 1, 1], [], []>} : vector<256x288xbf16>, vector<288x32xbf16>, vector<256x32xf32> -> vector<256x32xf32>
    %c0_29 = arith.constant 0 : index
    %c0_30 = arith.constant 0 : index
    %62 = vector.load %arg4[%c0_29, %c0_30] : memref<1x32xf32, #tpu.memory_space<vmem>>, vector<1x32xf32>
    %63 = vector.broadcast %62 : vector<1x32xf32> to vector<256x32xf32>
    %64 = arith.mulf %61, %63 : vector<256x32xf32>
    %c0_31 = arith.constant 0 : index
    %c0_32 = arith.constant 0 : index
    %65 = vector.load %arg5[%c0_31, %c0_32] : memref<1x32xf32, #tpu.memory_space<vmem>>, vector<1x32xf32>
    %66 = vector.broadcast %65 : vector<1x32xf32> to vector<256x32xf32>
    %67 = arith.addf %64, %66 : vector<256x32xf32>
    %cst_33 = arith.constant 0.000000e+00 : f32
    %68 = vector.broadcast %cst_33 : f32 to vector<256x32xf32>
    %69 = arith.maximumf %67, %68 : vector<256x32xf32>
    %70 = arith.truncf %69 : vector<256x32xf32> to vector<256x32xbf16>
    %c17_34 = arith.constant 17 : index
    %c0_35 = arith.constant 0 : index
    %71 = vector.load %arg9[%c17_34, %c0_35] : memref<290x32xbf16, #tpu.memory_space<vmem>>, vector<256x32xbf16>
    tpu.vector_store %arg9[%c17_34, %c0_35], %70 {strides = array<i32>} : memref<290x32xbf16, #tpu.memory_space<vmem>>, vector<256x32xbf16>,
    %c0_36 = arith.constant 0 : index
    %c0_37 = arith.constant 0 : index
    %72 = vector.load %arg9[%c0_36, %c0_37] : memref<290x32xbf16, #tpu.memory_space<vmem>>, vector<256x32xbf16>
    %cst_38 = arith.constant 0.000000e+00 : bf16
    %73 = vector.broadcast %cst_38 : bf16 to vector<256x32xbf16>
    %74 = vector.shape_cast %18 : vector<256x1xi1> to vector<256x1xi1>
    %75 = vector.broadcast %74 : vector<256x1xi1> to vector<256x32xi1>
    %76 = arith.select %75, %72, %73 : vector<256x32xi1>, vector<256x32xbf16>
    %c1_39 = arith.constant 1 : index
    %c0_40 = arith.constant 0 : index
    %77 = vector.load %arg9[%c1_39, %c0_40] : memref<290x32xbf16, #tpu.memory_space<vmem>>, vector<256x32xbf16>
    %c2_41 = arith.constant 2 : index
    %c0_42 = arith.constant 0 : index
    %78 = vector.load %arg9[%c2_41, %c0_42] : memref<290x32xbf16, #tpu.memory_space<vmem>>, vector<256x32xbf16>
    %cst_43 = arith.constant 0.000000e+00 : bf16
    %79 = vector.broadcast %cst_43 : bf16 to vector<256x32xbf16>
    %80 = vector.shape_cast %20 : vector<256x1xi1> to vector<256x1xi1>
    %81 = vector.broadcast %80 : vector<256x1xi1> to vector<256x32xi1>
    %82 = arith.select %81, %78, %79 : vector<256x32xi1>, vector<256x32xbf16>
    %c16_44 = arith.constant 16 : index
    %c0_45 = arith.constant 0 : index
    %83 = vector.load %arg9[%c16_44, %c0_45] : memref<290x32xbf16, #tpu.memory_space<vmem>>, vector<256x32xbf16>
    %cst_46 = arith.constant 0.000000e+00 : bf16
    %84 = vector.broadcast %cst_46 : bf16 to vector<256x32xbf16>
    %85 = vector.shape_cast %18 : vector<256x1xi1> to vector<256x1xi1>
    %86 = vector.broadcast %85 : vector<256x1xi1> to vector<256x32xi1>
    %87 = arith.select %86, %83, %84 : vector<256x32xi1>, vector<256x32xbf16>
    %c17_47 = arith.constant 17 : index
    %c0_48 = arith.constant 0 : index
    %88 = vector.load %arg9[%c17_47, %c0_48] : memref<290x32xbf16, #tpu.memory_space<vmem>>, vector<256x32xbf16>
    %c18_49 = arith.constant 18 : index
    %c0_50 = arith.constant 0 : index
    %89 = vector.load %arg9[%c18_49, %c0_50] : memref<290x32xbf16, #tpu.memory_space<vmem>>, vector<256x32xbf16>
    %cst_51 = arith.constant 0.000000e+00 : bf16
    %90 = vector.broadcast %cst_51 : bf16 to vector<256x32xbf16>
    %91 = vector.shape_cast %20 : vector<256x1xi1> to vector<256x1xi1>
    %92 = vector.broadcast %91 : vector<256x1xi1> to vector<256x32xi1>
    %93 = arith.select %92, %89, %90 : vector<256x32xi1>, vector<256x32xbf16>
    %c32_52 = arith.constant 32 : index
    %c0_53 = arith.constant 0 : index
    %94 = vector.load %arg9[%c32_52, %c0_53] : memref<290x32xbf16, #tpu.memory_space<vmem>>, vector<256x32xbf16>
    %cst_54 = arith.constant 0.000000e+00 : bf16
    %95 = vector.broadcast %cst_54 : bf16 to vector<256x32xbf16>
    %96 = vector.shape_cast %18 : vector<256x1xi1> to vector<256x1xi1>
    %97 = vector.broadcast %96 : vector<256x1xi1> to vector<256x32xi1>
    %98 = arith.select %97, %94, %95 : vector<256x32xi1>, vector<256x32xbf16>
    %c33_55 = arith.constant 33 : index
    %c0_56 = arith.constant 0 : index
    %99 = vector.load %arg9[%c33_55, %c0_56] : memref<290x32xbf16, #tpu.memory_space<vmem>>, vector<256x32xbf16>
    %c34_57 = arith.constant 34 : index
    %c0_58 = arith.constant 0 : index
    %100 = vector.load %arg9[%c34_57, %c0_58] : memref<290x32xbf16, #tpu.memory_space<vmem>>, vector<256x32xbf16>
    %cst_59 = arith.constant 0.000000e+00 : bf16
    %101 = vector.broadcast %cst_59 : bf16 to vector<256x32xbf16>
    %102 = vector.shape_cast %20 : vector<256x1xi1> to vector<256x1xi1>
    %103 = vector.broadcast %102 : vector<256x1xi1> to vector<256x32xi1>
    %104 = arith.select %103, %100, %101 : vector<256x32xi1>, vector<256x32xbf16>
    %105 = tpu.concatenate %76, %77, %82, %87, %88, %93, %98, %99, %104 in 1 : vector<256x32xbf16>, vector<256x32xbf16>, vector<256x32xbf16>, vector<256x32xbf16>, vector<256x32xbf16>, vector<256x32xbf16>, vector<256x32xbf16>, vector<256x32xbf16>, vector<256x32xbf16> -> vector<256x288xbf16>
    %c0_60 = arith.constant 0 : index
    %c0_61 = arith.constant 0 : index
    %106 = vector.load %arg3[%c0_60, %c0_61] : memref<288x32xbf16, #tpu.memory_space<vmem>>, vector<288x32xbf16>
    %cst_62 = arith.constant dense<0.000000e+00> : vector<256x32xf32>
    %107 = tpu.matmul %105, %106, %cst_62 {dimension_numbers = #tpu.dot_dimension_numbers<[1], [0], [0], [1], [0, 0, 1, 1], [], []>} : vector<256x288xbf16>, vector<288x32xbf16>, vector<256x32xf32> -> vector<256x32xf32>
    %c0_63 = arith.constant 0 : index
    %c0_64 = arith.constant 0 : index
    %108 = vector.load %arg6[%c0_63, %c0_64] : memref<1x32xf32, #tpu.memory_space<vmem>>, vector<1x32xf32>
    %109 = vector.broadcast %108 : vector<1x32xf32> to vector<256x32xf32>
    %110 = arith.mulf %107, %109 : vector<256x32xf32>
    %c0_65 = arith.constant 0 : index
    %c0_66 = arith.constant 0 : index
    %111 = vector.load %arg7[%c0_65, %c0_66] : memref<1x32xf32, #tpu.memory_space<vmem>>, vector<1x32xf32>
    %112 = vector.broadcast %111 : vector<1x32xf32> to vector<256x32xf32>
    %113 = arith.addf %110, %112 : vector<256x32xf32>
    %c0_67 = arith.constant 0 : index
    %c0_68 = arith.constant 0 : index
    %c0_69 = arith.constant 0 : index
    %114 = vector.load %arg1[%c0_67, %c0_68, %c0_69] : memref<1x256x32xbf16, #tpu.memory_space<vmem>>, vector<1x256x32xbf16>
    %115 = vector.shape_cast %114 : vector<1x256x32xbf16> to vector<256x32xbf16>
    %116 = arith.extf %115 : vector<256x32xbf16> to vector<256x32xf32>
    %117 = arith.addf %113, %116 : vector<256x32xf32>
    %cst_70 = arith.constant 0.000000e+00 : f32
    %118 = vector.broadcast %cst_70 : f32 to vector<256x32xf32>
    %119 = arith.maximumf %117, %118 : vector<256x32xf32>
    %c0_71 = arith.constant 0 : index
    %c0_72 = arith.constant 0 : index
    %c0_73 = arith.constant 0 : index
    %120 = vector.load %arg8[%c0_71, %c0_72, %c0_73] : memref<1x256x32xf32, #tpu.memory_space<vmem>>, vector<1x256x32xf32>
    %121 = vector.shape_cast %120 : vector<1x256x32xf32> to vector<256x32xf32>
    %122 = vector.shape_cast %119 : vector<256x32xf32> to vector<1x256x32xf32>
    tpu.vector_store %arg8[%c0_71, %c0_72, %c0_73], %122 {strides = array<i32>} : memref<1x256x32xf32, #tpu.memory_space<vmem>>, vector<1x256x32xf32>,
    return
  }
  func.func @transform_0(%arg0: i32) -> (i32, i32, i32) {
    %c0_i32 = arith.constant 0 : i32
    %c0_i32_0 = arith.constant 0 : i32
    %c0_i32_1 = arith.constant 0 : i32
    return %arg0, %c0_i32, %c0_i32_0 : i32, i32, i32
  }
  func.func @transform_1(%arg0: i32) -> (i32, i32) {
    %c0_i32 = arith.constant 0 : i32
    %c0_i32_0 = arith.constant 0 : i32
    %c0_i32_1 = arith.constant 0 : i32
    return %c0_i32, %c0_i32_0 : i32, i32
  }
  func.func @transform_2(%arg0: i32) -> (i32, i32) {
    %c0_i32 = arith.constant 0 : i32
    %c0_i32_0 = arith.constant 0 : i32
    %c0_i32_1 = arith.constant 0 : i32
    return %c0_i32, %c0_i32_0 : i32, i32
  }
  func.func @transform_3(%arg0: i32) -> (i32, i32) {
    %c0_i32 = arith.constant 0 : i32
    %c0_i32_0 = arith.constant 0 : i32
    %c0_i32_1 = arith.constant 0 : i32
    return %c0_i32, %c0_i32_0 : i32, i32
  }
  func.func @transform_4(%arg0: i32) -> (i32, i32) {
    %c0_i32 = arith.constant 0 : i32
    %c0_i32_0 = arith.constant 0 : i32
    %c0_i32_1 = arith.constant 0 : i32
    return %c0_i32, %c0_i32_0 : i32, i32
  }
  func.func @transform_5(%arg0: i32) -> (i32, i32) {
    %c0_i32 = arith.constant 0 : i32
    %c0_i32_0 = arith.constant 0 : i32
    %c0_i32_1 = arith.constant 0 : i32
    return %c0_i32, %c0_i32_0 : i32, i32
  }
  func.func @transform_6(%arg0: i32) -> (i32, i32) {
    %c0_i32 = arith.constant 0 : i32
    %c0_i32_0 = arith.constant 0 : i32
    %c0_i32_1 = arith.constant 0 : i32
    return %c0_i32, %c0_i32_0 : i32, i32
  }
  func.func @transform_7(%arg0: i32) -> (i32, i32, i32) {
    %c0_i32 = arith.constant 0 : i32
    %c0_i32_0 = arith.constant 0 : i32
    %c0_i32_1 = arith.constant 0 : i32
    return %arg0, %c0_i32, %c0_i32_0 : i32, i32, i32
  }
}

</mosaic_0001>

<llo_original>
// kernel: resblock_forward.1
$region0: #{resblock_forward.1}
  #allocation0 [shape = 'u32[]', space=smem, size = 0x4, offset = 0x4, fixed_abs, tag = 'smem constant byte address 0x4 - core index']
  #allocation1 [shape = 'u32[144,128]{1,0:T(1,128)}', space=vmem, size = 0x12000, scoped, tag = 'internal scratch']
  #allocation2 [shape = 'bf16[290,32]{1,0:T(8,128)(2,1)}', space=vmem, size = 0x12800, scoped, tag = 'scratch operand']
  %s0 = inlined_call_operand.vmem [shape: bf16[2,256,32], index: 0, kind: input, shape index: {}]
  %s1 = inlined_call_operand.vmem [shape: bf16[288,32], index: 1, kind: input, shape index: {}]
  %s2 = inlined_call_operand.vmem [shape: bf16[288,32], index: 2, kind: input, shape index: {}]
  %s3 = inlined_call_operand.vmem [shape: f32[1,32], index: 3, kind: input, shape index: {}]
  %s4 = inlined_call_operand.vmem [shape: f32[1,32], index: 4, kind: input, shape index: {}]
  %s5 = inlined_call_operand.vmem [shape: f32[1,32], index: 5, kind: input, shape index: {}]
  %s6 = inlined_call_operand.vmem [shape: f32[1,32], index: 6, kind: input, shape index: {}]
  %s7 = inlined_call_operand.hbm [shape: f32[2,256,32], index: 7, kind: output, shape index: {}]
  %s8 = sld [smem:[#allocation0]]
  $region61: #{resblock_forward.1} parent=0
    _
  %s10 = ssub.s32 1, %s8
  %s11 = scalar_select 0, %s10, %s8
  $region1: #{resblock_forward.1} parent=0
    #allocation3 [shape = 'u8[262144]{0}', space=vmem, size = 0x40000, scoped, tag = 'output window, operand 0']
    #allocation4 [shape = 's32[2]{0}', space=sflag, size = 0x8, scoped, tag = 'scoped memory for resblock_forward.1']
    %12 = vsyncpa [#allocation4], 0
    %s13 = scalar_lea.sflag [#allocation4], 1
    %14 = vsyncpa %s13, 0
    loop: start=0, step=1, limit=4
    $region2: #{resblock_forward.1} parent=1 // loop_pre_header
      _
    $region3: #{resblock_forward.1} parent=1 // loop_header
      %s16 = sphi 0, %s20
      %p17 = scmp.ge.s32.totalorder %s16, 4
      %s26 = sphi 0, %s28
      %s29 = sphi 0, %s26
      %s30 = sphi 0, %s29
      %s46 = sphi 0, %s30
      %s50 = sphi 0, %s50
      %s52 = sphi 0, %s50
      %s53 = sphi 0, %s52
      %s67 = sphi 0, %s53
      %s71 = sphi 0, %s71
      %s73 = sphi 0, %s71
      %s74 = sphi 0, %s73
      %s88 = sphi 0, %s74
      %s92 = sphi 0, %s92
      %s94 = sphi 0, %s92
      %s95 = sphi 0, %s94
      %s109 = sphi 0, %s95
      %s113 = sphi 0, %s113
      %s115 = sphi 0, %s113
      %s116 = sphi 0, %s115
      %s130 = sphi 0, %s116
      %s134 = sphi 0, %s134
      %s136 = sphi 0, %s134
      %s137 = sphi 0, %s136
      %s151 = sphi 0, %s137
      %s155 = sphi 0, %s155
      %s157 = sphi 0, %s155
      %s158 = sphi 0, %s157
      %s172 = sphi 0, %s158
      %s178 = sphi 0, %s180
      %s181 = sphi 0, %s178
      %s182 = sphi 0, %s181
      %s198 = sphi 0, %s182
    $region4: #{resblock_forward.1} parent=1 // loop_header_branch
      %19 = sbr.rel (%p17) target = $region8
    $region5: #{resblock_forward.1} parent=1 // loop_body
      %s21 = ssub.s32 %s16, 1
      %s22 = ssub.s32 %s16, 2
      %s23 = sadd.s32 %s16, 1
      %s24 = ssub.s32 %s16, %s23
      %p25 = scmp.eq.s32.totalorder %s24, 0
      %s27 = sadd.s32 %s26, 1
      %s28 = scalar_select %p25, %s26, %s27
      %p31 = pneg %p25
      %p32 = scmp.eq.s32.totalorder %s16, 1
      %p33 = por %p31, %p32
      %p34 = scmp.ne.s32.totalorder %s26, %s29
      %p35 = scmp.eq.s32.totalorder %s16, 0
      %p36 = por %p34, %p35
      %p37 = scmp.ne.s32.totalorder %s26, %s29
      %p38 = scmp.eq.s32.totalorder %s21, 1
      %p39 = por %p37, %p38
      %p40 = scmp.ne.s32.totalorder %s29, %s30
      %p41 = scmp.eq.s32.totalorder %s21, 0
      %p42 = por %p40, %p41
      %p43 = scmp.ne.s32.totalorder %s29, %s30
      %p44 = scmp.eq.s32.totalorder %s22, 1
      %p45 = por %p43, %p44
      %p47 = scmp.ne.s32.totalorder %s30, %s46
      %p48 = scmp.eq.s32.totalorder %s22, 0
      %p49 = por %p47, %p48
      %s51 = sadd.s32 %s50, 1
      %p54 = scmp.eq.s32.totalorder %s16, 1
      %p55 = scmp.ne.s32.totalorder %s50, %s52
      %p56 = scmp.eq.s32.totalorder %s16, 0
      %p57 = por %p55, %p56
      %p58 = scmp.ne.s32.totalorder %s50, %s52
      %p59 = scmp.eq.s32.totalorder %s21, 1
      %p60 = por %p58, %p59
      %p61 = scmp.ne.s32.totalorder %s52, %s53
      %p62 = scmp.eq.s32.totalorder %s21, 0
      %p63 = por %p61, %p62
      %p64 = scmp.ne.s32.totalorder %s52, %s53
      %p65 = scmp.eq.s32.totalorder %s22, 1
      %p66 = por %p64, %p65
      %p68 = scmp.ne.s32.totalorder %s53, %s67
      %p69 = scmp.eq.s32.totalorder %s22, 0
      %p70 = por %p68, %p69
      %s72 = sadd.s32 %s71, 1
      %p75 = scmp.eq.s32.totalorder %s16, 1
      %p76 = scmp.ne.s32.totalorder %s71, %s73
      %p77 = scmp.eq.s32.totalorder %s16, 0
      %p78 = por %p76, %p77
      %p79 = scmp.ne.s32.totalorder %s71, %s73
      %p80 = scmp.eq.s32.totalorder %s21, 1
      %p81 = por %p79, %p80
      %p82 = scmp.ne.s32.totalorder %s73, %s74
      %p83 = scmp.eq.s32.totalorder %s21, 0
      %p84 = por %p82, %p83
      %p85 = scmp.ne.s32.totalorder %s73, %s74
      %p86 = scmp.eq.s32.totalorder %s22, 1
      %p87 = por %p85, %p86
      %p89 = scmp.ne.s32.totalorder %s74, %s88
      %p90 = scmp.eq.s32.totalorder %s22, 0
      %p91 = por %p89, %p90
      %s93 = sadd.s32 %s92, 1
      %p96 = scmp.eq.s32.totalorder %s16, 1
      %p97 = scmp.ne.s32.totalorder %s92, %s94
      %p98 = scmp.eq.s32.totalorder %s16, 0
      %p99 = por %p97, %p98
      %p100 = scmp.ne.s32.totalorder %s92, %s94
      %p101 = scmp.eq.s32.totalorder %s21, 1
      %p102 = por %p100, %p101
      %p103 = scmp.ne.s32.totalorder %s94, %s95
      %p104 = scmp.eq.s32.totalorder %s21, 0
      %p105 = por %p103, %p104
      %p106 = scmp.ne.s32.totalorder %s94, %s95
      %p107 = scmp.eq.s32.totalorder %s22, 1
      %p108 = por %p106, %p107
      %p110 = scmp.ne.s32.totalorder %s95, %s109
      %p111 = scmp.eq.s32.totalorder %s22, 0
      %p112 = por %p110, %p111
      %s114 = sadd.s32 %s113, 1
      %p117 = scmp.eq.s32.totalorder %s16, 1
      %p118 = scmp.ne.s32.totalorder %s113, %s115
      %p119 = scmp.eq.s32.totalorder %s16, 0
      %p120 = por %p118, %p119
      %p121 = scmp.ne.s32.totalorder %s113, %s115
      %p122 = scmp.eq.s32.totalorder %s21, 1
      %p123 = por %p121, %p122
      %p124 = scmp.ne.s32.totalorder %s115, %s116
      %p125 = scmp.eq.s32.totalorder %s21, 0
      %p126 = por %p124, %p125
      %p127 = scmp.ne.s32.totalorder %s115, %s116
      %p128 = scmp.eq.s32.totalorder %s22, 1
      %p129 = por %p127, %p128
      %p131 = scmp.ne.s32.totalorder %s116, %s130
      %p132 = scmp.eq.s32.totalorder %s22, 0
      %p133 = por %p131, %p132
      %s135 = sadd.s32 %s134, 1
      %p138 = scmp.eq.s32.totalorder %s16, 1
      %p139 = scmp.ne.s32.totalorder %s134, %s136
      %p140 = scmp.eq.s32.totalorder %s16, 0
      %p141 = por %p139, %p140
      %p142 = scmp.ne.s32.totalorder %s134, %s136
      %p143 = scmp.eq.s32.totalorder %s21, 1
      %p144 = por %p142, %p143
      %p145 = scmp.ne.s32.totalorder %s136, %s137
      %p146 = scmp.eq.s32.totalorder %s21, 0
      %p147 = por %p145, %p146
      %p148 = scmp.ne.s32.totalorder %s136, %s137
      %p149 = scmp.eq.s32.totalorder %s22, 1
      %p150 = por %p148, %p149
      %p152 = scmp.ne.s32.totalorder %s137, %s151
      %p153 = scmp.eq.s32.totalorder %s22, 0
      %p154 = por %p152, %p153
      %s156 = sadd.s32 %s155, 1
      %p159 = scmp.eq.s32.totalorder %s16, 1
      %p160 = scmp.ne.s32.totalorder %s155, %s157
      %p161 = scmp.eq.s32.totalorder %s16, 0
      %p162 = por %p160, %p161
      %p163 = scmp.ne.s32.totalorder %s155, %s157
      %p164 = scmp.eq.s32.totalorder %s21, 1
      %p165 = por %p163, %p164
      %p166 = scmp.ne.s32.totalorder %s157, %s158
      %p167 = scmp.eq.s32.totalorder %s21, 0
      %p168 = por %p166, %p167
      %p169 = scmp.ne.s32.totalorder %s157, %s158
      %p170 = scmp.eq.s32.totalorder %s22, 1
      %p171 = por %p169, %p170
      %p173 = scmp.ne.s32.totalorder %s158, %s172
      %p174 = scmp.eq.s32.totalorder %s22, 0
      %p175 = por %p173, %p174
      %s176 = ssub.s32 %s16, %s23
      %p177 = scmp.eq.s32.totalorder %s176, 0
      %s179 = sadd.s32 %s178, 1
      %s180 = scalar_select %p177, %s178, %s179
      %p183 = pneg %p177
      %p184 = scmp.eq.s32.totalorder %s16, 1
      %p185 = por %p183, %p184
      %p186 = scmp.ne.s32.totalorder %s178, %s181
      %p187 = scmp.eq.s32.totalorder %s16, 0
      %p188 = por %p186, %p187
      %p189 = scmp.ne.s32.totalorder %s178, %s181
      %p190 = scmp.eq.s32.totalorder %s21, 1
      %p191 = por %p189, %p190
      %p192 = scmp.ne.s32.totalorder %s181, %s182
      %p193 = scmp.eq.s32.totalorder %s21, 0
      %p194 = por %p192, %p193
      %p195 = scmp.ne.s32.totalorder %s181, %s182
      %p196 = scmp.eq.s32.totalorder %s22, 1
      %p197 = por %p195, %p196
      %p199 = scmp.ne.s32.totalorder %s182, %s198
      %p200 = scmp.eq.s32.totalorder %s22, 0
      %p201 = por %p199, %p200
      %p202 = scmp.le.s32.totalorder 1, %s16
      %p203 = scmp.lt.s32.totalorder %s16, 3
      %p204 = pnand %p202, %p203
      %p205 = pneg %p204
      // Predicated region
      $region9: #{resblock_forward.1} parent=5 // pred_check
        _
      $region10: #{resblock_forward.1} parent=5 // pred_check_branch
        %207 = sbr.rel (%p204) target = $region12
      $region11: #{resblock_forward.1} parent=5 // pred_region
        %s208 = ssub.s32 %s16, 1
        // Predicated region
        $region13: #{resblock_forward.1} parent=11 // pred_check
          %p209 = pneg %p63
        $region14: #{resblock_forward.1} parent=11 // pred_check_branch
          %211 = sbr.rel (%p209) target = $region16
        $region15: #{resblock_forward.1} parent=11 // pred_region
          _
        $region16: #{resblock_forward.1} parent=11 // pred_fallthru
          _
        // Predicated region
        $region17: #{resblock_forward.1} parent=11 // pred_check
          %p212 = pneg %p84
        $region18: #{resblock_forward.1} parent=11 // pred_check_branch
          %214 = sbr.rel (%p212) target = $region20
        $region19: #{resblock_forward.1} parent=11 // pred_region
          _
        $region20: #{resblock_forward.1} parent=11 // pred_fallthru
          _
        // Predicated region
        $region21: #{resblock_forward.1} parent=11 // pred_check
          %p215 = pneg %p105
        $region22: #{resblock_forward.1} parent=11 // pred_check_branch
          %217 = sbr.rel (%p215) target = $region24
        $region23: #{resblock_forward.1} parent=11 // pred_region
          _
        $region24: #{resblock_forward.1} parent=11 // pred_fallthru
          _
        // Predicated region
        $region25: #{resblock_forward.1} parent=11 // pred_check
          %p218 = pneg %p126
        $region26: #{resblock_forward.1} parent=11 // pred_check_branch
          %220 = sbr.rel (%p218) target = $region28
        $region27: #{resblock_forward.1} parent=11 // pred_region
          _
        $region28: #{resblock_forward.1} parent=11 // pred_fallthru
          _
        // Predicated region
        $region29: #{resblock_forward.1} parent=11 // pred_check
          %p221 = pneg %p147
        $region30: #{resblock_forward.1} parent=11 // pred_check_branch
          %223 = sbr.rel (%p221) target = $region32
        $region31: #{resblock_forward.1} parent=11 // pred_region
          _
        $region32: #{resblock_forward.1} parent=11 // pred_fallthru
          _
        // Predicated region
        $region33: #{resblock_forward.1} parent=11 // pred_check
          %p224 = pneg %p168
        $region34: #{resblock_forward.1} parent=11 // pred_check_branch
          %226 = sbr.rel (%p224) target = $region36
        $region35: #{resblock_forward.1} parent=11 // pred_region
          _
        $region36: #{resblock_forward.1} parent=11 // pred_fallthru
          _
      $region12: #{resblock_forward.1} parent=5 // pred_fallthru
        _
      %p227 = scmp.lt.s32.totalorder %s16, 2
      // Predicated region
      $region37: #{resblock_forward.1} parent=5 // pred_check
        %p228 = pneg %p227
      $region38: #{resblock_forward.1} parent=5 // pred_check_branch
        %230 = sbr.rel (%p228) target = $region40
      $region39: #{resblock_forward.1} parent=5 // pred_region
        // Predicated region
        $region41: #{resblock_forward.1} parent=39 // pred_check
          %p231 = pneg %p36
        $region42: #{resblock_forward.1} parent=39 // pred_check_branch
          %233 = sbr.rel (%p231) target = $region44
        $region43: #{resblock_forward.1} parent=39 // pred_region
          %p234 = scmp.lt.s32.totalorder %s16, 1
          %s235 = scalar_select %p234, %s16, 1
          %s236 = smul.addr %s235, 32
          %s237 = smul.addr %s236, 4
          %s238 = scalar_lea.vmem %s0, %s237
        $region44: #{resblock_forward.1} parent=39 // pred_fallthru
          _
      $region40: #{resblock_forward.1} parent=5 // pred_fallthru
        _
      %p239 = scmp.le.s32.totalorder 1, %s16
      %p240 = scmp.lt.s32.totalorder %s16, 3
      %p241 = pnand %p239, %p240
      %p242 = pneg %p241
      // Predicated region
      $region45: #{resblock_forward.1} parent=5 // pred_check
        _
      $region46: #{resblock_forward.1} parent=5 // pred_check_branch
        %244 = sbr.rel (%p241) target = $region48
      $region47: #{resblock_forward.1} parent=5 // pred_region
        %s245 = ssub.s32 %s16, 1
        %p246 = scmp.lt.s32.totalorder %s21, 1
        %s247 = scalar_select %p246, %s21, 1
        %s248 = smul.addr %s247, 32
        %s249 = smul.addr %s248, 4
        %s250 = scalar_lea.vmem %s0, %s249
        %p251 = pneg %p42
        %p252 = pneg %p39
        %p253 = pneg %p63
        %p254 = pneg %p60
        %p255 = pneg %p84
        %p256 = pneg %p81
        %p257 = pneg %p105
        %p258 = pneg %p102
        %p259 = pneg %p126
        %p260 = pneg %p123
        %p261 = pneg %p147
        %p262 = pneg %p144
        %p263 = pneg %p168
        %p264 = pneg %p165
        %p265 = pneg %p194
        %p266 = pneg %p191
        %s267 = sand.u32 %s181, 1
        %s268 = scalar_lea.sflag [#allocation4], %s267
        %s269 = sand.u32 %s181, 1
        %s270 = smul.addr %s269, 256
        %s271 = scalar_lea.vmem [#allocation3], %s270
        %p272 = scmp.lt.s32.totalorder %s21, 1
        %s273 = scalar_select %p272, %s21, 1
        %s274 = smul.addr %s273, 32
        %s275 = smul.addr %s274, 4
        %s276 = scalar_lea.vmem %s0, %s275
        %v280 = vlaneseq
        %v281 = vshrl.u32 %v280, 7
        %v282 = vadd.s32 %v281, 8
        %v283 = vadd.s32 %v281, 16
        %v284 = vadd.s32 %v281, 24
        %v285 = vadd.s32 %v281, 32
        %v286 = vadd.s32 %v281, 40
        %v287 = vadd.s32 %v281, 48
        %v288 = vadd.s32 %v281, 56
        %v289 = vadd.s32 %v281, 64
        %v290 = vadd.s32 %v281, 72
        %v291 = vadd.s32 %v281, 80
        %v292 = vadd.s32 %v281, 88
        %v293 = vadd.s32 %v281, 96
        %v294 = vadd.s32 %v281, 104
        %v295 = vadd.s32 %v281, 112
        %v296 = vadd.s32 %v281, 120
        %v297 = vadd.s32 %v281, 128
        %v298 = vadd.s32 %v281, 136
        %v299 = vadd.s32 %v281, 144
        %v300 = vadd.s32 %v281, 152
        %v301 = vadd.s32 %v281, 160
        %v302 = vadd.s32 %v281, 168
        %v303 = vadd.s32 %v281, 176
        %v304 = vadd.s32 %v281, 184
        %v305 = vadd.s32 %v281, 192
        %v306 = vadd.s32 %v281, 200
        %v307 = vadd.s32 %v281, 208
        %v308 = vadd.s32 %v281, 216
        %v309 = vadd.s32 %v281, 224
        %v310 = vadd.s32 %v281, 232
        %v311 = vadd.s32 %v281, 240
        %v312 = vadd.s32 %v281, 248
        %vm313 = vcmp.lt.s32.totalorder %v281, 0
        %v314 = vsub.s32 0, %v281
        %v315 = vsel %vm313, %v314, %v281
        %v316 = vshrl.u32 %v315, 4
        %v317 = vand.u32 %v315, 15
        %v318 = vsub.s32 0, %v317
        %v319 = vsel %vm313, %v318, %v317
        %vm320 = vcmp.lt.s32.totalorder %v282, 0
        %v321 = vsub.s32 0, %v282
        %v322 = vsel %vm320, %v321, %v282
        %v323 = vshrl.u32 %v322, 4
        %v324 = vand.u32 %v322, 15
        %v325 = vsub.s32 0, %v324
        %v326 = vsel %vm320, %v325, %v324
        %vm327 = vcmp.lt.s32.totalorder %v283, 0
        %v328 = vsub.s32 0, %v283
        %v329 = vsel %vm327, %v328, %v283
        %v330 = vshrl.u32 %v329, 4
        %v331 = vand.u32 %v329, 15
        %v332 = vsub.s32 0, %v331
        %v333 = vsel %vm327, %v332, %v331
        %vm334 = vcmp.lt.s32.totalorder %v284, 0
        %v335 = vsub.s32 0, %v284
        %v336 = vsel %vm334, %v335, %v284
        %v337 = vshrl.u32 %v336, 4
        %v338 = vand.u32 %v336, 15
        %v339 = vsub.s32 0, %v338
        %v340 = vsel %vm334, %v339, %v338
        %vm341 = vcmp.lt.s32.totalorder %v285, 0
        %v342 = vsub.s32 0, %v285
        %v343 = vsel %vm341, %v342, %v285
        %v344 = vshrl.u32 %v343, 4
        %v345 = vand.u32 %v343, 15
        %v346 = vsub.s32 0, %v345
        %v347 = vsel %vm341, %v346, %v345
        %vm348 = vcmp.lt.s32.totalorder %v286, 0
        %v349 = vsub.s32 0, %v286
        %v350 = vsel %vm348, %v349, %v286
        %v351 = vshrl.u32 %v350, 4
        %v352 = vand.u32 %v350, 15
        %v353 = vsub.s32 0, %v352
        %v354 = vsel %vm348, %v353, %v352
        %vm355 = vcmp.lt.s32.totalorder %v287, 0
        %v356 = vsub.s32 0, %v287
        %v357 = vsel %vm355, %v356, %v287
        %v358 = vshrl.u32 %v357, 4
        %v359 = vand.u32 %v357, 15
        %v360 = vsub.s32 0, %v359
        %v361 = vsel %vm355, %v360, %v359
        %vm362 = vcmp.lt.s32.totalorder %v288, 0
        %v363 = vsub.s32 0, %v288
        %v364 = vsel %vm362, %v363, %v288
        %v365 = vshrl.u32 %v364, 4
        %v366 = vand.u32 %v364, 15
        %v367 = vsub.s32 0, %v366
        %v368 = vsel %vm362, %v367, %v366
        %vm369 = vcmp.lt.s32.totalorder %v289, 0
        %v370 = vsub.s32 0, %v289
        %v371 = vsel %vm369, %v370, %v289
        %v372 = vshrl.u32 %v371, 4
        %v373 = vand.u32 %v371, 15
        %v374 = vsub.s32 0, %v373
        %v375 = vsel %vm369, %v374, %v373
        %vm376 = vcmp.lt.s32.totalorder %v290, 0
        %v377 = vsub.s32 0, %v290
        %v378 = vsel %vm376, %v377, %v290
        %v379 = vshrl.u32 %v378, 4
        %v380 = vand.u32 %v378, 15
        %v381 = vsub.s32 0, %v380
        %v382 = vsel %vm376, %v381, %v380
        %vm383 = vcmp.lt.s32.totalorder %v291, 0
        %v384 = vsub.s32 0, %v291
        %v385 = vsel %vm383, %v384, %v291
        %v386 = vshrl.u32 %v385, 4
        %v387 = vand.u32 %v385, 15
        %v388 = vsub.s32 0, %v387
        %v389 = vsel %vm383, %v388, %v387
        %vm390 = vcmp.lt.s32.totalorder %v292, 0
        %v391 = vsub.s32 0, %v292
        %v392 = vsel %vm390, %v391, %v292
        %v393 = vshrl.u32 %v392, 4
        %v394 = vand.u32 %v392, 15
        %v395 = vsub.s32 0, %v394
        %v396 = vsel %vm390, %v395, %v394
        %vm397 = vcmp.lt.s32.totalorder %v293, 0
        %v398 = vsub.s32 0, %v293
        %v399 = vsel %vm397, %v398, %v293
        %v400 = vshrl.u32 %v399, 4
        %v401 = vand.u32 %v399, 15
        %v402 = vsub.s32 0, %v401
        %v403 = vsel %vm397, %v402, %v401
        %vm404 = vcmp.lt.s32.totalorder %v294, 0
        %v405 = vsub.s32 0, %v294
        %v406 = vsel %vm404, %v405, %v294
        %v407 = vshrl.u32 %v406, 4
        %v408 = vand.u32 %v406, 15
        %v409 = vsub.s32 0, %v408
        %v410 = vsel %vm404, %v409, %v408
        %vm411 = vcmp.lt.s32.totalorder %v295, 0
        %v412 = vsub.s32 0, %v295
        %v413 = vsel %vm411, %v412, %v295
        %v414 = vshrl.u32 %v413, 4
        %v415 = vand.u32 %v413, 15
        %v416 = vsub.s32 0, %v415
        %v417 = vsel %vm411, %v416, %v415
        %vm418 = vcmp.lt.s32.totalorder %v296, 0
        %v419 = vsub.s32 0, %v296
        %v420 = vsel %vm418, %v419, %v296
        %v421 = vshrl.u32 %v420, 4
        %v422 = vand.u32 %v420, 15
        %v423 = vsub.s32 0, %v422
        %v424 = vsel %vm418, %v423, %v422
        %vm425 = vcmp.lt.s32.totalorder %v297, 0
        %v426 = vsub.s32 0, %v297
        %v427 = vsel %vm425, %v426, %v297
        %v428 = vshrl.u32 %v427, 4
        %v429 = vand.u32 %v427, 15
        %v430 = vsub.s32 0, %v429
        %v431 = vsel %vm425, %v430, %v429
        %vm432 = vcmp.lt.s32.totalorder %v298, 0
        %v433 = vsub.s32 0, %v298
        %v434 = vsel %vm432, %v433, %v298
        %v435 = vshrl.u32 %v434, 4
        %v436 = vand.u32 %v434, 15
        %v437 = vsub.s32 0, %v436
        %v438 = vsel %vm432, %v437, %v436
        %vm439 = vcmp.lt.s32.totalorder %v299, 0
        %v440 = vsub.s32 0, %v299
        %v441 = vsel %vm439, %v440, %v299
        %v442 = vshrl.u32 %v441, 4
        %v443 = vand.u32 %v441, 15
        %v444 = vsub.s32 0, %v443
        %v445 = vsel %vm439, %v444, %v443
        %vm446 = vcmp.lt.s32.totalorder %v300, 0
        %v447 = vsub.s32 0, %v300
        %v448 = vsel %vm446, %v447, %v300
        %v449 = vshrl.u32 %v448, 4
        %v450 = vand.u32 %v448, 15
        %v451 = vsub.s32 0, %v450
        %v452 = vsel %vm446, %v451, %v450
        %vm453 = vcmp.lt.s32.totalorder %v301, 0
        %v454 = vsub.s32 0, %v301
        %v455 = vsel %vm453, %v454, %v301
        %v456 = vshrl.u32 %v455, 4
        %v457 = vand.u32 %v455, 15
        %v458 = vsub.s32 0, %v457
        %v459 = vsel %vm453, %v458, %v457
        %vm460 = vcmp.lt.s32.totalorder %v302, 0
        %v461 = vsub.s32 0, %v302
        %v462 = vsel %vm460, %v461, %v302
        %v463 = vshrl.u32 %v462, 4
        %v464 = vand.u32 %v462, 15
        %v465 = vsub.s32 0, %v464
        %v466 = vsel %vm460, %v465, %v464
        %vm467 = vcmp.lt.s32.totalorder %v303, 0
        %v468 = vsub.s32 0, %v303
        %v469 = vsel %vm467, %v468, %v303
        %v470 = vshrl.u32 %v469, 4
        %v471 = vand.u32 %v469, 15
        %v472 = vsub.s32 0, %v471
        %v473 = vsel %vm467, %v472, %v471
        %vm474 = vcmp.lt.s32.totalorder %v304, 0
        %v475 = vsub.s32 0, %v304
        %v476 = vsel %vm474, %v475, %v304
        %v477 = vshrl.u32 %v476, 4
        %v478 = vand.u32 %v476, 15
        %v479 = vsub.s32 0, %v478
        %v480 = vsel %vm474, %v479, %v478
        %vm481 = vcmp.lt.s32.totalorder %v305, 0
        %v482 = vsub.s32 0, %v305
        %v483 = vsel %vm481, %v482, %v305
        %v484 = vshrl.u32 %v483, 4
        %v485 = vand.u32 %v483, 15
        %v486 = vsub.s32 0, %v485
        %v487 = vsel %vm481, %v486, %v485
        %vm488 = vcmp.lt.s32.totalorder %v306, 0
        %v489 = vsub.s32 0, %v306
        %v490 = vsel %vm488, %v489, %v306
        %v491 = vshrl.u32 %v490, 4
        %v492 = vand.u32 %v490, 15
        %v493 = vsub.s32 0, %v492
        %v494 = vsel %vm488, %v493, %v492
        %vm495 = vcmp.lt.s32.totalorder %v307, 0
        %v496 = vsub.s32 0, %v307
        %v497 = vsel %vm495, %v496, %v307
        %v498 = vshrl.u32 %v497, 4
        %v499 = vand.u32 %v497, 15
        %v500 = vsub.s32 0, %v499
        %v501 = vsel %vm495, %v500, %v499
        %vm502 = vcmp.lt.s32.totalorder %v308, 0
        %v503 = vsub.s32 0, %v308
        %v504 = vsel %vm502, %v503, %v308
        %v505 = vshrl.u32 %v504, 4
        %v506 = vand.u32 %v504, 15
        %v507 = vsub.s32 0, %v506
        %v508 = vsel %vm502, %v507, %v506
        %vm509 = vcmp.lt.s32.totalorder %v309, 0
        %v510 = vsub.s32 0, %v309
        %v511 = vsel %vm509, %v510, %v309
        %v512 = vshrl.u32 %v511, 4
        %v513 = vand.u32 %v511, 15
        %v514 = vsub.s32 0, %v513
        %v515 = vsel %vm509, %v514, %v513
        %vm516 = vcmp.lt.s32.totalorder %v310, 0
        %v517 = vsub.s32 0, %v310
        %v518 = vsel %vm516, %v517, %v310
        %v519 = vshrl.u32 %v518, 4
        %v520 = vand.u32 %v518, 15
        %v521 = vsub.s32 0, %v520
        %v522 = vsel %vm516, %v521, %v520
        %vm523 = vcmp.lt.s32.totalorder %v311, 0
        %v524 = vsub.s32 0, %v311
        %v525 = vsel %vm523, %v524, %v311
        %v526 = vshrl.u32 %v525, 4
        %v527 = vand.u32 %v525, 15
        %v528 = vsub.s32 0, %v527
        %v529 = vsel %vm523, %v528, %v527
        %vm530 = vcmp.lt.s32.totalorder %v312, 0
        %v531 = vsub.s32 0, %v312
        %v532 = vsel %vm530, %v531, %v312
        %v533 = vshrl.u32 %v532, 4
        %v534 = vand.u32 %v532, 15
        %v535 = vsub.s32 0, %v534
        %v536 = vsel %vm530, %v535, %v534
        %vm537 = vcmp.ne.s32.totalorder %v319, 0
        %vm538 = vcmp.ne.s32.totalorder %v326, 0
        %vm539 = vcmp.ne.s32.totalorder %v333, 0
        %vm540 = vcmp.ne.s32.totalorder %v340, 0
        %vm541 = vcmp.ne.s32.totalorder %v347, 0
        %vm542 = vcmp.ne.s32.totalorder %v354, 0
        %vm543 = vcmp.ne.s32.totalorder %v361, 0
        %vm544 = vcmp.ne.s32.totalorder %v368, 0
        %vm545 = vcmp.ne.s32.totalorder %v375, 0
        %vm546 = vcmp.ne.s32.totalorder %v382, 0
        %vm547 = vcmp.ne.s32.totalorder %v389, 0
        %vm548 = vcmp.ne.s32.totalorder %v396, 0
        %vm549 = vcmp.ne.s32.totalorder %v403, 0
        %vm550 = vcmp.ne.s32.totalorder %v410, 0
        %vm551 = vcmp.ne.s32.totalorder %v417, 0
        %vm552 = vcmp.ne.s32.totalorder %v424, 0
        %vm553 = vcmp.ne.s32.totalorder %v431, 0
        %vm554 = vcmp.ne.s32.totalorder %v438, 0
        %vm555 = vcmp.ne.s32.totalorder %v445, 0
        %vm556 = vcmp.ne.s32.totalorder %v452, 0
        %vm557 = vcmp.ne.s32.totalorder %v459, 0
        %vm558 = vcmp.ne.s32.totalorder %v466, 0
        %vm559 = vcmp.ne.s32.totalorder %v473, 0
        %vm560 = vcmp.ne.s32.totalorder %v480, 0
        %vm561 = vcmp.ne.s32.totalorder %v487, 0
        %vm562 = vcmp.ne.s32.totalorder %v494, 0
        %vm563 = vcmp.ne.s32.totalorder %v501, 0
        %vm564 = vcmp.ne.s32.totalorder %v508, 0
        %vm565 = vcmp.ne.s32.totalorder %v515, 0
        %vm566 = vcmp.ne.s32.totalorder %v522, 0
        %vm567 = vcmp.ne.s32.totalorder %v529, 0
        %vm568 = vcmp.ne.s32.totalorder %v536, 0
        %vm569 = vcmp.lt.s32.totalorder %v319, 0
        %vm570 = vcmp.lt.s32.totalorder %v326, 0
        %vm571 = vcmp.lt.s32.totalorder %v333, 0
        %vm572 = vcmp.lt.s32.totalorder %v340, 0
        %vm573 = vcmp.lt.s32.totalorder %v347, 0
        %vm574 = vcmp.lt.s32.totalorder %v354, 0
        %vm575 = vcmp.lt.s32.totalorder %v361, 0
        %vm576 = vcmp.lt.s32.totalorder %v368, 0
        %vm577 = vcmp.lt.s32.totalorder %v375, 0
        %vm578 = vcmp.lt.s32.totalorder %v382, 0
        %vm579 = vcmp.lt.s32.totalorder %v389, 0
        %vm580 = vcmp.lt.s32.totalorder %v396, 0
        %vm581 = vcmp.lt.s32.totalorder %v403, 0
        %vm582 = vcmp.lt.s32.totalorder %v410, 0
        %vm583 = vcmp.lt.s32.totalorder %v417, 0
        %vm584 = vcmp.lt.s32.totalorder %v424, 0
        %vm585 = vcmp.lt.s32.totalorder %v431, 0
        %vm586 = vcmp.lt.s32.totalorder %v438, 0
        %vm587 = vcmp.lt.s32.totalorder %v445, 0
        %vm588 = vcmp.lt.s32.totalorder %v452, 0
        %vm589 = vcmp.lt.s32.totalorder %v459, 0
        %vm590 = vcmp.lt.s32.totalorder %v466, 0
        %vm591 = vcmp.lt.s32.totalorder %v473, 0
        %vm592 = vcmp.lt.s32.totalorder %v480, 0
        %vm593 = vcmp.lt.s32.totalorder %v487, 0
        %vm594 = vcmp.lt.s32.totalorder %v494, 0
        %vm595 = vcmp.lt.s32.totalorder %v501, 0
        %vm596 = vcmp.lt.s32.totalorder %v508, 0
        %vm597 = vcmp.lt.s32.totalorder %v515, 0
        %vm598 = vcmp.lt.s32.totalorder %v522, 0
        %vm599 = vcmp.lt.s32.totalorder %v529, 0
        %vm600 = vcmp.lt.s32.totalorder %v536, 0
        %vm601 = vmand %vm569, %vm537
        %vm602 = vmand %vm570, %vm538
        %vm603 = vmand %vm571, %vm539
        %vm604 = vmand %vm572, %vm540
        %vm605 = vmand %vm573, %vm541
        %vm606 = vmand %vm574, %vm542
        %vm607 = vmand %vm575, %vm543
        %vm608 = vmand %vm576, %vm544
        %vm609 = vmand %vm577, %vm545
        %vm610 = vmand %vm578, %vm546
        %vm611 = vmand %vm579, %vm547
        %vm612 = vmand %vm580, %vm548
        %vm613 = vmand %vm581, %vm549
        %vm614 = vmand %vm582, %vm550
        %vm615 = vmand %vm583, %vm551
        %vm616 = vmand %vm584, %vm552
        %vm617 = vmand %vm585, %vm553
        %vm618 = vmand %vm586, %vm554
        %vm619 = vmand %vm587, %vm555
        %vm620 = vmand %vm588, %vm556
        %vm621 = vmand %vm589, %vm557
        %vm622 = vmand %vm590, %vm558
        %vm623 = vmand %vm591, %vm559
        %vm624 = vmand %vm592, %vm560
        %vm625 = vmand %vm593, %vm561
        %vm626 = vmand %vm594, %vm562
        %vm627 = vmand %vm595, %vm563
        %vm628 = vmand %vm596, %vm564
        %vm629 = vmand %vm597, %vm565
        %vm630 = vmand %vm598, %vm566
        %vm631 = vmand %vm599, %vm567
        %vm632 = vmand %vm600, %vm568
        %v633 = vadd.s32 %v319, 16
        %v634 = vadd.s32 %v326, 16
        %v635 = vadd.s32 %v333, 16
        %v636 = vadd.s32 %v340, 16
        %v637 = vadd.s32 %v347, 16
        %v638 = vadd.s32 %v354, 16
        %v639 = vadd.s32 %v361, 16
        %v640 = vadd.s32 %v368, 16
        %v641 = vadd.s32 %v375, 16
        %v642 = vadd.s32 %v382, 16
        %v643 = vadd.s32 %v389, 16
        %v644 = vadd.s32 %v396, 16
        %v645 = vadd.s32 %v403, 16
        %v646 = vadd.s32 %v410, 16
        %v647 = vadd.s32 %v417, 16
        %v648 = vadd.s32 %v424, 16
        %v649 = vadd.s32 %v431, 16
        %v650 = vadd.s32 %v438, 16
        %v651 = vadd.s32 %v445, 16
        %v652 = vadd.s32 %v452, 16
        %v653 = vadd.s32 %v459, 16
        %v654 = vadd.s32 %v466, 16
        %v655 = vadd.s32 %v473, 16
        %v656 = vadd.s32 %v480, 16
        %v657 = vadd.s32 %v487, 16
        %v658 = vadd.s32 %v494, 16
        %v659 = vadd.s32 %v501, 16
        %v660 = vadd.s32 %v508, 16
        %v661 = vadd.s32 %v515, 16
        %v662 = vadd.s32 %v522, 16
        %v663 = vadd.s32 %v529, 16
        %v664 = vadd.s32 %v536, 16
        %v665 = vsel %vm601, %v633, %v319
        %v666 = vsel %vm602, %v634, %v326
        %v667 = vsel %vm603, %v635, %v333
        %v668 = vsel %vm604, %v636, %v340
        %v669 = vsel %vm605, %v637, %v347
        %v670 = vsel %vm606, %v638, %v354
        %v671 = vsel %vm607, %v639, %v361
        %v672 = vsel %vm608, %v640, %v368
        %v673 = vsel %vm609, %v641, %v375
        %v674 = vsel %vm610, %v642, %v382
        %v675 = vsel %vm611, %v643, %v389
        %v676 = vsel %vm612, %v644, %v396
        %v677 = vsel %vm613, %v645, %v403
        %v678 = vsel %vm614, %v646, %v410
        %v679 = vsel %vm615, %v647, %v417
        %v680 = vsel %vm616, %v648, %v424
        %v681 = vsel %vm617, %v649, %v431
        %v682 = vsel %vm618, %v650, %v438
        %v683 = vsel %vm619, %v651, %v445
        %v684 = vsel %vm620, %v652, %v452
        %v685 = vsel %vm621, %v653, %v459
        %v686 = vsel %vm622, %v654, %v466
        %v687 = vsel %vm623, %v655, %v473
        %v688 = vsel %vm624, %v656, %v480
        %v689 = vsel %vm625, %v657, %v487
        %v690 = vsel %vm626, %v658, %v494
        %v691 = vsel %vm627, %v659, %v501
        %v692 = vsel %vm628, %v660, %v508
        %v693 = vsel %vm629, %v661, %v515
        %v694 = vsel %vm630, %v662, %v522
        %v695 = vsel %vm631, %v663, %v529
        %v696 = vsel %vm632, %v664, %v536
        %vm697 = vcmp.ne.s32.totalorder %v665, 0
        %vm698 = vcmp.ne.s32.totalorder %v666, 0
        %vm699 = vcmp.ne.s32.totalorder %v667, 0
        %vm700 = vcmp.ne.s32.totalorder %v668, 0
        %vm701 = vcmp.ne.s32.totalorder %v669, 0
        %vm702 = vcmp.ne.s32.totalorder %v670, 0
        %vm703 = vcmp.ne.s32.totalorder %v671, 0
        %vm704 = vcmp.ne.s32.totalorder %v672, 0
        %vm705 = vcmp.ne.s32.totalorder %v673, 0
        %vm706 = vcmp.ne.s32.totalorder %v674, 0
        %vm707 = vcmp.ne.s32.totalorder %v675, 0
        %vm708 = vcmp.ne.s32.totalorder %v676, 0
        %vm709 = vcmp.ne.s32.totalorder %v677, 0
        %vm710 = vcmp.ne.s32.totalorder %v678, 0
        %vm711 = vcmp.ne.s32.totalorder %v679, 0
        %vm712 = vcmp.ne.s32.totalorder %v680, 0
        %vm713 = vcmp.ne.s32.totalorder %v681, 0
        %vm714 = vcmp.ne.s32.totalorder %v682, 0
        %vm715 = vcmp.ne.s32.totalorder %v683, 0
        %vm716 = vcmp.ne.s32.totalorder %v684, 0
        %vm717 = vcmp.ne.s32.totalorder %v685, 0
        %vm718 = vcmp.ne.s32.totalorder %v686, 0
        %vm719 = vcmp.ne.s32.totalorder %v687, 0
        %vm720 = vcmp.ne.s32.totalorder %v688, 0
        %vm721 = vcmp.ne.s32.totalorder %v689, 0
        %vm722 = vcmp.ne.s32.totalorder %v690, 0
        %vm723 = vcmp.ne.s32.totalorder %v691, 0
        %vm724 = vcmp.ne.s32.totalorder %v692, 0
        %vm725 = vcmp.ne.s32.totalorder %v693, 0
        %vm726 = vcmp.ne.s32.totalorder %v694, 0
        %vm727 = vcmp.ne.s32.totalorder %v695, 0
        %vm728 = vcmp.ne.s32.totalorder %v696, 0
        %vm729 = vcmp.ne.s32.totalorder %v665, 15
        %vm730 = vcmp.ne.s32.totalorder %v666, 15
        %vm731 = vcmp.ne.s32.totalorder %v667, 15
        %vm732 = vcmp.ne.s32.totalorder %v668, 15
        %vm733 = vcmp.ne.s32.totalorder %v669, 15
        %vm734 = vcmp.ne.s32.totalorder %v670, 15
        %vm735 = vcmp.ne.s32.totalorder %v671, 15
        %vm736 = vcmp.ne.s32.totalorder %v672, 15
        %vm737 = vcmp.ne.s32.totalorder %v673, 15
        %vm738 = vcmp.ne.s32.totalorder %v674, 15
        %vm739 = vcmp.ne.s32.totalorder %v675, 15
        %vm740 = vcmp.ne.s32.totalorder %v676, 15
        %vm741 = vcmp.ne.s32.totalorder %v677, 15
        %vm742 = vcmp.ne.s32.totalorder %v678, 15
        %vm743 = vcmp.ne.s32.totalorder %v679, 15
        %vm744 = vcmp.ne.s32.totalorder %v680, 15
        %vm745 = vcmp.ne.s32.totalorder %v681, 15
        %vm746 = vcmp.ne.s32.totalorder %v682, 15
        %vm747 = vcmp.ne.s32.totalorder %v683, 15
        %vm748 = vcmp.ne.s32.totalorder %v684, 15
        %vm749 = vcmp.ne.s32.totalorder %v685, 15
        %vm750 = vcmp.ne.s32.totalorder %v686, 15
        %vm751 = vcmp.ne.s32.totalorder %v687, 15
        %vm752 = vcmp.ne.s32.totalorder %v688, 15
        %vm753 = vcmp.ne.s32.totalorder %v689, 15
        %vm754 = vcmp.ne.s32.totalorder %v690, 15
        %vm755 = vcmp.ne.s32.totalorder %v691, 15
        %vm756 = vcmp.ne.s32.totalorder %v692, 15
        %vm757 = vcmp.ne.s32.totalorder %v693, 15
        %vm758 = vcmp.ne.s32.totalorder %v694, 15
        %vm759 = vcmp.ne.s32.totalorder %v695, 15
        %vm760 = vcmp.ne.s32.totalorder %v696, 15
        %vm761 = vcmask 257024
        %762 = vst.msk [vmem:[#allocation2] sm:$0xf] %vm761, 0
        %763 = vst.msk [vmem:[#allocation2 + $0x4] sm:$0xf] %vm761, 0
        %764 = vst.msk [vmem:[#allocation2 + $0x8] sm:$0xf] %vm761, 0
        %765 = vst.msk [vmem:[#allocation2 + $0xc] sm:$0xf] %vm761, 0
        %766 = vst.msk [vmem:[#allocation2 + $0x10] sm:$0xf] %vm761, 0
        %767 = vst.msk [vmem:[#allocation2 + $0x14] sm:$0xf] %vm761, 0
        %768 = vst.msk [vmem:[#allocation2 + $0x18] sm:$0xf] %vm761, 0
        %769 = vst.msk [vmem:[#allocation2 + $0x1c] sm:$0xf] %vm761, 0
        %770 = vst.msk [vmem:[#allocation2 + $0x20] sm:$0xf] %vm761, 0
        %771 = vst.msk [vmem:[#allocation2 + $0x24] sm:$0xf] %vm761, 0
        %772 = vst.msk [vmem:[#allocation2 + $0x28] sm:$0xf] %vm761, 0
        %773 = vst.msk [vmem:[#allocation2 + $0x2c] sm:$0xf] %vm761, 0
        %774 = vst.msk [vmem:[#allocation2 + $0x30] sm:$0xf] %vm761, 0
        %775 = vst.msk [vmem:[#allocation2 + $0x34] sm:$0xf] %vm761, 0
        %776 = vst.msk [vmem:[#allocation2 + $0x38] sm:$0xf] %vm761, 0
        %777 = vst.msk [vmem:[#allocation2 + $0x3c] sm:$0xf] %vm761, 0
        %778 = vst.msk [vmem:[#allocation2 + $0x40] sm:$0xf] %vm761, 0
        %779 = vst.msk [vmem:[#allocation2 + $0x44] sm:$0xf] %vm761, 0
        %780 = vst.msk [vmem:[#allocation2 + $0x48] sm:$0xf] %vm761, 0
        %781 = vst.msk [vmem:[#allocation2 + $0x4c] sm:$0xf] %vm761, 0
        %782 = vst.msk [vmem:[#allocation2 + $0x50] sm:$0xf] %vm761, 0
        %783 = vst.msk [vmem:[#allocation2 + $0x54] sm:$0xf] %vm761, 0
        %784 = vst.msk [vmem:[#allocation2 + $0x58] sm:$0xf] %vm761, 0
        %785 = vst.msk [vmem:[#allocation2 + $0x5c] sm:$0xf] %vm761, 0
        %786 = vst.msk [vmem:[#allocation2 + $0x60] sm:$0xf] %vm761, 0
        %787 = vst.msk [vmem:[#allocation2 + $0x64] sm:$0xf] %vm761, 0
        %788 = vst.msk [vmem:[#allocation2 + $0x68] sm:$0xf] %vm761, 0
        %789 = vst.msk [vmem:[#allocation2 + $0x6c] sm:$0xf] %vm761, 0
        %790 = vst.msk [vmem:[#allocation2 + $0x70] sm:$0xf] %vm761, 0
        %791 = vst.msk [vmem:[#allocation2 + $0x74] sm:$0xf] %vm761, 0
        %792 = vst.msk [vmem:[#allocation2 + $0x78] sm:$0xf] %vm761, 0
        %793 = vst.msk [vmem:[#allocation2 + $0x7c] sm:$0xf] %vm761, 0
        %794 = vst.msk [vmem:[#allocation2 + $0x80] sm:$0xf] %vm761, 0
        %795 = vst.msk [vmem:[#allocation2 + $0x84] sm:$0xf] %vm761, 0
        %796 = vst.msk [vmem:[#allocation2 + $0x88] sm:$0xf] %vm761, 0
        %797 = vst.msk [vmem:[#allocation2 + $0x8c] sm:$0xf] %vm761, 0
        %vm798 = vcmask 253952
        %799 = vst.msk [vmem:[#allocation2 + $0x90] sm:$0x1] %vm798, 0
        %v800 = vld [vmem:[%s276] sm:$0xf]
        %v801 = vld [vmem:[%s276 + $0x4] sm:$0xf]
        %v802 = vld [vmem:[%s276 + $0x8] sm:$0xf]
        %v803 = vld [vmem:[%s276 + $0xc] sm:$0xf]
        %v804 = vld [vmem:[%s276 + $0x10] sm:$0xf]
        %v805 = vld [vmem:[%s276 + $0x14] sm:$0xf]
        %v806 = vld [vmem:[%s276 + $0x18] sm:$0xf]
        %v807 = vld [vmem:[%s276 + $0x1c] sm:$0xf]
        %v808 = vld [vmem:[%s276 + $0x20] sm:$0xf]
        %v809 = vld [vmem:[%s276 + $0x24] sm:$0xf]
        %v810 = vld [vmem:[%s276 + $0x28] sm:$0xf]
        %v811 = vld [vmem:[%s276 + $0x2c] sm:$0xf]
        %v812 = vld [vmem:[%s276 + $0x30] sm:$0xf]
        %v813 = vld [vmem:[%s276 + $0x34] sm:$0xf]
        %v814 = vld [vmem:[%s276 + $0x38] sm:$0xf]
        %v815 = vld [vmem:[%s276 + $0x3c] sm:$0xf]
        %v816 = vld [vmem:[%s276 + $0x40] sm:$0xf]
        %v817 = vld [vmem:[%s276 + $0x44] sm:$0xf]
        %v818 = vld [vmem:[%s276 + $0x48] sm:$0xf]
        %v819 = vld [vmem:[%s276 + $0x4c] sm:$0xf]
        %v820 = vld [vmem:[%s276 + $0x50] sm:$0xf]
        %v821 = vld [vmem:[%s276 + $0x54] sm:$0xf]
        %v822 = vld [vmem:[%s276 + $0x58] sm:$0xf]
        %v823 = vld [vmem:[%s276 + $0x5c] sm:$0xf]
        %v824 = vld [vmem:[%s276 + $0x60] sm:$0xf]
        %v825 = vld [vmem:[%s276 + $0x64] sm:$0xf]
        %v826 = vld [vmem:[%s276 + $0x68] sm:$0xf]
        %v827 = vld [vmem:[%s276 + $0x6c] sm:$0xf]
        %v828 = vld [vmem:[%s276 + $0x70] sm:$0xf]
        %v829 = vld [vmem:[%s276 + $0x74] sm:$0xf]
        %v830 = vld [vmem:[%s276 + $0x78] sm:$0xf]
        %v831 = vld [vmem:[%s276 + $0x7c] sm:$0xf]
        %vm832 = vsmask.f32 256
        %vm833 = vsmask.f32 4368
        %vm834 = vmor %vm832, %vm833
        %v836 = vshrl.u32 %v800, 16
        %v838 = vrot.slane %v836, 7
        %v839 = vshll.u32 %v800, 16
        %v841 = vor.u32 %v838, %v839
        %v842 = vrot.slane %v838, 4
        %v844 = vshrl.u32 %v801, 16
        %v846 = vrot.slane %v844, 7
        %v847 = vshll.u32 %v801, 16
        %v849 = vor.u32 %v846, %v847
        %v850 = vsel %vm834, %v842, %v849
        %v851 = vrot.slane %v846, 4
        %v853 = vshrl.u32 %v802, 16
        %v855 = vrot.slane %v853, 7
        %v856 = vshll.u32 %v802, 16
        %v858 = vor.u32 %v855, %v856
        %v859 = vsel %vm834, %v851, %v858
        %v860 = vrot.slane %v855, 4
        %v862 = vshrl.u32 %v803, 16
        %v864 = vrot.slane %v862, 7
        %v865 = vshll.u32 %v803, 16
        %v867 = vor.u32 %v864, %v865
        %v868 = vsel %vm834, %v860, %v867
        %v869 = vrot.slane %v864, 4
        %v871 = vshrl.u32 %v804, 16
        %v873 = vrot.slane %v871, 7
        %v874 = vshll.u32 %v804, 16
        %v876 = vor.u32 %v873, %v874
        %v877 = vsel %vm834, %v869, %v876
        %v878 = vrot.slane %v873, 4
        %v880 = vshrl.u32 %v805, 16
        %v882 = vrot.slane %v880, 7
        %v883 = vshll.u32 %v805, 16
        %v885 = vor.u32 %v882, %v883
        %v886 = vsel %vm834, %v878, %v885
        %v887 = vrot.slane %v882, 4
        %v889 = vshrl.u32 %v806, 16
        %v891 = vrot.slane %v889, 7
        %v892 = vshll.u32 %v806, 16
        %v894 = vor.u32 %v891, %v892
        %v895 = vsel %vm834, %v887, %v894
        %v896 = vrot.slane %v891, 4
        %v898 = vshrl.u32 %v807, 16
        %v900 = vrot.slane %v898, 7
        %v901 = vshll.u32 %v807, 16
        %v903 = vor.u32 %v900, %v901
        %v904 = vsel %vm834, %v896, %v903
        %v905 = vrot.slane %v900, 4
        %v907 = vshrl.u32 %v808, 16
        %v909 = vrot.slane %v907, 7
        %v910 = vshll.u32 %v808, 16
        %v912 = vor.u32 %v909, %v910
        %v913 = vsel %vm834, %v905, %v912
        %v914 = vrot.slane %v909, 4
        %v916 = vshrl.u32 %v809, 16
        %v918 = vrot.slane %v916, 7
        %v919 = vshll.u32 %v809, 16
        %v921 = vor.u32 %v918, %v919
        %v922 = vsel %vm834, %v914, %v921
        %v923 = vrot.slane %v918, 4
        %v925 = vshrl.u32 %v810, 16
        %v927 = vrot.slane %v925, 7
        %v928 = vshll.u32 %v810, 16
        %v930 = vor.u32 %v927, %v928
        %v931 = vsel %vm834, %v923, %v930
        %v932 = vrot.slane %v927, 4
        %v934 = vshrl.u32 %v811, 16
        %v936 = vrot.slane %v934, 7
        %v937 = vshll.u32 %v811, 16
        %v939 = vor.u32 %v936, %v937
        %v940 = vsel %vm834, %v932, %v939
        %v941 = vrot.slane %v936, 4
        %v943 = vshrl.u32 %v812, 16
        %v945 = vrot.slane %v943, 7
        %v946 = vshll.u32 %v812, 16
        %v948 = vor.u32 %v945, %v946
        %v949 = vsel %vm834, %v941, %v948
        %v950 = vrot.slane %v945, 4
        %v952 = vshrl.u32 %v813, 16
        %v954 = vrot.slane %v952, 7
        %v955 = vshll.u32 %v813, 16
        %v957 = vor.u32 %v954, %v955
        %v958 = vsel %vm834, %v950, %v957
        %v959 = vrot.slane %v954, 4
        %v961 = vshrl.u32 %v814, 16
        %v963 = vrot.slane %v961, 7
        %v964 = vshll.u32 %v814, 16
        %v966 = vor.u32 %v963, %v964
        %v967 = vsel %vm834, %v959, %v966
        %v968 = vrot.slane %v963, 4
        %v970 = vshrl.u32 %v815, 16
        %v972 = vrot.slane %v970, 7
        %v973 = vshll.u32 %v815, 16
        %v975 = vor.u32 %v972, %v973
        %v976 = vsel %vm834, %v968, %v975
        %v977 = vrot.slane %v972, 4
        %v979 = vshrl.u32 %v816, 16
        %v981 = vrot.slane %v979, 7
        %v982 = vshll.u32 %v816, 16
        %v984 = vor.u32 %v981, %v982
        %v985 = vsel %vm834, %v977, %v984
        %v986 = vrot.slane %v981, 4
        %v988 = vshrl.u32 %v817, 16
        %v990 = vrot.slane %v988, 7
        %v991 = vshll.u32 %v817, 16
        %v993 = vor.u32 %v990, %v991
        %v994 = vsel %vm834, %v986, %v993
        %v995 = vrot.slane %v990, 4
        %v997 = vshrl.u32 %v818, 16
        %v999 = vrot.slane %v997, 7
        %v1000 = vshll.u32 %v818, 16
        %v1002 = vor.u32 %v999, %v1000
        %v1003 = vsel %vm834, %v995, %v1002
        %v1004 = vrot.slane %v999, 4
        %v1006 = vshrl.u32 %v819, 16
        %v1008 = vrot.slane %v1006, 7
        %v1009 = vshll.u32 %v819, 16
        %v1011 = vor.u32 %v1008, %v1009
        %v1012 = vsel %vm834, %v1004, %v1011
        %v1013 = vrot.slane %v1008, 4
        %v1015 = vshrl.u32 %v820, 16
        %v1017 = vrot.slane %v1015, 7
        %v1018 = vshll.u32 %v820, 16
        %v1020 = vor.u32 %v1017, %v1018
        %v1021 = vsel %vm834, %v1013, %v1020
        %v1022 = vrot.slane %v1017, 4
        %v1024 = vshrl.u32 %v821, 16
        %v1026 = vrot.slane %v1024, 7
        %v1027 = vshll.u32 %v821, 16
        %v1029 = vor.u32 %v1026, %v1027
        %v1030 = vsel %vm834, %v1022, %v1029
        %v1031 = vrot.slane %v1026, 4
        %v1033 = vshrl.u32 %v822, 16
        %v1035 = vrot.slane %v1033, 7
        %v1036 = vshll.u32 %v822, 16
        %v1038 = vor.u32 %v1035, %v1036
        %v1039 = vsel %vm834, %v1031, %v1038
        %v1040 = vrot.slane %v1035, 4
        %v1042 = vshrl.u32 %v823, 16
        %v1044 = vrot.slane %v1042, 7
        %v1045 = vshll.u32 %v823, 16
        %v1047 = vor.u32 %v1044, %v1045
        %v1048 = vsel %vm834, %v1040, %v1047
        %v1049 = vrot.slane %v1044, 4
        %v1051 = vshrl.u32 %v824, 16
        %v1053 = vrot.slane %v1051, 7
        %v1054 = vshll.u32 %v824, 16
        %v1056 = vor.u32 %v1053, %v1054
        %v1057 = vsel %vm834, %v1049, %v1056
        %v1058 = vrot.slane %v1053, 4
        %v1060 = vshrl.u32 %v825, 16
        %v1062 = vrot.slane %v1060, 7
        %v1063 = vshll.u32 %v825, 16
        %v1065 = vor.u32 %v1062, %v1063
        %v1066 = vsel %vm834, %v1058, %v1065
        %v1067 = vrot.slane %v1062, 4
        %v1069 = vshrl.u32 %v826, 16
        %v1071 = vrot.slane %v1069, 7
        %v1072 = vshll.u32 %v826, 16
        %v1074 = vor.u32 %v1071, %v1072
        %v1075 = vsel %vm834, %v1067, %v1074
        %v1076 = vrot.slane %v1071, 4
        %v1078 = vshrl.u32 %v827, 16
        %v1080 = vrot.slane %v1078, 7
        %v1081 = vshll.u32 %v827, 16
        %v1083 = vor.u32 %v1080, %v1081
        %v1084 = vsel %vm834, %v1076, %v1083
        %v1085 = vrot.slane %v1080, 4
        %v1087 = vshrl.u32 %v828, 16
        %v1089 = vrot.slane %v1087, 7
        %v1090 = vshll.u32 %v828, 16
        %v1092 = vor.u32 %v1089, %v1090
        %v1093 = vsel %vm834, %v1085, %v1092
        %v1094 = vrot.slane %v1089, 4
        %v1096 = vshrl.u32 %v829, 16
        %v1098 = vrot.slane %v1096, 7
        %v1099 = vshll.u32 %v829, 16
        %v1101 = vor.u32 %v1098, %v1099
        %v1102 = vsel %vm834, %v1094, %v1101
        %v1103 = vrot.slane %v1098, 4
        %v1105 = vshrl.u32 %v830, 16
        %v1107 = vrot.slane %v1105, 7
        %v1108 = vshll.u32 %v830, 16
        %v1110 = vor.u32 %v1107, %v1108
        %v1111 = vsel %vm834, %v1103, %v1110
        %v1112 = vrot.slane %v1107, 4
        %v1114 = vshrl.u32 %v831, 16
        %v1116 = vrot.slane %v1114, 7
        %v1117 = vshll.u32 %v831, 16
        %v1119 = vor.u32 %v1116, %v1117
        %v1120 = vsel %vm834, %v1112, %v1119
        %v1121 = vrot.slane %v1116, 4
        %vm1155 = vcmask 257024
        %vm1156 = vsmask.f32 7938
        %vm1157 = vmand %vm1155, %vm1156
        %v1158 = vld [vmem:[#allocation2 + $0x8] sm:$0xf]
        %v1159 = vsel %vm1157, %v841, %v1158
        %1160 = vst [vmem:[#allocation2 + $0x8] sm:$0xf] %v1159
        %1161 = vst.msk [vmem:[#allocation2 + $0xc] sm:$0xf] %vm761, %v850
        %1162 = vst.msk [vmem:[#allocation2 + $0x10] sm:$0xf] %vm761, %v859
        %1163 = vst.msk [vmem:[#allocation2 + $0x14] sm:$0xf] %vm761, %v868
        %1164 = vst.msk [vmem:[#allocation2 + $0x18] sm:$0xf] %vm761, %v877
        %1165 = vst.msk [vmem:[#allocation2 + $0x1c] sm:$0xf] %vm761, %v886
        %1166 = vst.msk [vmem:[#allocation2 + $0x20] sm:$0xf] %vm761, %v895
        %1167 = vst.msk [vmem:[#allocation2 + $0x24] sm:$0xf] %vm761, %v904
        %1168 = vst.msk [vmem:[#allocation2 + $0x28] sm:$0xf] %vm761, %v913
        %1169 = vst.msk [vmem:[#allocation2 + $0x2c] sm:$0xf] %vm761, %v922
        %1170 = vst.msk [vmem:[#allocation2 + $0x30] sm:$0xf] %vm761, %v931
        %1171 = vst.msk [vmem:[#allocation2 + $0x34] sm:$0xf] %vm761, %v940
        %1172 = vst.msk [vmem:[#allocation2 + $0x38] sm:$0xf] %vm761, %v949
        %1173 = vst.msk [vmem:[#allocation2 + $0x3c] sm:$0xf] %vm761, %v958
        %1174 = vst.msk [vmem:[#allocation2 + $0x40] sm:$0xf] %vm761, %v967
        %1175 = vst.msk [vmem:[#allocation2 + $0x44] sm:$0xf] %vm761, %v976
        %1176 = vst.msk [vmem:[#allocation2 + $0x48] sm:$0xf] %vm761, %v985
        %1177 = vst.msk [vmem:[#allocation2 + $0x4c] sm:$0xf] %vm761, %v994
        %1178 = vst.msk [vmem:[#allocation2 + $0x50] sm:$0xf] %vm761, %v1003
        %1179 = vst.msk [vmem:[#allocation2 + $0x54] sm:$0xf] %vm761, %v1012
        %1180 = vst.msk [vmem:[#allocation2 + $0x58] sm:$0xf] %vm761, %v1021
        %1181 = vst.msk [vmem:[#allocation2 + $0x5c] sm:$0xf] %vm761, %v1030
        %1182 = vst.msk [vmem:[#allocation2 + $0x60] sm:$0xf] %vm761, %v1039
        %1183 = vst.msk [vmem:[#allocation2 + $0x64] sm:$0xf] %vm761, %v1048
        %1184 = vst.msk [vmem:[#allocation2 + $0x68] sm:$0xf] %vm761, %v1057
        %1185 = vst.msk [vmem:[#allocation2 + $0x6c] sm:$0xf] %vm761, %v1066
        %1186 = vst.msk [vmem:[#allocation2 + $0x70] sm:$0xf] %vm761, %v1075
        %1187 = vst.msk [vmem:[#allocation2 + $0x74] sm:$0xf] %vm761, %v1084
        %1188 = vst.msk [vmem:[#allocation2 + $0x78] sm:$0xf] %vm761, %v1093
        %1189 = vst.msk [vmem:[#allocation2 + $0x7c] sm:$0xf] %vm761, %v1102
        %1190 = vst.msk [vmem:[#allocation2 + $0x80] sm:$0xf] %vm761, %v1111
        %1191 = vst.msk [vmem:[#allocation2 + $0x84] sm:$0xf] %vm761, %v1120
        %vm1192 = vcmask 253952
        %vm1193 = vmand %vm1192, %vm832
        %v1194 = vld [vmem:[#allocation2 + $0x88] sm:$0x1]
        %v1195 = vsel %vm1193, %v1121, %v1194
        %1196 = vst [vmem:[#allocation2 + $0x88] sm:$0x1] %v1195
        %v1197 = vld [vmem:[#allocation2] sm:$0xf]
        %v1198 = vld [vmem:[#allocation2 + $0x4] sm:$0xf]
        %v1199 = vld [vmem:[#allocation2 + $0x8] sm:$0xf]
        %v1200 = vld [vmem:[#allocation2 + $0xc] sm:$0xf]
        %v1201 = vld [vmem:[#allocation2 + $0x10] sm:$0xf]
        %v1202 = vld [vmem:[#allocation2 + $0x14] sm:$0xf]
        %v1203 = vld [vmem:[#allocation2 + $0x18] sm:$0xf]
        %v1204 = vld [vmem:[#allocation2 + $0x1c] sm:$0xf]
        %v1205 = vld [vmem:[#allocation2 + $0x20] sm:$0xf]
        %v1206 = vld [vmem:[#allocation2 + $0x24] sm:$0xf]
        %v1207 = vld [vmem:[#allocation2 + $0x28] sm:$0xf]
        %v1208 = vld [vmem:[#allocation2 + $0x2c] sm:$0xf]
        %v1209 = vld [vmem:[#allocation2 + $0x30] sm:$0xf]
        %v1210 = vld [vmem:[#allocation2 + $0x34] sm:$0xf]
        %v1211 = vld [vmem:[#allocation2 + $0x38] sm:$0xf]
        %v1212 = vld [vmem:[#allocation2 + $0x3c] sm:$0xf]
        %v1213 = vld [vmem:[#allocation2 + $0x40] sm:$0xf]
        %v1214 = vld [vmem:[#allocation2 + $0x44] sm:$0xf]
        %v1215 = vld [vmem:[#allocation2 + $0x48] sm:$0xf]
        %v1216 = vld [vmem:[#allocation2 + $0x4c] sm:$0xf]
        %v1217 = vld [vmem:[#allocation2 + $0x50] sm:$0xf]
        %v1218 = vld [vmem:[#allocation2 + $0x54] sm:$0xf]
        %v1219 = vld [vmem:[#allocation2 + $0x58] sm:$0xf]
        %v1220 = vld [vmem:[#allocation2 + $0x5c] sm:$0xf]
        %v1221 = vld [vmem:[#allocation2 + $0x60] sm:$0xf]
        %v1222 = vld [vmem:[#allocation2 + $0x64] sm:$0xf]
        %v1223 = vld [vmem:[#allocation2 + $0x68] sm:$0xf]
        %v1224 = vld [vmem:[#allocation2 + $0x6c] sm:$0xf]
        %v1225 = vld [vmem:[#allocation2 + $0x70] sm:$0xf]
        %v1226 = vld [vmem:[#allocation2 + $0x74] sm:$0xf]
        %v1227 = vld [vmem:[#allocation2 + $0x78] sm:$0xf]
        %v1228 = vld [vmem:[#allocation2 + $0x7c] sm:$0xf]
        %v1229 = vsel %vm697, 1, 0
        %v1230 = vsel %vm698, 1, 0
        %v1231 = vsel %vm699, 1, 0
        %v1232 = vsel %vm700, 1, 0
        %v1233 = vsel %vm701, 1, 0
        %v1234 = vsel %vm702, 1, 0
        %v1235 = vsel %vm703, 1, 0
        %v1236 = vsel %vm704, 1, 0
        %v1237 = vsel %vm705, 1, 0
        %v1238 = vsel %vm706, 1, 0
        %v1239 = vsel %vm707, 1, 0
        %v1240 = vsel %vm708, 1, 0
        %v1241 = vsel %vm709, 1, 0
        %v1242 = vsel %vm710, 1, 0
        %v1243 = vsel %vm711, 1, 0
        %v1244 = vsel %vm712, 1, 0
        %v1245 = vsel %vm713, 1, 0
        %v1246 = vsel %vm714, 1, 0
        %v1247 = vsel %vm715, 1, 0
        %v1248 = vsel %vm716, 1, 0
        %v1249 = vsel %vm717, 1, 0
        %v1250 = vsel %vm718, 1, 0
        %v1251 = vsel %vm719, 1, 0
        %v1252 = vsel %vm720, 1, 0
        %v1253 = vsel %vm721, 1, 0
        %v1254 = vsel %vm722, 1, 0
        %v1255 = vsel %vm723, 1, 0
        %v1256 = vsel %vm724, 1, 0
        %v1257 = vsel %vm725, 1, 0
        %v1258 = vsel %vm726, 1, 0
        %v1259 = vsel %vm727, 1, 0
        %v1260 = vsel %vm728, 1, 0
        %vm1261 = vcmp.eq.s32.totalorder %v1229, 1
        %vm1262 = vcmp.eq.s32.totalorder %v1230, 1
        %vm1263 = vcmp.eq.s32.totalorder %v1231, 1
        %vm1264 = vcmp.eq.s32.totalorder %v1232, 1
        %vm1265 = vcmp.eq.s32.totalorder %v1233, 1
        %vm1266 = vcmp.eq.s32.totalorder %v1234, 1
        %vm1267 = vcmp.eq.s32.totalorder %v1235, 1
        %vm1268 = vcmp.eq.s32.totalorder %v1236, 1
        %vm1269 = vcmp.eq.s32.totalorder %v1237, 1
        %vm1270 = vcmp.eq.s32.totalorder %v1238, 1
        %vm1271 = vcmp.eq.s32.totalorder %v1239, 1
        %vm1272 = vcmp.eq.s32.totalorder %v1240, 1
        %vm1273 = vcmp.eq.s32.totalorder %v1241, 1
        %vm1274 = vcmp.eq.s32.totalorder %v1242, 1
        %vm1275 = vcmp.eq.s32.totalorder %v1243, 1
        %vm1276 = vcmp.eq.s32.totalorder %v1244, 1
        %vm1277 = vcmp.eq.s32.totalorder %v1245, 1
        %vm1278 = vcmp.eq.s32.totalorder %v1246, 1
        %vm1279 = vcmp.eq.s32.totalorder %v1247, 1
        %vm1280 = vcmp.eq.s32.totalorder %v1248, 1
        %vm1281 = vcmp.eq.s32.totalorder %v1249, 1
        %vm1282 = vcmp.eq.s32.totalorder %v1250, 1
        %vm1283 = vcmp.eq.s32.totalorder %v1251, 1
        %vm1284 = vcmp.eq.s32.totalorder %v1252, 1
        %vm1285 = vcmp.eq.s32.totalorder %v1253, 1
        %vm1286 = vcmp.eq.s32.totalorder %v1254, 1
        %vm1287 = vcmp.eq.s32.totalorder %v1255, 1
        %vm1288 = vcmp.eq.s32.totalorder %v1256, 1
        %vm1289 = vcmp.eq.s32.totalorder %v1257, 1
        %vm1290 = vcmp.eq.s32.totalorder %v1258, 1
        %vm1291 = vcmp.eq.s32.totalorder %v1259, 1
        %vm1292 = vcmp.eq.s32.totalorder %v1260, 1
        %vm1293 = vmpackc.low %vm1261, %vm1261
        %vm1294 = vmpackc.low %vm1262, %vm1262
        %vm1295 = vmpackc.low %vm1263, %vm1263
        %vm1296 = vmpackc.low %vm1264, %vm1264
        %vm1297 = vmpackc.low %vm1265, %vm1265
        %vm1298 = vmpackc.low %vm1266, %vm1266
        %vm1299 = vmpackc.low %vm1267, %vm1267
        %vm1300 = vmpackc.low %vm1268, %vm1268
        %vm1301 = vmpackc.low %vm1269, %vm1269
        %vm1302 = vmpackc.low %vm1270, %vm1270
        %vm1303 = vmpackc.low %vm1271, %vm1271
        %vm1304 = vmpackc.low %vm1272, %vm1272
        %vm1305 = vmpackc.low %vm1273, %vm1273
        %vm1306 = vmpackc.low %vm1274, %vm1274
        %vm1307 = vmpackc.low %vm1275, %vm1275
        %vm1308 = vmpackc.low %vm1276, %vm1276
        %vm1309 = vmpackc.low %vm1277, %vm1277
        %vm1310 = vmpackc.low %vm1278, %vm1278
        %vm1311 = vmpackc.low %vm1279, %vm1279
        %vm1312 = vmpackc.low %vm1280, %vm1280
        %vm1313 = vmpackc.low %vm1281, %vm1281
        %vm1314 = vmpackc.low %vm1282, %vm1282
        %vm1315 = vmpackc.low %vm1283, %vm1283
        %vm1316 = vmpackc.low %vm1284, %vm1284
        %vm1317 = vmpackc.low %vm1285, %vm1285
        %vm1318 = vmpackc.low %vm1286, %vm1286
        %vm1319 = vmpackc.low %vm1287, %vm1287
        %vm1320 = vmpackc.low %vm1288, %vm1288
        %vm1321 = vmpackc.low %vm1289, %vm1289
        %vm1322 = vmpackc.low %vm1290, %vm1290
        %vm1323 = vmpackc.low %vm1291, %vm1291
        %vm1324 = vmpackc.low %vm1292, %vm1292
        %v1325 = vsel %vm1293, %v1197, 0
        %v1326 = vsel %vm1294, %v1198, 0
        %v1327 = vsel %vm1295, %v1199, 0
        %v1328 = vsel %vm1296, %v1200, 0
        %v1329 = vsel %vm1297, %v1201, 0
        %v1330 = vsel %vm1298, %v1202, 0
        %v1331 = vsel %vm1299, %v1203, 0
        %v1332 = vsel %vm1300, %v1204, 0
        %v1333 = vsel %vm1301, %v1205, 0
        %v1334 = vsel %vm1302, %v1206, 0
        %v1335 = vsel %vm1303, %v1207, 0
        %v1336 = vsel %vm1304, %v1208, 0
        %v1337 = vsel %vm1305, %v1209, 0
        %v1338 = vsel %vm1306, %v1210, 0
        %v1339 = vsel %vm1307, %v1211, 0
        %v1340 = vsel %vm1308, %v1212, 0
        %v1341 = vsel %vm1309, %v1213, 0
        %v1342 = vsel %vm1310, %v1214, 0
        %v1343 = vsel %vm1311, %v1215, 0
        %v1344 = vsel %vm1312, %v1216, 0
        %v1345 = vsel %vm1313, %v1217, 0
        %v1346 = vsel %vm1314, %v1218, 0
        %v1347 = vsel %vm1315, %v1219, 0
        %v1348 = vsel %vm1316, %v1220, 0
        %v1349 = vsel %vm1317, %v1221, 0
        %v1350 = vsel %vm1318, %v1222, 0
        %v1351 = vsel %vm1319, %v1223, 0
        %v1352 = vsel %vm1320, %v1224, 0
        %v1353 = vsel %vm1321, %v1225, 0
        %v1354 = vsel %vm1322, %v1226, 0
        %v1355 = vsel %vm1323, %v1227, 0
        %v1356 = vsel %vm1324, %v1228, 0
        %v1357 = vld [vmem:[#allocation2 + $0x80] sm:$0x1]
        %v1358 = vld [vmem:[#allocation2] sm:$0xe]
        %v1359 = vsel %vm729, 1, 0
        %v1360 = vsel %vm730, 1, 0
        %v1361 = vsel %vm731, 1, 0
        %v1362 = vsel %vm732, 1, 0
        %v1363 = vsel %vm733, 1, 0
        %v1364 = vsel %vm734, 1, 0
        %v1365 = vsel %vm735, 1, 0
        %v1366 = vsel %vm736, 1, 0
        %v1367 = vsel %vm737, 1, 0
        %v1368 = vsel %vm738, 1, 0
        %v1369 = vsel %vm739, 1, 0
        %v1370 = vsel %vm740, 1, 0
        %v1371 = vsel %vm741, 1, 0
        %v1372 = vsel %vm742, 1, 0
        %v1373 = vsel %vm743, 1, 0
        %v1374 = vsel %vm744, 1, 0
        %v1375 = vsel %vm745, 1, 0
        %v1376 = vsel %vm746, 1, 0
        %v1377 = vsel %vm747, 1, 0
        %v1378 = vsel %vm748, 1, 0
        %v1379 = vsel %vm749, 1, 0
        %v1380 = vsel %vm750, 1, 0
        %v1381 = vsel %vm751, 1, 0
        %v1382 = vsel %vm752, 1, 0
        %v1383 = vsel %vm753, 1, 0
        %v1384 = vsel %vm754, 1, 0
        %v1385 = vsel %vm755, 1, 0
        %v1386 = vsel %vm756, 1, 0
        %v1387 = vsel %vm757, 1, 0
        %v1388 = vsel %vm758, 1, 0
        %v1389 = vsel %vm759, 1, 0
        %v1390 = vsel %vm760, 1, 0
        %vm1391 = vcmp.eq.s32.totalorder %v1359, 1
        %vm1392 = vcmp.eq.s32.totalorder %v1360, 1
        %vm1393 = vcmp.eq.s32.totalorder %v1361, 1
        %vm1394 = vcmp.eq.s32.totalorder %v1362, 1
        %vm1395 = vcmp.eq.s32.totalorder %v1363, 1
        %vm1396 = vcmp.eq.s32.totalorder %v1364, 1
        %vm1397 = vcmp.eq.s32.totalorder %v1365, 1
        %vm1398 = vcmp.eq.s32.totalorder %v1366, 1
        %vm1399 = vcmp.eq.s32.totalorder %v1367, 1
        %vm1400 = vcmp.eq.s32.totalorder %v1368, 1
        %vm1401 = vcmp.eq.s32.totalorder %v1369, 1
        %vm1402 = vcmp.eq.s32.totalorder %v1370, 1
        %vm1403 = vcmp.eq.s32.totalorder %v1371, 1
        %vm1404 = vcmp.eq.s32.totalorder %v1372, 1
        %vm1405 = vcmp.eq.s32.totalorder %v1373, 1
        %vm1406 = vcmp.eq.s32.totalorder %v1374, 1
        %vm1407 = vcmp.eq.s32.totalorder %v1375, 1
        %vm1408 = vcmp.eq.s32.totalorder %v1376, 1
        %vm1409 = vcmp.eq.s32.totalorder %v1377, 1
        %vm1410 = vcmp.eq.s32.totalorder %v1378, 1
        %vm1411 = vcmp.eq.s32.totalorder %v1379, 1
        %vm1412 = vcmp.eq.s32.totalorder %v1380, 1
        %vm1413 = vcmp.eq.s32.totalorder %v1381, 1
        %vm1414 = vcmp.eq.s32.totalorder %v1382, 1
        %vm1415 = vcmp.eq.s32.totalorder %v1383, 1
        %vm1416 = vcmp.eq.s32.totalorder %v1384, 1
        %vm1417 = vcmp.eq.s32.totalorder %v1385, 1
        %vm1418 = vcmp.eq.s32.totalorder %v1386, 1
        %vm1419 = vcmp.eq.s32.totalorder %v1387, 1
        %vm1420 = vcmp.eq.s32.totalorder %v1388, 1
        %vm1421 = vcmp.eq.s32.totalorder %v1389, 1
        %vm1422 = vcmp.eq.s32.totalorder %v1390, 1
        %vm1423 = vmpackc.low %vm1391, %vm1391
        %vm1424 = vmpackc.low %vm1392, %vm1392
        %vm1425 = vmpackc.low %vm1393, %vm1393
        %vm1426 = vmpackc.low %vm1394, %vm1394
        %vm1427 = vmpackc.low %vm1395, %vm1395
        %vm1428 = vmpackc.low %vm1396, %vm1396
        %vm1429 = vmpackc.low %vm1397, %vm1397
        %vm1430 = vmpackc.low %vm1398, %vm1398
        %vm1431 = vmpackc.low %vm1399, %vm1399
        %vm1432 = vmpackc.low %vm1400, %vm1400
        %vm1433 = vmpackc.low %vm1401, %vm1401
        %vm1434 = vmpackc.low %vm1402, %vm1402
        %vm1435 = vmpackc.low %vm1403, %vm1403
        %vm1436 = vmpackc.low %vm1404, %vm1404
        %vm1437 = vmpackc.low %vm1405, %vm1405
        %vm1438 = vmpackc.low %vm1406, %vm1406
        %vm1439 = vmpackc.low %vm1407, %vm1407
        %vm1440 = vmpackc.low %vm1408, %vm1408
        %vm1441 = vmpackc.low %vm1409, %vm1409
        %vm1442 = vmpackc.low %vm1410, %vm1410
        %vm1443 = vmpackc.low %vm1411, %vm1411
        %vm1444 = vmpackc.low %vm1412, %vm1412
        %vm1445 = vmpackc.low %vm1413, %vm1413
        %vm1446 = vmpackc.low %vm1414, %vm1414
        %vm1447 = vmpackc.low %vm1415, %vm1415
        %vm1448 = vmpackc.low %vm1416, %vm1416
        %vm1449 = vmpackc.low %vm1417, %vm1417
        %vm1450 = vmpackc.low %vm1418, %vm1418
        %vm1451 = vmpackc.low %vm1419, %vm1419
        %vm1452 = vmpackc.low %vm1420, %vm1420
        %vm1453 = vmpackc.low %vm1421, %vm1421
        %vm1454 = vmpackc.low %vm1422, %vm1422
        %v1455 = vsel %vm1423, 65537, 0
        %v1456 = vsel %vm1424, 65537, 0
        %v1457 = vsel %vm1425, 65537, 0
        %v1458 = vsel %vm1426, 65537, 0
        %v1459 = vsel %vm1427, 65537, 0
        %v1460 = vsel %vm1428, 65537, 0
        %v1461 = vsel %vm1429, 65537, 0
        %v1462 = vsel %vm1430, 65537, 0
        %v1463 = vsel %vm1431, 65537, 0
        %v1464 = vsel %vm1432, 65537, 0
        %v1465 = vsel %vm1433, 65537, 0
        %v1466 = vsel %vm1434, 65537, 0
        %v1467 = vsel %vm1435, 65537, 0
        %v1468 = vsel %vm1436, 65537, 0
        %v1469 = vsel %vm1437, 65537, 0
        %v1470 = vsel %vm1438, 65537, 0
        %v1471 = vsel %vm1439, 65537, 0
        %v1472 = vsel %vm1440, 65537, 0
        %v1473 = vsel %vm1441, 65537, 0
        %v1474 = vsel %vm1442, 65537, 0
        %v1475 = vsel %vm1443, 65537, 0
        %v1476 = vsel %vm1444, 65537, 0
        %v1477 = vsel %vm1445, 65537, 0
        %v1478 = vsel %vm1446, 65537, 0
        %v1479 = vsel %vm1447, 65537, 0
        %v1480 = vsel %vm1448, 65537, 0
        %v1481 = vsel %vm1449, 65537, 0
        %v1482 = vsel %vm1450, 65537, 0
        %v1483 = vsel %vm1451, 65537, 0
        %v1484 = vsel %vm1452, 65537, 0
        %v1485 = vsel %vm1453, 65537, 0
        %v1486 = vsel %vm1454, 65537, 0
        %vm1487 = vcmask 1040384
        %vm1488 = vcmask 1044484
        %vm1489 = vmor %vm1487, %vm1488
        %v1490 = vrot.slane %v1455, 7
        %v1491 = vrot.slane %v1490, 4
        %v1492 = vrot.slane %v1456, 7
        %v1493 = vsel %vm1489, %v1491, %v1492
        %v1494 = vrot.slane %v1492, 4
        %v1495 = vrot.slane %v1457, 7
        %v1496 = vsel %vm1489, %v1494, %v1495
        %v1497 = vrot.slane %v1495, 4
        %v1498 = vrot.slane %v1458, 7
        %v1499 = vsel %vm1489, %v1497, %v1498
        %v1500 = vrot.slane %v1498, 4
        %v1501 = vrot.slane %v1459, 7
        %v1502 = vsel %vm1489, %v1500, %v1501
        %v1503 = vrot.slane %v1501, 4
        %v1504 = vrot.slane %v1460, 7
        %v1505 = vsel %vm1489, %v1503, %v1504
        %v1506 = vrot.slane %v1504, 4
        %v1507 = vrot.slane %v1461, 7
        %v1508 = vsel %vm1489, %v1506, %v1507
        %v1509 = vrot.slane %v1507, 4
        %v1510 = vrot.slane %v1462, 7
        %v1511 = vsel %vm1489, %v1509, %v1510
        %v1512 = vrot.slane %v1510, 4
        %v1513 = vrot.slane %v1463, 7
        %v1514 = vsel %vm1489, %v1512, %v1513
        %v1515 = vrot.slane %v1513, 4
        %v1516 = vrot.slane %v1464, 7
        %v1517 = vsel %vm1489, %v1515, %v1516
        %v1518 = vrot.slane %v1516, 4
        %v1519 = vrot.slane %v1465, 7
        %v1520 = vsel %vm1489, %v1518, %v1519
        %v1521 = vrot.slane %v1519, 4
        %v1522 = vrot.slane %v1466, 7
        %v1523 = vsel %vm1489, %v1521, %v1522
        %v1524 = vrot.slane %v1522, 4
        %v1525 = vrot.slane %v1467, 7
        %v1526 = vsel %vm1489, %v1524, %v1525
        %v1527 = vrot.slane %v1525, 4
        %v1528 = vrot.slane %v1468, 7
        %v1529 = vsel %vm1489, %v1527, %v1528
        %v1530 = vrot.slane %v1528, 4
        %v1531 = vrot.slane %v1469, 7
        %v1532 = vsel %vm1489, %v1530, %v1531
        %v1533 = vrot.slane %v1531, 4
        %v1534 = vrot.slane %v1470, 7
        %v1535 = vsel %vm1489, %v1533, %v1534
        %v1536 = vrot.slane %v1534, 4
        %v1537 = vrot.slane %v1471, 7
        %v1538 = vsel %vm1489, %v1536, %v1537
        %v1539 = vrot.slane %v1537, 4
        %v1540 = vrot.slane %v1472, 7
        %v1541 = vsel %vm1489, %v1539, %v1540
        %v1542 = vrot.slane %v1540, 4
        %v1543 = vrot.slane %v1473, 7
        %v1544 = vsel %vm1489, %v1542, %v1543
        %v1545 = vrot.slane %v1543, 4
        %v1546 = vrot.slane %v1474, 7
        %v1547 = vsel %vm1489, %v1545, %v1546
        %v1548 = vrot.slane %v1546, 4
        %v1549 = vrot.slane %v1475, 7
        %v1550 = vsel %vm1489, %v1548, %v1549
        %v1551 = vrot.slane %v1549, 4
        %v1552 = vrot.slane %v1476, 7
        %v1553 = vsel %vm1489, %v1551, %v1552
        %v1554 = vrot.slane %v1552, 4
        %v1555 = vrot.slane %v1477, 7
        %v1556 = vsel %vm1489, %v1554, %v1555
        %v1557 = vrot.slane %v1555, 4
        %v1558 = vrot.slane %v1478, 7
        %v1559 = vsel %vm1489, %v1557, %v1558
        %v1560 = vrot.slane %v1558, 4
        %v1561 = vrot.slane %v1479, 7
        %v1562 = vsel %vm1489, %v1560, %v1561
        %v1563 = vrot.slane %v1561, 4
        %v1564 = vrot.slane %v1480, 7
        %v1565 = vsel %vm1489, %v1563, %v1564
        %v1566 = vrot.slane %v1564, 4
        %v1567 = vrot.slane %v1481, 7
        %v1568 = vsel %vm1489, %v1566, %v1567
        %v1569 = vrot.slane %v1567, 4
        %v1570 = vrot.slane %v1482, 7
        %v1571 = vsel %vm1489, %v1569, %v1570
        %v1572 = vrot.slane %v1570, 4
        %v1573 = vrot.slane %v1483, 7
        %v1574 = vsel %vm1489, %v1572, %v1573
        %v1575 = vrot.slane %v1573, 4
        %v1576 = vrot.slane %v1484, 7
        %v1577 = vsel %vm1489, %v1575, %v1576
        %v1578 = vrot.slane %v1576, 4
        %v1579 = vrot.slane %v1485, 7
        %v1580 = vsel %vm1489, %v1578, %v1579
        %v1581 = vrot.slane %v1579, 4
        %v1582 = vrot.slane %v1486, 7
        %v1583 = vsel %vm1489, %v1581, %v1582
        %v1584 = vrot.slane %v1582, 4
        %vm1585 = vcmp.ne.s16.totalorder %v1490, 0
        %vm1586 = vcmp.ne.s16.totalorder %v1493, 0
        %vm1587 = vcmp.ne.s16.totalorder %v1496, 0
        %vm1588 = vcmp.ne.s16.totalorder %v1499, 0
        %vm1589 = vcmp.ne.s16.totalorder %v1502, 0
        %vm1590 = vcmp.ne.s16.totalorder %v1505, 0
        %vm1591 = vcmp.ne.s16.totalorder %v1508, 0
        %vm1592 = vcmp.ne.s16.totalorder %v1511, 0
        %vm1593 = vcmp.ne.s16.totalorder %v1514, 0
        %vm1594 = vcmp.ne.s16.totalorder %v1517, 0
        %vm1595 = vcmp.ne.s16.totalorder %v1520, 0
        %vm1596 = vcmp.ne.s16.totalorder %v1523, 0
        %vm1597 = vcmp.ne.s16.totalorder %v1526, 0
        %vm1598 = vcmp.ne.s16.totalorder %v1529, 0
        %vm1599 = vcmp.ne.s16.totalorder %v1532, 0
        %vm1600 = vcmp.ne.s16.totalorder %v1535, 0
        %vm1601 = vcmp.ne.s16.totalorder %v1538, 0
        %vm1602 = vcmp.ne.s16.totalorder %v1541, 0
        %vm1603 = vcmp.ne.s16.totalorder %v1544, 0
        %vm1604 = vcmp.ne.s16.totalorder %v1547, 0
        %vm1605 = vcmp.ne.s16.totalorder %v1550, 0
        %vm1606 = vcmp.ne.s16.totalorder %v1553, 0
        %vm1607 = vcmp.ne.s16.totalorder %v1556, 0
        %vm1608 = vcmp.ne.s16.totalorder %v1559, 0
        %vm1609 = vcmp.ne.s16.totalorder %v1562, 0
        %vm1610 = vcmp.ne.s16.totalorder %v1565, 0
        %vm1611 = vcmp.ne.s16.totalorder %v1568, 0
        %vm1612 = vcmp.ne.s16.totalorder %v1571, 0
        %vm1613 = vcmp.ne.s16.totalorder %v1574, 0
        %vm1614 = vcmp.ne.s16.totalorder %v1577, 0
        %vm1615 = vcmp.ne.s16.totalorder %v1580, 0
        %vm1616 = vcmp.ne.s16.totalorder %v1583, 0
        %vm1617 = vcmp.ne.s16.totalorder %v1584, 0
        %v1618 = vsel %vm1585, %v1358, 0
        %v1619 = vsel %vm1586, %v1198, 0
        %v1620 = vsel %vm1587, %v1199, 0
        %v1621 = vsel %vm1588, %v1200, 0
        %v1622 = vsel %vm1589, %v1201, 0
        %v1623 = vsel %vm1590, %v1202, 0
        %v1624 = vsel %vm1591, %v1203, 0
        %v1625 = vsel %vm1592, %v1204, 0
        %v1626 = vsel %vm1593, %v1205, 0
        %v1627 = vsel %vm1594, %v1206, 0
        %v1628 = vsel %vm1595, %v1207, 0
        %v1629 = vsel %vm1596, %v1208, 0
        %v1630 = vsel %vm1597, %v1209, 0
        %v1631 = vsel %vm1598, %v1210, 0
        %v1632 = vsel %vm1599, %v1211, 0
        %v1633 = vsel %vm1600, %v1212, 0
        %v1634 = vsel %vm1601, %v1213, 0
        %v1635 = vsel %vm1602, %v1214, 0
        %v1636 = vsel %vm1603, %v1215, 0
        %v1637 = vsel %vm1604, %v1216, 0
        %v1638 = vsel %vm1605, %v1217, 0
        %v1639 = vsel %vm1606, %v1218, 0
        %v1640 = vsel %vm1607, %v1219, 0
        %v1641 = vsel %vm1608, %v1220, 0
        %v1642 = vsel %vm1609, %v1221, 0
        %v1643 = vsel %vm1610, %v1222, 0
        %v1644 = vsel %vm1611, %v1223, 0
        %v1645 = vsel %vm1612, %v1224, 0
        %v1646 = vsel %vm1613, %v1225, 0
        %v1647 = vsel %vm1614, %v1226, 0
        %v1648 = vsel %vm1615, %v1227, 0
        %v1649 = vsel %vm1616, %v1228, 0
        %v1650 = vsel %vm1617, %v1357, 0
        %v1651 = vld [vmem:[#allocation2 + $0x80] sm:$0xf]
        %v1652 = vld [vmem:[#allocation2 + $0x84] sm:$0xf]
        %v1653 = vsel %vm1293, %v1199, 0
        %v1654 = vsel %vm1294, %v1200, 0
        %v1655 = vsel %vm1295, %v1201, 0
        %v1656 = vsel %vm1296, %v1202, 0
        %v1657 = vsel %vm1297, %v1203, 0
        %v1658 = vsel %vm1298, %v1204, 0
        %v1659 = vsel %vm1299, %v1205, 0
        %v1660 = vsel %vm1300, %v1206, 0
        %v1661 = vsel %vm1301, %v1207, 0
        %v1662 = vsel %vm1302, %v1208, 0
        %v1663 = vsel %vm1303, %v1209, 0
        %v1664 = vsel %vm1304, %v1210, 0
        %v1665 = vsel %vm1305, %v1211, 0
        %v1666 = vsel %vm1306, %v1212, 0
        %v1667 = vsel %vm1307, %v1213, 0
        %v1668 = vsel %vm1308, %v1214, 0
        %v1669 = vsel %vm1309, %v1215, 0
        %v1670 = vsel %vm1310, %v1216, 0
        %v1671 = vsel %vm1311, %v1217, 0
        %v1672 = vsel %vm1312, %v1218, 0
        %v1673 = vsel %vm1313, %v1219, 0
        %v1674 = vsel %vm1314, %v1220, 0
        %v1675 = vsel %vm1315, %v1221, 0
        %v1676 = vsel %vm1316, %v1222, 0
        %v1677 = vsel %vm1317, %v1223, 0
        %v1678 = vsel %vm1318, %v1224, 0
        %v1679 = vsel %vm1319, %v1225, 0
        %v1680 = vsel %vm1320, %v1226, 0
        %v1681 = vsel %vm1321, %v1227, 0
        %v1682 = vsel %vm1322, %v1228, 0
        %v1683 = vsel %vm1323, %v1651, 0
        %v1684 = vsel %vm1324, %v1652, 0
        %v1685 = vld [vmem:[#allocation2 + $0x88] sm:$0x1]
        %v1686 = vld [vmem:[#allocation2 + $0x8] sm:$0xe]
        %v1687 = vsel %vm1585, %v1686, 0
        %v1688 = vsel %vm1586, %v1200, 0
        %v1689 = vsel %vm1587, %v1201, 0
        %v1690 = vsel %vm1588, %v1202, 0
        %v1691 = vsel %vm1589, %v1203, 0
        %v1692 = vsel %vm1590, %v1204, 0
        %v1693 = vsel %vm1591, %v1205, 0
        %v1694 = vsel %vm1592, %v1206, 0
        %v1695 = vsel %vm1593, %v1207, 0
        %v1696 = vsel %vm1594, %v1208, 0
        %v1697 = vsel %vm1595, %v1209, 0
        %v1698 = vsel %vm1596, %v1210, 0
        %v1699 = vsel %vm1597, %v1211, 0
        %v1700 = vsel %vm1598, %v1212, 0
        %v1701 = vsel %vm1599, %v1213, 0
        %v1702 = vsel %vm1600, %v1214, 0
        %v1703 = vsel %vm1601, %v1215, 0
        %v1704 = vsel %vm1602, %v1216, 0
        %v1705 = vsel %vm1603, %v1217, 0
        %v1706 = vsel %vm1604, %v1218, 0
        %v1707 = vsel %vm1605, %v1219, 0
        %v1708 = vsel %vm1606, %v1220, 0
        %v1709 = vsel %vm1607, %v1221, 0
        %v1710 = vsel %vm1608, %v1222, 0
        %v1711 = vsel %vm1609, %v1223, 0
        %v1712 = vsel %vm1610, %v1224, 0
        %v1713 = vsel %vm1611, %v1225, 0
        %v1714 = vsel %vm1612, %v1226, 0
        %v1715 = vsel %vm1613, %v1227, 0
        %v1716 = vsel %vm1614, %v1228, 0
        %v1717 = vsel %vm1615, %v1651, 0
        %v1718 = vsel %vm1616, %v1652, 0
        %v1719 = vsel %vm1617, %v1685, 0
        %v1720 = vld [vmem:[#allocation2 + $0x88] sm:$0xf]
        %v1721 = vld [vmem:[#allocation2 + $0x8c] sm:$0xf]
        %v1722 = vsel %vm1293, %v1201, 0
        %v1723 = vsel %vm1294, %v1202, 0
        %v1724 = vsel %vm1295, %v1203, 0
        %v1725 = vsel %vm1296, %v1204, 0
        %v1726 = vsel %vm1297, %v1205, 0
        %v1727 = vsel %vm1298, %v1206, 0
        %v1728 = vsel %vm1299, %v1207, 0
        %v1729 = vsel %vm1300, %v1208, 0
        %v1730 = vsel %vm1301, %v1209, 0
        %v1731 = vsel %vm1302, %v1210, 0
        %v1732 = vsel %vm1303, %v1211, 0
        %v1733 = vsel %vm1304, %v1212, 0
        %v1734 = vsel %vm1305, %v1213, 0
        %v1735 = vsel %vm1306, %v1214, 0
        %v1736 = vsel %vm1307, %v1215, 0
        %v1737 = vsel %vm1308, %v1216, 0
        %v1738 = vsel %vm1309, %v1217, 0
        %v1739 = vsel %vm1310, %v1218, 0
        %v1740 = vsel %vm1311, %v1219, 0
        %v1741 = vsel %vm1312, %v1220, 0
        %v1742 = vsel %vm1313, %v1221, 0
        %v1743 = vsel %vm1314, %v1222, 0
        %v1744 = vsel %vm1315, %v1223, 0
        %v1745 = vsel %vm1316, %v1224, 0
        %v1746 = vsel %vm1317, %v1225, 0
        %v1747 = vsel %vm1318, %v1226, 0
        %v1748 = vsel %vm1319, %v1227, 0
        %v1749 = vsel %vm1320, %v1228, 0
        %v1750 = vsel %vm1321, %v1651, 0
        %v1751 = vsel %vm1322, %v1652, 0
        %v1752 = vsel %vm1323, %v1720, 0
        %v1753 = vsel %vm1324, %v1721, 0
        %v1754 = vld [vmem:[#allocation2 + $0x90] sm:$0x1]
        %v1755 = vld [vmem:[#allocation2 + $0x10] sm:$0xe]
        %v1756 = vsel %vm1585, %v1755, 0
        %v1757 = vsel %vm1586, %v1202, 0
        %v1758 = vsel %vm1587, %v1203, 0
        %v1759 = vsel %vm1588, %v1204, 0
        %v1760 = vsel %vm1589, %v1205, 0
        %v1761 = vsel %vm1590, %v1206, 0
        %v1762 = vsel %vm1591, %v1207, 0
        %v1763 = vsel %vm1592, %v1208, 0
        %v1764 = vsel %vm1593, %v1209, 0
        %v1765 = vsel %vm1594, %v1210, 0
        %v1766 = vsel %vm1595, %v1211, 0
        %v1767 = vsel %vm1596, %v1212, 0
        %v1768 = vsel %vm1597, %v1213, 0
        %v1769 = vsel %vm1598, %v1214, 0
        %v1770 = vsel %vm1599, %v1215, 0
        %v1771 = vsel %vm1600, %v1216, 0
        %v1772 = vsel %vm1601, %v1217, 0
        %v1773 = vsel %vm1602, %v1218, 0
        %v1774 = vsel %vm1603, %v1219, 0
        %v1775 = vsel %vm1604, %v1220, 0
        %v1776 = vsel %vm1605, %v1221, 0
        %v1777 = vsel %vm1606, %v1222, 0
        %v1778 = vsel %vm1607, %v1223, 0
        %v1779 = vsel %vm1608, %v1224, 0
        %v1780 = vsel %vm1609, %v1225, 0
        %v1781 = vsel %vm1610, %v1226, 0
        %v1782 = vsel %vm1611, %v1227, 0
        %v1783 = vsel %vm1612, %v1228, 0
        %v1784 = vsel %vm1613, %v1651, 0
        %v1785 = vsel %vm1614, %v1652, 0
        %v1786 = vsel %vm1615, %v1720, 0
        %v1787 = vsel %vm1616, %v1721, 0
        %v1788 = vsel %vm1617, %v1754, 0
        %v1821 = vunpack.c.l.b16 %v1325
        %v1822 = vunpack.c.l.b16 %v1326
        %v1823 = vunpack.c.l.b16 %v1327
        %v1824 = vunpack.c.l.b16 %v1328
        %v1825 = vunpack.c.l.b16 %v1329
        %v1826 = vunpack.c.l.b16 %v1330
        %v1827 = vunpack.c.l.b16 %v1331
        %v1828 = vunpack.c.l.b16 %v1332
        %v1829 = vunpack.c.l.b16 %v1333
        %v1830 = vunpack.c.l.b16 %v1334
        %v1831 = vunpack.c.l.b16 %v1335
        %v1832 = vunpack.c.l.b16 %v1336
        %v1833 = vunpack.c.l.b16 %v1337
        %v1834 = vunpack.c.l.b16 %v1338
        %v1835 = vunpack.c.l.b16 %v1339
        %v1836 = vunpack.c.l.b16 %v1340
        %v1837 = vunpack.c.l.b16 %v1341
        %v1838 = vunpack.c.l.b16 %v1342
        %v1839 = vunpack.c.l.b16 %v1343
        %v1840 = vunpack.c.l.b16 %v1344
        %v1841 = vunpack.c.l.b16 %v1345
        %v1842 = vunpack.c.l.b16 %v1346
        %v1843 = vunpack.c.l.b16 %v1347
        %v1844 = vunpack.c.l.b16 %v1348
        %v1845 = vunpack.c.l.b16 %v1349
        %v1846 = vunpack.c.l.b16 %v1350
        %v1847 = vunpack.c.l.b16 %v1351
        %v1848 = vunpack.c.l.b16 %v1352
        %v1849 = vunpack.c.l.b16 %v1353
        %v1850 = vunpack.c.l.b16 %v1354
        %v1851 = vunpack.c.l.b16 %v1355
        %v1852 = vunpack.c.l.b16 %v1356
        %v1853 = vpack.c.b16 %v1822, %v1821
        %v1854 = vpack.c.b16 %v1824, %v1823
        %v1855 = vpack.c.b16 %v1826, %v1825
        %v1856 = vpack.c.b16 %v1828, %v1827
        %v1857 = vpack.c.b16 %v1830, %v1829
        %v1858 = vpack.c.b16 %v1832, %v1831
        %v1859 = vpack.c.b16 %v1834, %v1833
        %v1860 = vpack.c.b16 %v1836, %v1835
        %v1861 = vpack.c.b16 %v1838, %v1837
        %v1862 = vpack.c.b16 %v1840, %v1839
        %v1863 = vpack.c.b16 %v1842, %v1841
        %v1864 = vpack.c.b16 %v1844, %v1843
        %v1865 = vpack.c.b16 %v1846, %v1845
        %v1866 = vpack.c.b16 %v1848, %v1847
        %v1867 = vpack.c.b16 %v1850, %v1849
        %v1868 = vpack.c.b16 %v1852, %v1851
        %v1902 = vunpack.c.l.b16 %v1197
        %v1903 = vunpack.c.l.b16 %v1198
        %v1904 = vunpack.c.l.b16 %v1199
        %v1905 = vunpack.c.l.b16 %v1200
        %v1906 = vunpack.c.l.b16 %v1201
        %v1907 = vunpack.c.l.b16 %v1202
        %v1908 = vunpack.c.l.b16 %v1203
        %v1909 = vunpack.c.l.b16 %v1204
        %v1910 = vunpack.c.l.b16 %v1205
        %v1911 = vunpack.c.l.b16 %v1206
        %v1912 = vunpack.c.l.b16 %v1207
        %v1913 = vunpack.c.l.b16 %v1208
        %v1914 = vunpack.c.l.b16 %v1209
        %v1915 = vunpack.c.l.b16 %v1210
        %v1916 = vunpack.c.l.b16 %v1211
        %v1917 = vunpack.c.l.b16 %v1212
        %v1918 = vunpack.c.l.b16 %v1213
        %v1919 = vunpack.c.l.b16 %v1214
        %v1920 = vunpack.c.l.b16 %v1215
        %v1921 = vunpack.c.l.b16 %v1216
        %v1922 = vunpack.c.l.b16 %v1217
        %v1923 = vunpack.c.l.b16 %v1218
        %v1924 = vunpack.c.l.b16 %v1219
        %v1925 = vunpack.c.l.b16 %v1220
        %v1926 = vunpack.c.l.b16 %v1221
        %v1927 = vunpack.c.l.b16 %v1222
        %v1928 = vunpack.c.l.b16 %v1223
        %v1929 = vunpack.c.l.b16 %v1224
        %v1930 = vunpack.c.l.b16 %v1225
        %v1931 = vunpack.c.l.b16 %v1226
        %v1932 = vunpack.c.l.b16 %v1227
        %v1933 = vunpack.c.l.b16 %v1228
        %v1934 = vunpack.c.l.b16 %v1357
        %v1935 = vpack.c.b16 %v1903, %v1902
        %v1936 = vpack.c.b16 %v1905, %v1904
        %v1937 = vpack.c.b16 %v1907, %v1906
        %v1938 = vpack.c.b16 %v1909, %v1908
        %v1939 = vpack.c.b16 %v1911, %v1910
        %v1940 = vpack.c.b16 %v1913, %v1912
        %v1941 = vpack.c.b16 %v1915, %v1914
        %v1942 = vpack.c.b16 %v1917, %v1916
        %v1943 = vpack.c.b16 %v1919, %v1918
        %v1944 = vpack.c.b16 %v1921, %v1920
        %v1945 = vpack.c.b16 %v1923, %v1922
        %v1946 = vpack.c.b16 %v1925, %v1924
        %v1947 = vpack.c.b16 %v1927, %v1926
        %v1948 = vpack.c.b16 %v1929, %v1928
        %v1949 = vpack.c.b16 %v1931, %v1930
        %v1950 = vpack.c.b16 %v1933, %v1932
        %v1951 = vpack.c.b16 %v1934, %v1934
        %vm1952 = vsmask.f32 7424
        %v1954 = vshrl.u32 %v1935, 16
        %v1956 = vshll.u32 %v1935, 16
        %v1958 = vrot.slane %v1956, 1
        %v1959 = vor.u32 %v1954, %v1958
        %v1961 = vshll.u32 %v1936, 16
        %v1963 = vrot.slane %v1961, 1
        %v1964 = vsel %vm1952, %v1959, %v1963
        %v1965 = vshrl.u32 %v1936, 16
        %v1967 = vor.u32 %v1965, %v1963
        %v1969 = vshll.u32 %v1937, 16
        %v1971 = vrot.slane %v1969, 1
        %v1972 = vsel %vm1952, %v1967, %v1971
        %v1973 = vshrl.u32 %v1937, 16
        %v1975 = vor.u32 %v1973, %v1971
        %v1977 = vshll.u32 %v1938, 16
        %v1979 = vrot.slane %v1977, 1
        %v1980 = vsel %vm1952, %v1975, %v1979
        %v1981 = vshrl.u32 %v1938, 16
        %v1983 = vor.u32 %v1981, %v1979
        %v1985 = vshll.u32 %v1939, 16
        %v1987 = vrot.slane %v1985, 1
        %v1988 = vsel %vm1952, %v1983, %v1987
        %v1989 = vshrl.u32 %v1939, 16
        %v1991 = vor.u32 %v1989, %v1987
        %v1993 = vshll.u32 %v1940, 16
        %v1995 = vrot.slane %v1993, 1
        %v1996 = vsel %vm1952, %v1991, %v1995
        %v1997 = vshrl.u32 %v1940, 16
        %v1999 = vor.u32 %v1997, %v1995
        %v2001 = vshll.u32 %v1941, 16
        %v2003 = vrot.slane %v2001, 1
        %v2004 = vsel %vm1952, %v1999, %v2003
        %v2005 = vshrl.u32 %v1941, 16
        %v2007 = vor.u32 %v2005, %v2003
        %v2009 = vshll.u32 %v1942, 16
        %v2011 = vrot.slane %v2009, 1
        %v2012 = vsel %vm1952, %v2007, %v2011
        %v2013 = vshrl.u32 %v1942, 16
        %v2015 = vor.u32 %v2013, %v2011
        %v2017 = vshll.u32 %v1943, 16
        %v2019 = vrot.slane %v2017, 1
        %v2020 = vsel %vm1952, %v2015, %v2019
        %v2021 = vshrl.u32 %v1943, 16
        %v2023 = vor.u32 %v2021, %v2019
        %v2025 = vshll.u32 %v1944, 16
        %v2027 = vrot.slane %v2025, 1
        %v2028 = vsel %vm1952, %v2023, %v2027
        %v2029 = vshrl.u32 %v1944, 16
        %v2031 = vor.u32 %v2029, %v2027
        %v2033 = vshll.u32 %v1945, 16
        %v2035 = vrot.slane %v2033, 1
        %v2036 = vsel %vm1952, %v2031, %v2035
        %v2037 = vshrl.u32 %v1945, 16
        %v2039 = vor.u32 %v2037, %v2035
        %v2041 = vshll.u32 %v1946, 16
        %v2043 = vrot.slane %v2041, 1
        %v2044 = vsel %vm1952, %v2039, %v2043
        %v2045 = vshrl.u32 %v1946, 16
        %v2047 = vor.u32 %v2045, %v2043
        %v2049 = vshll.u32 %v1947, 16
        %v2051 = vrot.slane %v2049, 1
        %v2052 = vsel %vm1952, %v2047, %v2051
        %v2053 = vshrl.u32 %v1947, 16
        %v2055 = vor.u32 %v2053, %v2051
        %v2057 = vshll.u32 %v1948, 16
        %v2059 = vrot.slane %v2057, 1
        %v2060 = vsel %vm1952, %v2055, %v2059
        %v2061 = vshrl.u32 %v1948, 16
        %v2063 = vor.u32 %v2061, %v2059
        %v2065 = vshll.u32 %v1949, 16
        %v2067 = vrot.slane %v2065, 1
        %v2068 = vsel %vm1952, %v2063, %v2067
        %v2069 = vshrl.u32 %v1949, 16
        %v2071 = vor.u32 %v2069, %v2067
        %v2073 = vshll.u32 %v1950, 16
        %v2075 = vrot.slane %v2073, 1
        %v2076 = vsel %vm1952, %v2071, %v2075
        %v2077 = vshrl.u32 %v1950, 16
        %v2079 = vor.u32 %v2077, %v2075
        %v2081 = vshll.u32 %v1951, 16
        %v2083 = vrot.slane %v2081, 1
        %v2084 = vsel %vm1952, %v2079, %v2083
        %2085 = vrot.lane.b32.xlu0 %v1964, 32
        %v2086 = vpop.permute.xlu0 %2085
        %2087 = vrot.lane.b32.xlu0 %v1972, 32
        %v2088 = vpop.permute.xlu0 %2087
        %2089 = vrot.lane.b32.xlu0 %v1980, 32
        %v2090 = vpop.permute.xlu0 %2089
        %2091 = vrot.lane.b32.xlu0 %v1988, 32
        %v2092 = vpop.permute.xlu0 %2091
        %2093 = vrot.lane.b32.xlu0 %v1996, 32
        %v2094 = vpop.permute.xlu0 %2093
        %2095 = vrot.lane.b32.xlu0 %v2004, 32
        %v2096 = vpop.permute.xlu0 %2095
        %2097 = vrot.lane.b32.xlu0 %v2012, 32
        %v2098 = vpop.permute.xlu0 %2097
        %2099 = vrot.lane.b32.xlu0 %v2020, 32
        %v2100 = vpop.permute.xlu0 %2099
        %2101 = vrot.lane.b32.xlu0 %v2028, 32
        %v2102 = vpop.permute.xlu0 %2101
        %2103 = vrot.lane.b32.xlu0 %v2036, 32
        %v2104 = vpop.permute.xlu0 %2103
        %2105 = vrot.lane.b32.xlu0 %v2044, 32
        %v2106 = vpop.permute.xlu0 %2105
        %2107 = vrot.lane.b32.xlu0 %v2052, 32
        %v2108 = vpop.permute.xlu0 %2107
        %2109 = vrot.lane.b32.xlu0 %v2060, 32
        %v2110 = vpop.permute.xlu0 %2109
        %2111 = vrot.lane.b32.xlu0 %v2068, 32
        %v2112 = vpop.permute.xlu0 %2111
        %2113 = vrot.lane.b32.xlu0 %v2076, 32
        %v2114 = vpop.permute.xlu0 %2113
        %2115 = vrot.lane.b32.xlu0 %v2084, 32
        %v2116 = vpop.permute.xlu0 %2115
        %v2150 = vunpack.c.l.b16 %v1618
        %v2151 = vunpack.c.l.b16 %v1619
        %v2152 = vunpack.c.l.b16 %v1620
        %v2153 = vunpack.c.l.b16 %v1621
        %v2154 = vunpack.c.l.b16 %v1622
        %v2155 = vunpack.c.l.b16 %v1623
        %v2156 = vunpack.c.l.b16 %v1624
        %v2157 = vunpack.c.l.b16 %v1625
        %v2158 = vunpack.c.l.b16 %v1626
        %v2159 = vunpack.c.l.b16 %v1627
        %v2160 = vunpack.c.l.b16 %v1628
        %v2161 = vunpack.c.l.b16 %v1629
        %v2162 = vunpack.c.l.b16 %v1630
        %v2163 = vunpack.c.l.b16 %v1631
        %v2164 = vunpack.c.l.b16 %v1632
        %v2165 = vunpack.c.l.b16 %v1633
        %v2166 = vunpack.c.l.b16 %v1634
        %v2167 = vunpack.c.l.b16 %v1635
        %v2168 = vunpack.c.l.b16 %v1636
        %v2169 = vunpack.c.l.b16 %v1637
        %v2170 = vunpack.c.l.b16 %v1638
        %v2171 = vunpack.c.l.b16 %v1639
        %v2172 = vunpack.c.l.b16 %v1640
        %v2173 = vunpack.c.l.b16 %v1641
        %v2174 = vunpack.c.l.b16 %v1642
        %v2175 = vunpack.c.l.b16 %v1643
        %v2176 = vunpack.c.l.b16 %v1644
        %v2177 = vunpack.c.l.b16 %v1645
        %v2178 = vunpack.c.l.b16 %v1646
        %v2179 = vunpack.c.l.b16 %v1647
        %v2180 = vunpack.c.l.b16 %v1648
        %v2181 = vunpack.c.l.b16 %v1649
        %v2182 = vunpack.c.l.b16 %v1650
        %v2183 = vpack.c.b16 %v2151, %v2150
        %v2184 = vpack.c.b16 %v2153, %v2152
        %v2185 = vpack.c.b16 %v2155, %v2154
        %v2186 = vpack.c.b16 %v2157, %v2156
        %v2187 = vpack.c.b16 %v2159, %v2158
        %v2188 = vpack.c.b16 %v2161, %v2160
        %v2189 = vpack.c.b16 %v2163, %v2162
        %v2190 = vpack.c.b16 %v2165, %v2164
        %v2191 = vpack.c.b16 %v2167, %v2166
        %v2192 = vpack.c.b16 %v2169, %v2168
        %v2193 = vpack.c.b16 %v2171, %v2170
        %v2194 = vpack.c.b16 %v2173, %v2172
        %v2195 = vpack.c.b16 %v2175, %v2174
        %v2196 = vpack.c.b16 %v2177, %v2176
        %v2197 = vpack.c.b16 %v2179, %v2178
        %v2198 = vpack.c.b16 %v2181, %v2180
        %v2199 = vpack.c.b16 %v2182, %v2182
        %vm2200 = vcmask 1046528
        %v2201 = vrot.slane %v2183, 1
        %v2202 = vrot.slane %v2184, 1
        %v2203 = vsel %vm2200, %v2201, %v2202
        %v2204 = vrot.slane %v2185, 1
        %v2205 = vsel %vm2200, %v2202, %v2204
        %v2206 = vrot.slane %v2186, 1
        %v2207 = vsel %vm2200, %v2204, %v2206
        %v2208 = vrot.slane %v2187, 1
        %v2209 = vsel %vm2200, %v2206, %v2208
        %v2210 = vrot.slane %v2188, 1
        %v2211 = vsel %vm2200, %v2208, %v2210
        %v2212 = vrot.slane %v2189, 1
        %v2213 = vsel %vm2200, %v2210, %v2212
        %v2214 = vrot.slane %v2190, 1
        %v2215 = vsel %vm2200, %v2212, %v2214
        %v2216 = vrot.slane %v2191, 1
        %v2217 = vsel %vm2200, %v2214, %v2216
        %v2218 = vrot.slane %v2192, 1
        %v2219 = vsel %vm2200, %v2216, %v2218
        %v2220 = vrot.slane %v2193, 1
        %v2221 = vsel %vm2200, %v2218, %v2220
        %v2222 = vrot.slane %v2194, 1
        %v2223 = vsel %vm2200, %v2220, %v2222
        %v2224 = vrot.slane %v2195, 1
        %v2225 = vsel %vm2200, %v2222, %v2224
        %v2226 = vrot.slane %v2196, 1
        %v2227 = vsel %vm2200, %v2224, %v2226
        %v2228 = vrot.slane %v2197, 1
        %v2229 = vsel %vm2200, %v2226, %v2228
        %v2230 = vrot.slane %v2198, 1
        %v2231 = vsel %vm2200, %v2228, %v2230
        %v2232 = vrot.slane %v2199, 1
        %v2233 = vsel %vm2200, %v2230, %v2232
        %2234 = vrot.lane.b32.xlu0 %v2203, 64
        %v2235 = vpop.permute.xlu0 %2234
        %2236 = vrot.lane.b32.xlu0 %v2205, 64
        %v2237 = vpop.permute.xlu0 %2236
        %2238 = vrot.lane.b32.xlu0 %v2207, 64
        %v2239 = vpop.permute.xlu0 %2238
        %2240 = vrot.lane.b32.xlu0 %v2209, 64
        %v2241 = vpop.permute.xlu0 %2240
        %2242 = vrot.lane.b32.xlu0 %v2211, 64
        %v2243 = vpop.permute.xlu0 %2242
        %2244 = vrot.lane.b32.xlu0 %v2213, 64
        %v2245 = vpop.permute.xlu0 %2244
        %2246 = vrot.lane.b32.xlu0 %v2215, 64
        %v2247 = vpop.permute.xlu0 %2246
        %2248 = vrot.lane.b32.xlu0 %v2217, 64
        %v2249 = vpop.permute.xlu0 %2248
        %2250 = vrot.lane.b32.xlu0 %v2219, 64
        %v2251 = vpop.permute.xlu0 %2250
        %2252 = vrot.lane.b32.xlu0 %v2221, 64
        %v2253 = vpop.permute.xlu0 %2252
        %2254 = vrot.lane.b32.xlu0 %v2223, 64
        %v2255 = vpop.permute.xlu0 %2254
        %2256 = vrot.lane.b32.xlu0 %v2225, 64
        %v2257 = vpop.permute.xlu0 %2256
        %2258 = vrot.lane.b32.xlu0 %v2227, 64
        %v2259 = vpop.permute.xlu0 %2258
        %2260 = vrot.lane.b32.xlu0 %v2229, 64
        %v2261 = vpop.permute.xlu0 %2260
        %2262 = vrot.lane.b32.xlu0 %v2231, 64
        %v2263 = vpop.permute.xlu0 %2262
        %2264 = vrot.lane.b32.xlu0 %v2233, 64
        %v2265 = vpop.permute.xlu0 %2264
        %v2298 = vunpack.c.l.b16 %v1653
        %v2299 = vunpack.c.l.b16 %v1654
        %v2300 = vunpack.c.l.b16 %v1655
        %v2301 = vunpack.c.l.b16 %v1656
        %v2302 = vunpack.c.l.b16 %v1657
        %v2303 = vunpack.c.l.b16 %v1658
        %v2304 = vunpack.c.l.b16 %v1659
        %v2305 = vunpack.c.l.b16 %v1660
        %v2306 = vunpack.c.l.b16 %v1661
        %v2307 = vunpack.c.l.b16 %v1662
        %v2308 = vunpack.c.l.b16 %v1663
        %v2309 = vunpack.c.l.b16 %v1664
        %v2310 = vunpack.c.l.b16 %v1665
        %v2311 = vunpack.c.l.b16 %v1666
        %v2312 = vunpack.c.l.b16 %v1667
        %v2313 = vunpack.c.l.b16 %v1668
        %v2314 = vunpack.c.l.b16 %v1669
        %v2315 = vunpack.c.l.b16 %v1670
        %v2316 = vunpack.c.l.b16 %v1671
        %v2317 = vunpack.c.l.b16 %v1672
        %v2318 = vunpack.c.l.b16 %v1673
        %v2319 = vunpack.c.l.b16 %v1674
        %v2320 = vunpack.c.l.b16 %v1675
        %v2321 = vunpack.c.l.b16 %v1676
        %v2322 = vunpack.c.l.b16 %v1677
        %v2323 = vunpack.c.l.b16 %v1678
        %v2324 = vunpack.c.l.b16 %v1679
        %v2325 = vunpack.c.l.b16 %v1680
        %v2326 = vunpack.c.l.b16 %v1681
        %v2327 = vunpack.c.l.b16 %v1682
        %v2328 = vunpack.c.l.b16 %v1683
        %v2329 = vunpack.c.l.b16 %v1684
        %v2330 = vpack.c.b16 %v2299, %v2298
        %v2331 = vpack.c.b16 %v2301, %v2300
        %v2332 = vpack.c.b16 %v2303, %v2302
        %v2333 = vpack.c.b16 %v2305, %v2304
        %v2334 = vpack.c.b16 %v2307, %v2306
        %v2335 = vpack.c.b16 %v2309, %v2308
        %v2336 = vpack.c.b16 %v2311, %v2310
        %v2337 = vpack.c.b16 %v2313, %v2312
        %v2338 = vpack.c.b16 %v2315, %v2314
        %v2339 = vpack.c.b16 %v2317, %v2316
        %v2340 = vpack.c.b16 %v2319, %v2318
        %v2341 = vpack.c.b16 %v2321, %v2320
        %v2342 = vpack.c.b16 %v2323, %v2322
        %v2343 = vpack.c.b16 %v2325, %v2324
        %v2344 = vpack.c.b16 %v2327, %v2326
        %v2345 = vpack.c.b16 %v2329, %v2328
        %2346 = vrot.lane.b32.xlu0 %v2330, 96
        %v2347 = vpop.permute.xlu0 %2346
        %2348 = vrot.lane.b32.xlu0 %v2331, 96
        %v2349 = vpop.permute.xlu0 %2348
        %2350 = vrot.lane.b32.xlu0 %v2332, 96
        %v2351 = vpop.permute.xlu0 %2350
        %2352 = vrot.lane.b32.xlu0 %v2333, 96
        %v2353 = vpop.permute.xlu0 %2352
        %2354 = vrot.lane.b32.xlu0 %v2334, 96
        %v2355 = vpop.permute.xlu0 %2354
        %2356 = vrot.lane.b32.xlu0 %v2335, 96
        %v2357 = vpop.permute.xlu0 %2356
        %2358 = vrot.lane.b32.xlu0 %v2336, 96
        %v2359 = vpop.permute.xlu0 %2358
        %2360 = vrot.lane.b32.xlu0 %v2337, 96
        %v2361 = vpop.permute.xlu0 %2360
        %2362 = vrot.lane.b32.xlu0 %v2338, 96
        %v2363 = vpop.permute.xlu0 %2362
        %2364 = vrot.lane.b32.xlu0 %v2339, 96
        %v2365 = vpop.permute.xlu0 %2364
        %2366 = vrot.lane.b32.xlu0 %v2340, 96
        %v2367 = vpop.permute.xlu0 %2366
        %2368 = vrot.lane.b32.xlu0 %v2341, 96
        %v2369 = vpop.permute.xlu0 %2368
        %2370 = vrot.lane.b32.xlu0 %v2342, 96
        %v2371 = vpop.permute.xlu0 %2370
        %2372 = vrot.lane.b32.xlu0 %v2343, 96
        %v2373 = vpop.permute.xlu0 %2372
        %2374 = vrot.lane.b32.xlu0 %v2344, 96
        %v2375 = vpop.permute.xlu0 %2374
        %2376 = vrot.lane.b32.xlu0 %v2345, 96
        %v2377 = vpop.permute.xlu0 %2376
        %v2381 = vunpack.c.l.b16 %v1651
        %v2382 = vunpack.c.l.b16 %v1652
        %v2383 = vunpack.c.l.b16 %v1685
        %v2384 = vpack.c.b16 %v2382, %v2381
        %v2385 = vpack.c.b16 %v2383, %v2383
        %v2387 = vshll.u32 %v2384, 16
        %v2389 = vrot.slane %v2387, 1
        %v2390 = vsel %vm1952, %v2079, %v2389
        %v2391 = vshrl.u32 %v2384, 16
        %v2393 = vor.u32 %v2391, %v2389
        %v2395 = vshll.u32 %v2385, 16
        %v2397 = vrot.slane %v2395, 1
        %v2398 = vsel %vm1952, %v2393, %v2397
        %v2432 = vunpack.c.l.b16 %v1687
        %v2433 = vunpack.c.l.b16 %v1688
        %v2434 = vunpack.c.l.b16 %v1689
        %v2435 = vunpack.c.l.b16 %v1690
        %v2436 = vunpack.c.l.b16 %v1691
        %v2437 = vunpack.c.l.b16 %v1692
        %v2438 = vunpack.c.l.b16 %v1693
        %v2439 = vunpack.c.l.b16 %v1694
        %v2440 = vunpack.c.l.b16 %v1695
        %v2441 = vunpack.c.l.b16 %v1696
        %v2442 = vunpack.c.l.b16 %v1697
        %v2443 = vunpack.c.l.b16 %v1698
        %v2444 = vunpack.c.l.b16 %v1699
        %v2445 = vunpack.c.l.b16 %v1700
        %v2446 = vunpack.c.l.b16 %v1701
        %v2447 = vunpack.c.l.b16 %v1702
        %v2448 = vunpack.c.l.b16 %v1703
        %v2449 = vunpack.c.l.b16 %v1704
        %v2450 = vunpack.c.l.b16 %v1705
        %v2451 = vunpack.c.l.b16 %v1706
        %v2452 = vunpack.c.l.b16 %v1707
        %v2453 = vunpack.c.l.b16 %v1708
        %v2454 = vunpack.c.l.b16 %v1709
        %v2455 = vunpack.c.l.b16 %v1710
        %v2456 = vunpack.c.l.b16 %v1711
        %v2457 = vunpack.c.l.b16 %v1712
        %v2458 = vunpack.c.l.b16 %v1713
        %v2459 = vunpack.c.l.b16 %v1714
        %v2460 = vunpack.c.l.b16 %v1715
        %v2461 = vunpack.c.l.b16 %v1716
        %v2462 = vunpack.c.l.b16 %v1717
        %v2463 = vunpack.c.l.b16 %v1718
        %v2464 = vunpack.c.l.b16 %v1719
        %v2465 = vpack.c.b16 %v2433, %v2432
        %v2466 = vpack.c.b16 %v2435, %v2434
        %v2467 = vpack.c.b16 %v2437, %v2436
        %v2468 = vpack.c.b16 %v2439, %v2438
        %v2469 = vpack.c.b16 %v2441, %v2440
        %v2470 = vpack.c.b16 %v2443, %v2442
        %v2471 = vpack.c.b16 %v2445, %v2444
        %v2472 = vpack.c.b16 %v2447, %v2446
        %v2473 = vpack.c.b16 %v2449, %v2448
        %v2474 = vpack.c.b16 %v2451, %v2450
        %v2475 = vpack.c.b16 %v2453, %v2452
        %v2476 = vpack.c.b16 %v2455, %v2454
        %v2477 = vpack.c.b16 %v2457, %v2456
        %v2478 = vpack.c.b16 %v2459, %v2458
        %v2479 = vpack.c.b16 %v2461, %v2460
        %v2480 = vpack.c.b16 %v2463, %v2462
        %v2481 = vpack.c.b16 %v2464, %v2464
        %v2482 = vrot.slane %v2465, 1
        %v2483 = vrot.slane %v2466, 1
        %v2484 = vsel %vm2200, %v2482, %v2483
        %v2485 = vrot.slane %v2467, 1
        %v2486 = vsel %vm2200, %v2483, %v2485
        %v2487 = vrot.slane %v2468, 1
        %v2488 = vsel %vm2200, %v2485, %v2487
        %v2489 = vrot.slane %v2469, 1
        %v2490 = vsel %vm2200, %v2487, %v2489
        %v2491 = vrot.slane %v2470, 1
        %v2492 = vsel %vm2200, %v2489, %v2491
        %v2493 = vrot.slane %v2471, 1
        %v2494 = vsel %vm2200, %v2491, %v2493
        %v2495 = vrot.slane %v2472, 1
        %v2496 = vsel %vm2200, %v2493, %v2495
        %v2497 = vrot.slane %v2473, 1
        %v2498 = vsel %vm2200, %v2495, %v2497
        %v2499 = vrot.slane %v2474, 1
        %v2500 = vsel %vm2200, %v2497, %v2499
        %v2501 = vrot.slane %v2475, 1
        %v2502 = vsel %vm2200, %v2499, %v2501
        %v2503 = vrot.slane %v2476, 1
        %v2504 = vsel %vm2200, %v2501, %v2503
        %v2505 = vrot.slane %v2477, 1
        %v2506 = vsel %vm2200, %v2503, %v2505
        %v2507 = vrot.slane %v2478, 1
        %v2508 = vsel %vm2200, %v2505, %v2507
        %v2509 = vrot.slane %v2479, 1
        %v2510 = vsel %vm2200, %v2507, %v2509
        %v2511 = vrot.slane %v2480, 1
        %v2512 = vsel %vm2200, %v2509, %v2511
        %v2513 = vrot.slane %v2481, 1
        %v2514 = vsel %vm2200, %v2511, %v2513
        %2515 = vrot.lane.b32.xlu0 %v2484, 32
        %v2516 = vpop.permute.xlu0 %2515
        %2517 = vrot.lane.b32.xlu0 %v2486, 32
        %v2518 = vpop.permute.xlu0 %2517
        %2519 = vrot.lane.b32.xlu0 %v2488, 32
        %v2520 = vpop.permute.xlu0 %2519
        %2521 = vrot.lane.b32.xlu0 %v2490, 32
        %v2522 = vpop.permute.xlu0 %2521
        %2523 = vrot.lane.b32.xlu0 %v2492, 32
        %v2524 = vpop.permute.xlu0 %2523
        %2525 = vrot.lane.b32.xlu0 %v2494, 32
        %v2526 = vpop.permute.xlu0 %2525
        %2527 = vrot.lane.b32.xlu0 %v2496, 32
        %v2528 = vpop.permute.xlu0 %2527
        %2529 = vrot.lane.b32.xlu0 %v2498, 32
        %v2530 = vpop.permute.xlu0 %2529
        %2531 = vrot.lane.b32.xlu0 %v2500, 32
        %v2532 = vpop.permute.xlu0 %2531
        %2533 = vrot.lane.b32.xlu0 %v2502, 32
        %v2534 = vpop.permute.xlu0 %2533
        %2535 = vrot.lane.b32.xlu0 %v2504, 32
        %v2536 = vpop.permute.xlu0 %2535
        %2537 = vrot.lane.b32.xlu0 %v2506, 32
        %v2538 = vpop.permute.xlu0 %2537
        %2539 = vrot.lane.b32.xlu0 %v2508, 32
        %v2540 = vpop.permute.xlu0 %2539
        %2541 = vrot.lane.b32.xlu0 %v2510, 32
        %v2542 = vpop.permute.xlu0 %2541
        %2543 = vrot.lane.b32.xlu0 %v2512, 32
        %v2544 = vpop.permute.xlu0 %2543
        %2545 = vrot.lane.b32.xlu0 %v2514, 32
        %v2546 = vpop.permute.xlu0 %2545
        %v2579 = vunpack.c.l.b16 %v1722
        %v2580 = vunpack.c.l.b16 %v1723
        %v2581 = vunpack.c.l.b16 %v1724
        %v2582 = vunpack.c.l.b16 %v1725
        %v2583 = vunpack.c.l.b16 %v1726
        %v2584 = vunpack.c.l.b16 %v1727
        %v2585 = vunpack.c.l.b16 %v1728
        %v2586 = vunpack.c.l.b16 %v1729
        %v2587 = vunpack.c.l.b16 %v1730
        %v2588 = vunpack.c.l.b16 %v1731
        %v2589 = vunpack.c.l.b16 %v1732
        %v2590 = vunpack.c.l.b16 %v1733
        %v2591 = vunpack.c.l.b16 %v1734
        %v2592 = vunpack.c.l.b16 %v1735
        %v2593 = vunpack.c.l.b16 %v1736
        %v2594 = vunpack.c.l.b16 %v1737
        %v2595 = vunpack.c.l.b16 %v1738
        %v2596 = vunpack.c.l.b16 %v1739
        %v2597 = vunpack.c.l.b16 %v1740
        %v2598 = vunpack.c.l.b16 %v1741
        %v2599 = vunpack.c.l.b16 %v1742
        %v2600 = vunpack.c.l.b16 %v1743
        %v2601 = vunpack.c.l.b16 %v1744
        %v2602 = vunpack.c.l.b16 %v1745
        %v2603 = vunpack.c.l.b16 %v1746
        %v2604 = vunpack.c.l.b16 %v1747
        %v2605 = vunpack.c.l.b16 %v1748
        %v2606 = vunpack.c.l.b16 %v1749
        %v2607 = vunpack.c.l.b16 %v1750
        %v2608 = vunpack.c.l.b16 %v1751
        %v2609 = vunpack.c.l.b16 %v1752
        %v2610 = vunpack.c.l.b16 %v1753
        %v2611 = vpack.c.b16 %v2580, %v2579
        %v2612 = vpack.c.b16 %v2582, %v2581
        %v2613 = vpack.c.b16 %v2584, %v2583
        %v2614 = vpack.c.b16 %v2586, %v2585
        %v2615 = vpack.c.b16 %v2588, %v2587
        %v2616 = vpack.c.b16 %v2590, %v2589
        %v2617 = vpack.c.b16 %v2592, %v2591
        %v2618 = vpack.c.b16 %v2594, %v2593
        %v2619 = vpack.c.b16 %v2596, %v2595
        %v2620 = vpack.c.b16 %v2598, %v2597
        %v2621 = vpack.c.b16 %v2600, %v2599
        %v2622 = vpack.c.b16 %v2602, %v2601
        %v2623 = vpack.c.b16 %v2604, %v2603
        %v2624 = vpack.c.b16 %v2606, %v2605
        %v2625 = vpack.c.b16 %v2608, %v2607
        %v2626 = vpack.c.b16 %v2610, %v2609
        %2627 = vrot.lane.b32.xlu0 %v2611, 64
        %v2628 = vpop.permute.xlu0 %2627
        %2629 = vrot.lane.b32.xlu0 %v2612, 64
        %v2630 = vpop.permute.xlu0 %2629
        %2631 = vrot.lane.b32.xlu0 %v2613, 64
        %v2632 = vpop.permute.xlu0 %2631
        %2633 = vrot.lane.b32.xlu0 %v2614, 64
        %v2634 = vpop.permute.xlu0 %2633
        %2635 = vrot.lane.b32.xlu0 %v2615, 64
        %v2636 = vpop.permute.xlu0 %2635
        %2637 = vrot.lane.b32.xlu0 %v2616, 64
        %v2638 = vpop.permute.xlu0 %2637
        %2639 = vrot.lane.b32.xlu0 %v2617, 64
        %v2640 = vpop.permute.xlu0 %2639
        %2641 = vrot.lane.b32.xlu0 %v2618, 64
        %v2642 = vpop.permute.xlu0 %2641
        %2643 = vrot.lane.b32.xlu0 %v2619, 64
        %v2644 = vpop.permute.xlu0 %2643
        %2645 = vrot.lane.b32.xlu0 %v2620, 64
        %v2646 = vpop.permute.xlu0 %2645
        %2647 = vrot.lane.b32.xlu0 %v2621, 64
        %v2648 = vpop.permute.xlu0 %2647
        %2649 = vrot.lane.b32.xlu0 %v2622, 64
        %v2650 = vpop.permute.xlu0 %2649
        %2651 = vrot.lane.b32.xlu0 %v2623, 64
        %v2652 = vpop.permute.xlu0 %2651
        %2653 = vrot.lane.b32.xlu0 %v2624, 64
        %v2654 = vpop.permute.xlu0 %2653
        %2655 = vrot.lane.b32.xlu0 %v2625, 64
        %v2656 = vpop.permute.xlu0 %2655
        %2657 = vrot.lane.b32.xlu0 %v2626, 64
        %v2658 = vpop.permute.xlu0 %2657
        %v2662 = vunpack.c.l.b16 %v1720
        %v2663 = vunpack.c.l.b16 %v1721
        %v2664 = vunpack.c.l.b16 %v1754
        %v2665 = vpack.c.b16 %v2663, %v2662
        %v2666 = vpack.c.b16 %v2664, %v2664
        %v2668 = vshll.u32 %v2665, 16
        %v2670 = vrot.slane %v2668, 1
        %v2671 = vsel %vm1952, %v2393, %v2670
        %v2672 = vshrl.u32 %v2665, 16
        %v2674 = vor.u32 %v2672, %v2670
        %v2676 = vshll.u32 %v2666, 16
        %v2678 = vrot.slane %v2676, 1
        %v2679 = vsel %vm1952, %v2674, %v2678
        %2680 = vrot.lane.b32.xlu0 %v1980, 96
        %v2681 = vpop.permute.xlu0 %2680
        %2682 = vrot.lane.b32.xlu0 %v1988, 96
        %v2683 = vpop.permute.xlu0 %2682
        %2684 = vrot.lane.b32.xlu0 %v1996, 96
        %v2685 = vpop.permute.xlu0 %2684
        %2686 = vrot.lane.b32.xlu0 %v2004, 96
        %v2687 = vpop.permute.xlu0 %2686
        %2688 = vrot.lane.b32.xlu0 %v2012, 96
        %v2689 = vpop.permute.xlu0 %2688
        %2690 = vrot.lane.b32.xlu0 %v2020, 96
        %v2691 = vpop.permute.xlu0 %2690
        %2692 = vrot.lane.b32.xlu0 %v2028, 96
        %v2693 = vpop.permute.xlu0 %2692
        %2694 = vrot.lane.b32.xlu0 %v2036, 96
        %v2695 = vpop.permute.xlu0 %2694
        %2696 = vrot.lane.b32.xlu0 %v2044, 96
        %v2697 = vpop.permute.xlu0 %2696
        %2698 = vrot.lane.b32.xlu0 %v2052, 96
        %v2699 = vpop.permute.xlu0 %2698
        %2700 = vrot.lane.b32.xlu0 %v2060, 96
        %v2701 = vpop.permute.xlu0 %2700
        %2702 = vrot.lane.b32.xlu0 %v2068, 96
        %v2703 = vpop.permute.xlu0 %2702
        %2704 = vrot.lane.b32.xlu0 %v2076, 96
        %v2705 = vpop.permute.xlu0 %2704
        %2706 = vrot.lane.b32.xlu0 %v2390, 96
        %v2707 = vpop.permute.xlu0 %2706
        %2708 = vrot.lane.b32.xlu0 %v2671, 96
        %v2709 = vpop.permute.xlu0 %2708
        %2710 = vrot.lane.b32.xlu0 %v2679, 96
        %v2711 = vpop.permute.xlu0 %2710
        %v2745 = vunpack.c.l.b16 %v1756
        %v2746 = vunpack.c.l.b16 %v1757
        %v2747 = vunpack.c.l.b16 %v1758
        %v2748 = vunpack.c.l.b16 %v1759
        %v2749 = vunpack.c.l.b16 %v1760
        %v2750 = vunpack.c.l.b16 %v1761
        %v2751 = vunpack.c.l.b16 %v1762
        %v2752 = vunpack.c.l.b16 %v1763
        %v2753 = vunpack.c.l.b16 %v1764
        %v2754 = vunpack.c.l.b16 %v1765
        %v2755 = vunpack.c.l.b16 %v1766
        %v2756 = vunpack.c.l.b16 %v1767
        %v2757 = vunpack.c.l.b16 %v1768
        %v2758 = vunpack.c.l.b16 %v1769
        %v2759 = vunpack.c.l.b16 %v1770
        %v2760 = vunpack.c.l.b16 %v1771
        %v2761 = vunpack.c.l.b16 %v1772
        %v2762 = vunpack.c.l.b16 %v1773
        %v2763 = vunpack.c.l.b16 %v1774
        %v2764 = vunpack.c.l.b16 %v1775
        %v2765 = vunpack.c.l.b16 %v1776
        %v2766 = vunpack.c.l.b16 %v1777
        %v2767 = vunpack.c.l.b16 %v1778
        %v2768 = vunpack.c.l.b16 %v1779
        %v2769 = vunpack.c.l.b16 %v1780
        %v2770 = vunpack.c.l.b16 %v1781
        %v2771 = vunpack.c.l.b16 %v1782
        %v2772 = vunpack.c.l.b16 %v1783
        %v2773 = vunpack.c.l.b16 %v1784
        %v2774 = vunpack.c.l.b16 %v1785
        %v2775 = vunpack.c.l.b16 %v1786
        %v2776 = vunpack.c.l.b16 %v1787
        %v2777 = vunpack.c.l.b16 %v1788
        %v2778 = vpack.c.b16 %v2746, %v2745
        %v2779 = vpack.c.b16 %v2748, %v2747
        %v2780 = vpack.c.b16 %v2750, %v2749
        %v2781 = vpack.c.b16 %v2752, %v2751
        %v2782 = vpack.c.b16 %v2754, %v2753
        %v2783 = vpack.c.b16 %v2756, %v2755
        %v2784 = vpack.c.b16 %v2758, %v2757
        %v2785 = vpack.c.b16 %v2760, %v2759
        %v2786 = vpack.c.b16 %v2762, %v2761
        %v2787 = vpack.c.b16 %v2764, %v2763
        %v2788 = vpack.c.b16 %v2766, %v2765
        %v2789 = vpack.c.b16 %v2768, %v2767
        %v2790 = vpack.c.b16 %v2770, %v2769
        %v2791 = vpack.c.b16 %v2772, %v2771
        %v2792 = vpack.c.b16 %v2774, %v2773
        %v2793 = vpack.c.b16 %v2776, %v2775
        %v2794 = vpack.c.b16 %v2777, %v2777
        %v2795 = vrot.slane %v2778, 1
        %v2796 = vrot.slane %v2779, 1
        %v2797 = vsel %vm2200, %v2795, %v2796
        %v2798 = vrot.slane %v2780, 1
        %v2799 = vsel %vm2200, %v2796, %v2798
        %v2800 = vrot.slane %v2781, 1
        %v2801 = vsel %vm2200, %v2798, %v2800
        %v2802 = vrot.slane %v2782, 1
        %v2803 = vsel %vm2200, %v2800, %v2802
        %v2804 = vrot.slane %v2783, 1
        %v2805 = vsel %vm2200, %v2802, %v2804
        %v2806 = vrot.slane %v2784, 1
        %v2807 = vsel %vm2200, %v2804, %v2806
        %v2808 = vrot.slane %v2785, 1
        %v2809 = vsel %vm2200, %v2806, %v2808
        %v2810 = vrot.slane %v2786, 1
        %v2811 = vsel %vm2200, %v2808, %v2810
        %v2812 = vrot.slane %v2787, 1
        %v2813 = vsel %vm2200, %v2810, %v2812
        %v2814 = vrot.slane %v2788, 1
        %v2815 = vsel %vm2200, %v2812, %v2814
        %v2816 = vrot.slane %v2789, 1
        %v2817 = vsel %vm2200, %v2814, %v2816
        %v2818 = vrot.slane %v2790, 1
        %v2819 = vsel %vm2200, %v2816, %v2818
        %v2820 = vrot.slane %v2791, 1
        %v2821 = vsel %vm2200, %v2818, %v2820
        %v2822 = vrot.slane %v2792, 1
        %v2823 = vsel %vm2200, %v2820, %v2822
        %v2824 = vrot.slane %v2793, 1
        %v2825 = vsel %vm2200, %v2822, %v2824
        %v2826 = vrot.slane %v2794, 1
        %v2827 = vsel %vm2200, %v2824, %v2826
        %vm2828 = vcmask 261120
        %v2831 = vsel %vm2828, %v1853, %v2086
        %v2834 = vsel %vm2828, %v1854, %v2088
        %v2837 = vsel %vm2828, %v1855, %v2090
        %v2840 = vsel %vm2828, %v1856, %v2092
        %v2843 = vsel %vm2828, %v1857, %v2094
        %v2846 = vsel %vm2828, %v1858, %v2096
        %v2849 = vsel %vm2828, %v1859, %v2098
        %v2852 = vsel %vm2828, %v1860, %v2100
        %v2855 = vsel %vm2828, %v1861, %v2102
        %v2858 = vsel %vm2828, %v1862, %v2104
        %v2861 = vsel %vm2828, %v1863, %v2106
        %v2864 = vsel %vm2828, %v1864, %v2108
        %v2867 = vsel %vm2828, %v1865, %v2110
        %v2870 = vsel %vm2828, %v1866, %v2112
        %v2873 = vsel %vm2828, %v1867, %v2114
        %v2876 = vsel %vm2828, %v1868, %v2116
        %vm2877 = vcmask 523264
        %v2879 = vsel %vm2877, %v2831, %v2235
        %v2881 = vsel %vm2877, %v2834, %v2237
        %v2883 = vsel %vm2877, %v2837, %v2239
        %v2885 = vsel %vm2877, %v2840, %v2241
        %v2887 = vsel %vm2877, %v2843, %v2243
        %v2889 = vsel %vm2877, %v2846, %v2245
        %v2891 = vsel %vm2877, %v2849, %v2247
        %v2893 = vsel %vm2877, %v2852, %v2249
        %v2895 = vsel %vm2877, %v2855, %v2251
        %v2897 = vsel %vm2877, %v2858, %v2253
        %v2899 = vsel %vm2877, %v2861, %v2255
        %v2901 = vsel %vm2877, %v2864, %v2257
        %v2903 = vsel %vm2877, %v2867, %v2259
        %v2905 = vsel %vm2877, %v2870, %v2261
        %v2907 = vsel %vm2877, %v2873, %v2263
        %v2909 = vsel %vm2877, %v2876, %v2265
        %vm2910 = vcmask 785408
        %v2912 = vsel %vm2910, %v2879, %v2347
        %v2915 = vsel %vm2910, %v2881, %v2349
        %v2918 = vsel %vm2910, %v2883, %v2351
        %v2921 = vsel %vm2910, %v2885, %v2353
        %v2924 = vsel %vm2910, %v2887, %v2355
        %v2927 = vsel %vm2910, %v2889, %v2357
        %v2930 = vsel %vm2910, %v2891, %v2359
        %v2933 = vsel %vm2910, %v2893, %v2361
        %v2936 = vsel %vm2910, %v2895, %v2363
        %v2939 = vsel %vm2910, %v2897, %v2365
        %v2942 = vsel %vm2910, %v2899, %v2367
        %v2945 = vsel %vm2910, %v2901, %v2369
        %v2948 = vsel %vm2910, %v2903, %v2371
        %v2951 = vsel %vm2910, %v2905, %v2373
        %v2954 = vsel %vm2910, %v2907, %v2375
        %v2957 = vsel %vm2910, %v2909, %v2377
        %v2961 = vsel %vm2828, %v1972, %v2516
        %v2964 = vsel %vm2828, %v1980, %v2518
        %v2967 = vsel %vm2828, %v1988, %v2520
        %v2970 = vsel %vm2828, %v1996, %v2522
        %v2973 = vsel %vm2828, %v2004, %v2524
        %v2976 = vsel %vm2828, %v2012, %v2526
        %v2979 = vsel %vm2828, %v2020, %v2528
        %v2982 = vsel %vm2828, %v2028, %v2530
        %v2985 = vsel %vm2828, %v2036, %v2532
        %v2988 = vsel %vm2828, %v2044, %v2534
        %v2991 = vsel %vm2828, %v2052, %v2536
        %v2994 = vsel %vm2828, %v2060, %v2538
        %v2997 = vsel %vm2828, %v2068, %v2540
        %v3000 = vsel %vm2828, %v2076, %v2542
        %v3003 = vsel %vm2828, %v2390, %v2544
        %v3006 = vsel %vm2828, %v2398, %v2546
        %v3008 = vsel %vm2877, %v2961, %v2628
        %v3010 = vsel %vm2877, %v2964, %v2630
        %v3012 = vsel %vm2877, %v2967, %v2632
        %v3014 = vsel %vm2877, %v2970, %v2634
        %v3016 = vsel %vm2877, %v2973, %v2636
        %v3018 = vsel %vm2877, %v2976, %v2638
        %v3020 = vsel %vm2877, %v2979, %v2640
        %v3022 = vsel %vm2877, %v2982, %v2642
        %v3024 = vsel %vm2877, %v2985, %v2644
        %v3026 = vsel %vm2877, %v2988, %v2646
        %v3028 = vsel %vm2877, %v2991, %v2648
        %v3030 = vsel %vm2877, %v2994, %v2650
        %v3032 = vsel %vm2877, %v2997, %v2652
        %v3034 = vsel %vm2877, %v3000, %v2654
        %v3036 = vsel %vm2877, %v3003, %v2656
        %v3038 = vsel %vm2877, %v3006, %v2658
        %v3040 = vsel %vm2910, %v3008, %v2681
        %v3043 = vsel %vm2910, %v3010, %v2683
        %v3046 = vsel %vm2910, %v3012, %v2685
        %v3049 = vsel %vm2910, %v3014, %v2687
        %v3052 = vsel %vm2910, %v3016, %v2689
        %v3055 = vsel %vm2910, %v3018, %v2691
        %v3058 = vsel %vm2910, %v3020, %v2693
        %v3061 = vsel %vm2910, %v3022, %v2695
        %v3064 = vsel %vm2910, %v3024, %v2697
        %v3067 = vsel %vm2910, %v3026, %v2699
        %v3070 = vsel %vm2910, %v3028, %v2701
        %v3073 = vsel %vm2910, %v3030, %v2703
        %v3076 = vsel %vm2910, %v3032, %v2705
        %v3079 = vsel %vm2910, %v3034, %v2707
        %v3082 = vsel %vm2910, %v3036, %v2709
        %v3085 = vsel %vm2910, %v3038, %v2711
        %v3087 = vld [vmem:[%s1] sm:$0xf]
        %v3088 = vld [vmem:[%s1 + $0x4] sm:$0xf]
        %v3089 = vld [vmem:[%s1 + $0x8] sm:$0xf]
        %v3090 = vld [vmem:[%s1 + $0xc] sm:$0xf]
        %v3091 = vld [vmem:[%s1 + $0x10] sm:$0xf]
        %v3092 = vld [vmem:[%s1 + $0x14] sm:$0xf]
        %v3093 = vld [vmem:[%s1 + $0x18] sm:$0xf]
        %v3094 = vld [vmem:[%s1 + $0x1c] sm:$0xf]
        %v3095 = vld [vmem:[%s1 + $0x20] sm:$0xf]
        %v3096 = vld [vmem:[%s1 + $0x24] sm:$0xf]
        %v3097 = vld [vmem:[%s1 + $0x28] sm:$0xf]
        %v3098 = vld [vmem:[%s1 + $0x2c] sm:$0xf]
        %v3099 = vld [vmem:[%s1 + $0x30] sm:$0xf]
        %v3100 = vld [vmem:[%s1 + $0x34] sm:$0xf]
        %v3101 = vld [vmem:[%s1 + $0x38] sm:$0xf]
        %v3102 = vld [vmem:[%s1 + $0x3c] sm:$0xf]
        %v3103 = vld [vmem:[%s1 + $0x40] sm:$0xf]
        %v3104 = vld [vmem:[%s1 + $0x44] sm:$0xf]
        %v3105 = vld [vmem:[%s1 + $0x48] sm:$0xf]
        %v3106 = vld [vmem:[%s1 + $0x4c] sm:$0xf]
        %v3107 = vld [vmem:[%s1 + $0x50] sm:$0xf]
        %v3108 = vld [vmem:[%s1 + $0x54] sm:$0xf]
        %v3109 = vld [vmem:[%s1 + $0x58] sm:$0xf]
        %v3110 = vld [vmem:[%s1 + $0x5c] sm:$0xf]
        %v3111 = vld [vmem:[%s1 + $0x60] sm:$0xf]
        %v3112 = vld [vmem:[%s1 + $0x64] sm:$0xf]
        %v3113 = vld [vmem:[%s1 + $0x68] sm:$0xf]
        %v3114 = vld [vmem:[%s1 + $0x6c] sm:$0xf]
        %v3115 = vld [vmem:[%s1 + $0x70] sm:$0xf]
        %v3116 = vld [vmem:[%s1 + $0x74] sm:$0xf]
        %v3117 = vld [vmem:[%s1 + $0x78] sm:$0xf]
        %v3118 = vld [vmem:[%s1 + $0x7c] sm:$0xf]
        %v3119 = vld [vmem:[%s1 + $0x80] sm:$0xf]
        %v3120 = vld [vmem:[%s1 + $0x84] sm:$0xf]
        %v3121 = vld [vmem:[%s1 + $0x88] sm:$0xf]
        %v3122 = vld [vmem:[%s1 + $0x8c] sm:$0xf]
        %v3159 = vunpack.c.l.b16 %v3087
        %v3160 = vunpack.c.l.b16 %v3088
        %v3161 = vunpack.c.l.b16 %v3089
        %v3162 = vunpack.c.l.b16 %v3090
        %v3163 = vunpack.c.l.b16 %v3091
        %v3164 = vunpack.c.l.b16 %v3092
        %v3165 = vunpack.c.l.b16 %v3093
        %v3166 = vunpack.c.l.b16 %v3094
        %v3167 = vunpack.c.l.b16 %v3095
        %v3168 = vunpack.c.l.b16 %v3096
        %v3169 = vunpack.c.l.b16 %v3097
        %v3170 = vunpack.c.l.b16 %v3098
        %v3171 = vunpack.c.l.b16 %v3099
        %v3172 = vunpack.c.l.b16 %v3100
        %v3173 = vunpack.c.l.b16 %v3101
        %v3174 = vunpack.c.l.b16 %v3102
        %v3175 = vunpack.c.l.b16 %v3103
        %v3176 = vunpack.c.l.b16 %v3104
        %v3177 = vunpack.c.l.b16 %v3105
        %v3178 = vunpack.c.l.b16 %v3106
        %v3179 = vunpack.c.l.b16 %v3107
        %v3180 = vunpack.c.l.b16 %v3108
        %v3181 = vunpack.c.l.b16 %v3109
        %v3182 = vunpack.c.l.b16 %v3110
        %v3183 = vunpack.c.l.b16 %v3111
        %v3184 = vunpack.c.l.b16 %v3112
        %v3185 = vunpack.c.l.b16 %v3113
        %v3186 = vunpack.c.l.b16 %v3114
        %v3187 = vunpack.c.l.b16 %v3115
        %v3188 = vunpack.c.l.b16 %v3116
        %v3189 = vunpack.c.l.b16 %v3117
        %v3190 = vunpack.c.l.b16 %v3118
        %v3191 = vunpack.c.l.b16 %v3119
        %v3192 = vunpack.c.l.b16 %v3120
        %v3193 = vunpack.c.l.b16 %v3121
        %v3194 = vunpack.c.l.b16 %v3122
        %v3195 = vpack.c.b16 %v3160, %v3159
        %v3196 = vpack.c.b16 %v3162, %v3161
        %v3197 = vpack.c.b16 %v3164, %v3163
        %v3198 = vpack.c.b16 %v3166, %v3165
        %v3199 = vpack.c.b16 %v3168, %v3167
        %v3200 = vpack.c.b16 %v3170, %v3169
        %v3201 = vpack.c.b16 %v3172, %v3171
        %v3202 = vpack.c.b16 %v3174, %v3173
        %v3203 = vpack.c.b16 %v3176, %v3175
        %v3204 = vpack.c.b16 %v3178, %v3177
        %v3205 = vpack.c.b16 %v3180, %v3179
        %v3206 = vpack.c.b16 %v3182, %v3181
        %v3207 = vpack.c.b16 %v3184, %v3183
        %v3208 = vpack.c.b16 %v3186, %v3185
        %v3209 = vpack.c.b16 %v3188, %v3187
        %v3210 = vpack.c.b16 %v3190, %v3189
        %v3211 = vpack.c.b16 %v3192, %v3191
        %v3212 = vpack.c.b16 %v3194, %v3193
        %v3232 = vsel %vm2828, %v2797, 0
        %v3235 = vsel %vm2828, %v2799, 0
        %v3238 = vsel %vm2828, %v2801, 0
        %v3241 = vsel %vm2828, %v2803, 0
        %v3244 = vsel %vm2828, %v2805, 0
        %v3247 = vsel %vm2828, %v2807, 0
        %v3250 = vsel %vm2828, %v2809, 0
        %v3253 = vsel %vm2828, %v2811, 0
        %v3256 = vsel %vm2828, %v2813, 0
        %v3259 = vsel %vm2828, %v2815, 0
        %v3262 = vsel %vm2828, %v2817, 0
        %v3265 = vsel %vm2828, %v2819, 0
        %v3268 = vsel %vm2828, %v2821, 0
        %v3271 = vsel %vm2828, %v2823, 0
        %v3274 = vsel %vm2828, %v2825, 0
        %v3277 = vsel %vm2828, %v2827, 0
        %3279 = vmatprep.subr.bf16.mxu0 0
        %3280 = vmatpush1.bf16.msra.mxu0 %v3202
        %3281 = vmatprep.subr.bf16.mxu0 0
        %3282 = vmatpush1.bf16.msra.mxu0 %v3201
        %3283 = vmatprep.subr.bf16.mxu0 0
        %3284 = vmatpush1.bf16.msra.mxu0 %v3200
        %3285 = vmatprep.subr.bf16.mxu0 0
        %3286 = vmatpush1.bf16.msra.mxu0 %v3199
        %3287 = vmatprep.subr.bf16.mxu0 0
        %3288 = vmatpush1.bf16.msra.mxu0 %v3198
        %3289 = vmatprep.subr.bf16.mxu0 0
        %3290 = vmatpush1.bf16.msra.mxu0 %v3197
        %3291 = vmatprep.subr.bf16.mxu0 0
        %3292 = vmatpush1.bf16.msra.mxu0 %v3196
        %3293 = vmatprep.subr.bf16.mxu0 0
        %3294 = vmatpush1.bf16.msra.mxu0 %v3195
        %3295 = vmatprep.subr.bf16.mxu0 0
        %3296 = vmatpush2.bf16.msra.mxu0 %v3210
        %3297 = vmatprep.subr.bf16.mxu0 0
        %3298 = vmatpush2.bf16.msra.mxu0 %v3209
        %3299 = vmatprep.subr.bf16.mxu0 0
        %3300 = vmatpush2.bf16.msra.mxu0 %v3208
        %3301 = vmatprep.subr.bf16.mxu0 0
        %3302 = vmatpush2.bf16.msra.mxu0 %v3207
        %3303 = vmatprep.subr.bf16.mxu0 0
        %3304 = vmatpush2.bf16.msra.mxu0 %v3206
        %3305 = vmatprep.subr.bf16.mxu0 0
        %3306 = vmatpush2.bf16.msra.mxu0 %v3205
        %3307 = vmatprep.subr.bf16.mxu0 0
        %3308 = vmatpush2.bf16.msra.mxu0 %v3204
        %3309 = vmatprep.subr.bf16.mxu0 0
        %3310 = vmatpush2.bf16.msra.mxu0 %v3203
        %3311 = vmatprep.mubr.bf16.mxu0 %v3040
        %3312 = vmatmul.mubr.bf16.gmra.mxu0 %v2912
        %v3313 = vpop.f32.mrf.mxu0
        %v3314 = vadd.f32 0.0, %v3313
        %v3315 = vpop.f32.mrf.mxu0
        %v3316 = vpop.f32.mrf.mxu0
        %v3317 = vadd.f32 0.0, %v3316
        %v3318 = vpop.f32.mrf.mxu0
        %3319 = vmatprep.mubr.bf16.mxu0 %v3043
        %3320 = vmatmul.mubr.bf16.gmra.mxu0 %v2915
        %v3321 = vpop.f32.mrf.mxu0
        %v3322 = vadd.f32 0.0, %v3321
        %v3323 = vpop.f32.mrf.mxu0
        %v3324 = vpop.f32.mrf.mxu0
        %v3325 = vadd.f32 0.0, %v3324
        %v3326 = vpop.f32.mrf.mxu0
        %3327 = vmatprep.mubr.bf16.mxu0 %v3046
        %3328 = vmatmul.mubr.bf16.gmra.mxu0 %v2918
        %v3329 = vpop.f32.mrf.mxu0
        %v3330 = vadd.f32 0.0, %v3329
        %v3331 = vpop.f32.mrf.mxu0
        %v3332 = vpop.f32.mrf.mxu0
        %v3333 = vadd.f32 0.0, %v3332
        %v3334 = vpop.f32.mrf.mxu0
        %3335 = vmatprep.mubr.bf16.mxu0 %v3049
        %3336 = vmatmul.mubr.bf16.gmra.mxu0 %v2921
        %v3337 = vpop.f32.mrf.mxu0
        %v3338 = vadd.f32 0.0, %v3337
        %v3339 = vpop.f32.mrf.mxu0
        %v3340 = vpop.f32.mrf.mxu0
        %v3341 = vadd.f32 0.0, %v3340
        %v3342 = vpop.f32.mrf.mxu0
        %3343 = vmatprep.mubr.bf16.mxu0 %v3052
        %3344 = vmatmul.mubr.bf16.gmra.mxu0 %v2924
        %v3345 = vpop.f32.mrf.mxu0
        %v3346 = vadd.f32 0.0, %v3345
        %v3347 = vpop.f32.mrf.mxu0
        %v3348 = vpop.f32.mrf.mxu0
        %v3349 = vadd.f32 0.0, %v3348
        %v3350 = vpop.f32.mrf.mxu0
        %3351 = vmatprep.mubr.bf16.mxu0 %v3055
        %3352 = vmatmul.mubr.bf16.gmra.mxu0 %v2927
        %v3353 = vpop.f32.mrf.mxu0
        %v3354 = vadd.f32 0.0, %v3353
        %v3355 = vpop.f32.mrf.mxu0
        %v3356 = vpop.f32.mrf.mxu0
        %v3357 = vadd.f32 0.0, %v3356
        %v3358 = vpop.f32.mrf.mxu0
        %3359 = vmatprep.mubr.bf16.mxu0 %v3058
        %3360 = vmatmul.mubr.bf16.gmra.mxu0 %v2930
        %v3361 = vpop.f32.mrf.mxu0
        %v3362 = vadd.f32 0.0, %v3361
        %v3363 = vpop.f32.mrf.mxu0
        %v3364 = vpop.f32.mrf.mxu0
        %v3365 = vadd.f32 0.0, %v3364
        %v3366 = vpop.f32.mrf.mxu0
        %3367 = vmatprep.mubr.bf16.mxu0 %v3061
        %3368 = vmatmul.mubr.bf16.gmra.mxu0 %v2933
        %v3369 = vpop.f32.mrf.mxu0
        %v3370 = vadd.f32 0.0, %v3369
        %v3371 = vpop.f32.mrf.mxu0
        %v3372 = vpop.f32.mrf.mxu0
        %v3373 = vadd.f32 0.0, %v3372
        %v3374 = vpop.f32.mrf.mxu0
        %3375 = vmatprep.mubr.bf16.mxu0 %v3064
        %3376 = vmatmul.mubr.bf16.gmra.mxu0 %v2936
        %v3377 = vpop.f32.mrf.mxu0
        %v3378 = vadd.f32 0.0, %v3377
        %v3379 = vpop.f32.mrf.mxu0
        %v3380 = vpop.f32.mrf.mxu0
        %v3381 = vadd.f32 0.0, %v3380
        %v3382 = vpop.f32.mrf.mxu0
        %3383 = vmatprep.mubr.bf16.mxu0 %v3067
        %3384 = vmatmul.mubr.bf16.gmra.mxu0 %v2939
        %v3385 = vpop.f32.mrf.mxu0
        %v3386 = vadd.f32 0.0, %v3385
        %v3387 = vpop.f32.mrf.mxu0
        %v3388 = vpop.f32.mrf.mxu0
        %v3389 = vadd.f32 0.0, %v3388
        %v3390 = vpop.f32.mrf.mxu0
        %3391 = vmatprep.mubr.bf16.mxu0 %v3070
        %3392 = vmatmul.mubr.bf16.gmra.mxu0 %v2942
        %v3393 = vpop.f32.mrf.mxu0
        %v3394 = vadd.f32 0.0, %v3393
        %v3395 = vpop.f32.mrf.mxu0
        %v3396 = vpop.f32.mrf.mxu0
        %v3397 = vadd.f32 0.0, %v3396
        %v3398 = vpop.f32.mrf.mxu0
        %3399 = vmatprep.mubr.bf16.mxu0 %v3073
        %3400 = vmatmul.mubr.bf16.gmra.mxu0 %v2945
        %v3401 = vpop.f32.mrf.mxu0
        %v3402 = vadd.f32 0.0, %v3401
        %v3403 = vpop.f32.mrf.mxu0
        %v3404 = vpop.f32.mrf.mxu0
        %v3405 = vadd.f32 0.0, %v3404
        %v3406 = vpop.f32.mrf.mxu0
        %3407 = vmatprep.mubr.bf16.mxu0 %v3076
        %3408 = vmatmul.mubr.bf16.gmra.mxu0 %v2948
        %v3409 = vpop.f32.mrf.mxu0
        %v3410 = vadd.f32 0.0, %v3409
        %v3411 = vpop.f32.mrf.mxu0
        %v3412 = vpop.f32.mrf.mxu0
        %v3413 = vadd.f32 0.0, %v3412
        %v3414 = vpop.f32.mrf.mxu0
        %3415 = vmatprep.mubr.bf16.mxu0 %v3079
        %3416 = vmatmul.mubr.bf16.gmra.mxu0 %v2951
        %v3417 = vpop.f32.mrf.mxu0
        %v3418 = vadd.f32 0.0, %v3417
        %v3419 = vpop.f32.mrf.mxu0
        %v3420 = vpop.f32.mrf.mxu0
        %v3421 = vadd.f32 0.0, %v3420
        %v3422 = vpop.f32.mrf.mxu0
        %3423 = vmatprep.mubr.bf16.mxu0 %v3082
        %3424 = vmatmul.mubr.bf16.gmra.mxu0 %v2954
        %v3425 = vpop.f32.mrf.mxu0
        %v3426 = vadd.f32 0.0, %v3425
        %v3427 = vpop.f32.mrf.mxu0
        %v3428 = vpop.f32.mrf.mxu0
        %v3429 = vadd.f32 0.0, %v3428
        %v3430 = vpop.f32.mrf.mxu0
        %3431 = vmatprep.mubr.bf16.mxu0 %v3085
        %3432 = vmatmul.mubr.bf16.gmra.mxu0 %v2957
        %v3433 = vpop.f32.mrf.mxu0
        %v3434 = vadd.f32 0.0, %v3433
        %v3435 = vpop.f32.mrf.mxu0
        %v3436 = vpop.f32.mrf.mxu0
        %v3437 = vadd.f32 0.0, %v3436
        %v3438 = vpop.f32.mrf.mxu0
        %3439 = vdwg.mxu0
        %3440 = vmatprep.subr.bf16.mxu0 0
        %3441 = vmatpush1.bf16.msra.mxu0 0
        %3442 = vmatprep.subr.bf16.mxu0 0
        %3443 = vmatpush1.bf16.msra.mxu0 0
        %3444 = vmatprep.subr.bf16.mxu0 0
        %3445 = vmatpush1.bf16.msra.mxu0 0
        %3446 = vmatprep.subr.bf16.mxu0 0
        %3447 = vmatpush1.bf16.msra.mxu0 0
        %3448 = vmatprep.subr.bf16.mxu0 0
        %3449 = vmatpush1.bf16.msra.mxu0 0
        %3450 = vmatprep.subr.bf16.mxu0 0
        %3451 = vmatpush1.bf16.msra.mxu0 0
        %3452 = vmatprep.subr.bf16.mxu0 0
        %3453 = vmatpush1.bf16.msra.mxu0 %v3212
        %3454 = vmatprep.subr.bf16.mxu0 0
        %3455 = vmatpush1.bf16.msra.mxu0 %v3211
        %3456 = vmatprep.subr.bf16.mxu0 0
        %3457 = vmatpush2.bf16.msra.mxu0 0
        %3458 = vmatprep.subr.bf16.mxu0 0
        %3459 = vmatpush2.bf16.msra.mxu0 0
        %3460 = vmatprep.subr.bf16.mxu0 0
        %3461 = vmatpush2.bf16.msra.mxu0 0
        %3462 = vmatprep.subr.bf16.mxu0 0
        %3463 = vmatpush2.bf16.msra.mxu0 0
        %3464 = vmatprep.subr.bf16.mxu0 0
        %3465 = vmatpush2.bf16.msra.mxu0 0
        %3466 = vmatprep.subr.bf16.mxu0 0
        %3467 = vmatpush2.bf16.msra.mxu0 0
        %3468 = vmatprep.subr.bf16.mxu0 0
        %3469 = vmatpush2.bf16.msra.mxu0 0
        %3470 = vmatprep.subr.bf16.mxu0 0
        %3471 = vmatpush2.bf16.msra.mxu0 0
        %3472 = vmatprep.mubr.bf16.mxu0 0
        %3473 = vmatmul.mubr.bf16.gmra.mxu0 %v3232
        %v3474 = vpop.f32.mrf.mxu0
        %v3475 = vadd.f32 %v3314, %v3474
        %v3476 = vpop.f32.mrf.mxu0
        %v3477 = vpop.f32.mrf.mxu0
        %v3478 = vadd.f32 %v3317, %v3477
        %v3479 = vpop.f32.mrf.mxu0
        %3480 = vmatprep.mubr.bf16.mxu0 0
        %3481 = vmatmul.mubr.bf16.gmra.mxu0 %v3235
        %v3482 = vpop.f32.mrf.mxu0
        %v3483 = vadd.f32 %v3322, %v3482
        %v3484 = vpop.f32.mrf.mxu0
        %v3485 = vpop.f32.mrf.mxu0
        %v3486 = vadd.f32 %v3325, %v3485
        %v3487 = vpop.f32.mrf.mxu0
        %3488 = vmatprep.mubr.bf16.mxu0 0
        %3489 = vmatmul.mubr.bf16.gmra.mxu0 %v3238
        %v3490 = vpop.f32.mrf.mxu0
        %v3491 = vadd.f32 %v3330, %v3490
        %v3492 = vpop.f32.mrf.mxu0
        %v3493 = vpop.f32.mrf.mxu0
        %v3494 = vadd.f32 %v3333, %v3493
        %v3495 = vpop.f32.mrf.mxu0
        %3496 = vmatprep.mubr.bf16.mxu0 0
        %3497 = vmatmul.mubr.bf16.gmra.mxu0 %v3241
        %v3498 = vpop.f32.mrf.mxu0
        %v3499 = vadd.f32 %v3338, %v3498
        %v3500 = vpop.f32.mrf.mxu0
        %v3501 = vpop.f32.mrf.mxu0
        %v3502 = vadd.f32 %v3341, %v3501
        %v3503 = vpop.f32.mrf.mxu0
        %3504 = vmatprep.mubr.bf16.mxu0 0
        %3505 = vmatmul.mubr.bf16.gmra.mxu0 %v3244
        %v3506 = vpop.f32.mrf.mxu0
        %v3507 = vadd.f32 %v3346, %v3506
        %v3508 = vpop.f32.mrf.mxu0
        %v3509 = vpop.f32.mrf.mxu0
        %v3510 = vadd.f32 %v3349, %v3509
        %v3511 = vpop.f32.mrf.mxu0
        %3512 = vmatprep.mubr.bf16.mxu0 0
        %3513 = vmatmul.mubr.bf16.gmra.mxu0 %v3247
        %v3514 = vpop.f32.mrf.mxu0
        %v3515 = vadd.f32 %v3354, %v3514
        %v3516 = vpop.f32.mrf.mxu0
        %v3517 = vpop.f32.mrf.mxu0
        %v3518 = vadd.f32 %v3357, %v3517
        %v3519 = vpop.f32.mrf.mxu0
        %3520 = vmatprep.mubr.bf16.mxu0 0
        %3521 = vmatmul.mubr.bf16.gmra.mxu0 %v3250
        %v3522 = vpop.f32.mrf.mxu0
        %v3523 = vadd.f32 %v3362, %v3522
        %v3524 = vpop.f32.mrf.mxu0
        %v3525 = vpop.f32.mrf.mxu0
        %v3526 = vadd.f32 %v3365, %v3525
        %v3527 = vpop.f32.mrf.mxu0
        %3528 = vmatprep.mubr.bf16.mxu0 0
        %3529 = vmatmul.mubr.bf16.gmra.mxu0 %v3253
        %v3530 = vpop.f32.mrf.mxu0
        %v3531 = vadd.f32 %v3370, %v3530
        %v3532 = vpop.f32.mrf.mxu0
        %v3533 = vpop.f32.mrf.mxu0
        %v3534 = vadd.f32 %v3373, %v3533
        %v3535 = vpop.f32.mrf.mxu0
        %3536 = vmatprep.mubr.bf16.mxu0 0
        %3537 = vmatmul.mubr.bf16.gmra.mxu0 %v3256
        %v3538 = vpop.f32.mrf.mxu0
        %v3539 = vadd.f32 %v3378, %v3538
        %v3540 = vpop.f32.mrf.mxu0
        %v3541 = vpop.f32.mrf.mxu0
        %v3542 = vadd.f32 %v3381, %v3541
        %v3543 = vpop.f32.mrf.mxu0
        %3544 = vmatprep.mubr.bf16.mxu0 0
        %3545 = vmatmul.mubr.bf16.gmra.mxu0 %v3259
        %v3546 = vpop.f32.mrf.mxu0
        %v3547 = vadd.f32 %v3386, %v3546
        %v3548 = vpop.f32.mrf.mxu0
        %v3549 = vpop.f32.mrf.mxu0
        %v3550 = vadd.f32 %v3389, %v3549
        %v3551 = vpop.f32.mrf.mxu0
        %3552 = vmatprep.mubr.bf16.mxu0 0
        %3553 = vmatmul.mubr.bf16.gmra.mxu0 %v3262
        %v3554 = vpop.f32.mrf.mxu0
        %v3555 = vadd.f32 %v3394, %v3554
        %v3556 = vpop.f32.mrf.mxu0
        %v3557 = vpop.f32.mrf.mxu0
        %v3558 = vadd.f32 %v3397, %v3557
        %v3559 = vpop.f32.mrf.mxu0
        %3560 = vmatprep.mubr.bf16.mxu0 0
        %3561 = vmatmul.mubr.bf16.gmra.mxu0 %v3265
        %v3562 = vpop.f32.mrf.mxu0
        %v3563 = vadd.f32 %v3402, %v3562
        %v3564 = vpop.f32.mrf.mxu0
        %v3565 = vpop.f32.mrf.mxu0
        %v3566 = vadd.f32 %v3405, %v3565
        %v3567 = vpop.f32.mrf.mxu0
        %3568 = vmatprep.mubr.bf16.mxu0 0
        %3569 = vmatmul.mubr.bf16.gmra.mxu0 %v3268
        %v3570 = vpop.f32.mrf.mxu0
        %v3571 = vadd.f32 %v3410, %v3570
        %v3572 = vpop.f32.mrf.mxu0
        %v3573 = vpop.f32.mrf.mxu0
        %v3574 = vadd.f32 %v3413, %v3573
        %v3575 = vpop.f32.mrf.mxu0
        %3576 = vmatprep.mubr.bf16.mxu0 0
        %3577 = vmatmul.mubr.bf16.gmra.mxu0 %v3271
        %v3578 = vpop.f32.mrf.mxu0
        %v3579 = vadd.f32 %v3418, %v3578
        %v3580 = vpop.f32.mrf.mxu0
        %v3581 = vpop.f32.mrf.mxu0
        %v3582 = vadd.f32 %v3421, %v3581
        %v3583 = vpop.f32.mrf.mxu0
        %3584 = vmatprep.mubr.bf16.mxu0 0
        %3585 = vmatmul.mubr.bf16.gmra.mxu0 %v3274
        %v3586 = vpop.f32.mrf.mxu0
        %v3587 = vadd.f32 %v3426, %v3586
        %v3588 = vpop.f32.mrf.mxu0
        %v3589 = vpop.f32.mrf.mxu0
        %v3590 = vadd.f32 %v3429, %v3589
        %v3591 = vpop.f32.mrf.mxu0
        %3592 = vmatprep.mubr.bf16.mxu0 0
        %3593 = vmatmul.mubr.bf16.gmra.mxu0 %v3277
        %v3594 = vpop.f32.mrf.mxu0
        %v3595 = vadd.f32 %v3434, %v3594
        %v3596 = vpop.f32.mrf.mxu0
        %v3597 = vpop.f32.mrf.mxu0
        %v3598 = vadd.f32 %v3437, %v3597
        %v3599 = vpop.f32.mrf.mxu0
        %3600 = vdwg.mxu0
        %v3601 = vld [vmem:[%s3] sm:$0x1]
        %v3603 = vlaneseq
        %v3604 = vshrl.u32 %v3603, 7
        %v3605 = vsub.s32 0, %v3604
        %v3606 = vrot.slane %v3601, %v3605
        %v3608 = vmul.f32 %v3475, %v3606
        %v3609 = vmul.f32 %v3478, %v3606
        %v3610 = vmul.f32 %v3483, %v3606
        %v3611 = vmul.f32 %v3486, %v3606
        %v3612 = vmul.f32 %v3491, %v3606
        %v3613 = vmul.f32 %v3494, %v3606
        %v3614 = vmul.f32 %v3499, %v3606
        %v3615 = vmul.f32 %v3502, %v3606
        %v3616 = vmul.f32 %v3507, %v3606
        %v3617 = vmul.f32 %v3510, %v3606
        %v3618 = vmul.f32 %v3515, %v3606
        %v3619 = vmul.f32 %v3518, %v3606
        %v3620 = vmul.f32 %v3523, %v3606
        %v3621 = vmul.f32 %v3526, %v3606
        %v3622 = vmul.f32 %v3531, %v3606
        %v3623 = vmul.f32 %v3534, %v3606
        %v3624 = vmul.f32 %v3539, %v3606
        %v3625 = vmul.f32 %v3542, %v3606
        %v3626 = vmul.f32 %v3547, %v3606
        %v3627 = vmul.f32 %v3550, %v3606
        %v3628 = vmul.f32 %v3555, %v3606
        %v3629 = vmul.f32 %v3558, %v3606
        %v3630 = vmul.f32 %v3563, %v3606
        %v3631 = vmul.f32 %v3566, %v3606
        %v3632 = vmul.f32 %v3571, %v3606
        %v3633 = vmul.f32 %v3574, %v3606
        %v3634 = vmul.f32 %v3579, %v3606
        %v3635 = vmul.f32 %v3582, %v3606
        %v3636 = vmul.f32 %v3587, %v3606
        %v3637 = vmul.f32 %v3590, %v3606
        %v3638 = vmul.f32 %v3595, %v3606
        %v3639 = vmul.f32 %v3598, %v3606
        %v3640 = vld [vmem:[%s4] sm:$0x1]
        %v3642 = vlaneseq
        %v3643 = vshrl.u32 %v3642, 7
        %v3644 = vsub.s32 0, %v3643
        %v3645 = vrot.slane %v3640, %v3644
        %v3647 = vadd.f32 %v3608, %v3645
        %v3648 = vadd.f32 %v3609, %v3645
        %v3649 = vadd.f32 %v3610, %v3645
        %v3650 = vadd.f32 %v3611, %v3645
        %v3651 = vadd.f32 %v3612, %v3645
        %v3652 = vadd.f32 %v3613, %v3645
        %v3653 = vadd.f32 %v3614, %v3645
        %v3654 = vadd.f32 %v3615, %v3645
        %v3655 = vadd.f32 %v3616, %v3645
        %v3656 = vadd.f32 %v3617, %v3645
        %v3657 = vadd.f32 %v3618, %v3645
        %v3658 = vadd.f32 %v3619, %v3645
        %v3659 = vadd.f32 %v3620, %v3645
        %v3660 = vadd.f32 %v3621, %v3645
        %v3661 = vadd.f32 %v3622, %v3645
        %v3662 = vadd.f32 %v3623, %v3645
        %v3663 = vadd.f32 %v3624, %v3645
        %v3664 = vadd.f32 %v3625, %v3645
        %v3665 = vadd.f32 %v3626, %v3645
        %v3666 = vadd.f32 %v3627, %v3645
        %v3667 = vadd.f32 %v3628, %v3645
        %v3668 = vadd.f32 %v3629, %v3645
        %v3669 = vadd.f32 %v3630, %v3645
        %v3670 = vadd.f32 %v3631, %v3645
        %v3671 = vadd.f32 %v3632, %v3645
        %v3672 = vadd.f32 %v3633, %v3645
        %v3673 = vadd.f32 %v3634, %v3645
        %v3674 = vadd.f32 %v3635, %v3645
        %v3675 = vadd.f32 %v3636, %v3645
        %v3676 = vadd.f32 %v3637, %v3645
        %v3677 = vadd.f32 %v3638, %v3645
        %v3678 = vadd.f32 %v3639, %v3645
        %v3679 = vmax.f32 %v3647, 0.0
        %v3680 = vmax.f32 %v3648, 0.0
        %v3681 = vmax.f32 %v3649, 0.0
        %v3682 = vmax.f32 %v3650, 0.0
        %v3683 = vmax.f32 %v3651, 0.0
        %v3684 = vmax.f32 %v3652, 0.0
        %v3685 = vmax.f32 %v3653, 0.0
        %v3686 = vmax.f32 %v3654, 0.0
        %v3687 = vmax.f32 %v3655, 0.0
        %v3688 = vmax.f32 %v3656, 0.0
        %v3689 = vmax.f32 %v3657, 0.0
        %v3690 = vmax.f32 %v3658, 0.0
        %v3691 = vmax.f32 %v3659, 0.0
        %v3692 = vmax.f32 %v3660, 0.0
        %v3693 = vmax.f32 %v3661, 0.0
        %v3694 = vmax.f32 %v3662, 0.0
        %v3695 = vmax.f32 %v3663, 0.0
        %v3696 = vmax.f32 %v3664, 0.0
        %v3697 = vmax.f32 %v3665, 0.0
        %v3698 = vmax.f32 %v3666, 0.0
        %v3699 = vmax.f32 %v3667, 0.0
        %v3700 = vmax.f32 %v3668, 0.0
        %v3701 = vmax.f32 %v3669, 0.0
        %v3702 = vmax.f32 %v3670, 0.0
        %v3703 = vmax.f32 %v3671, 0.0
        %v3704 = vmax.f32 %v3672, 0.0
        %v3705 = vmax.f32 %v3673, 0.0
        %v3706 = vmax.f32 %v3674, 0.0
        %v3707 = vmax.f32 %v3675, 0.0
        %v3708 = vmax.f32 %v3676, 0.0
        %v3709 = vmax.f32 %v3677, 0.0
        %v3710 = vmax.f32 %v3678, 0.0
        %v3711 = vpack.c.bf16 %v3680, %v3679
        %v3712 = vpack.c.bf16 %v3682, %v3681
        %v3713 = vpack.c.bf16 %v3684, %v3683
        %v3714 = vpack.c.bf16 %v3686, %v3685
        %v3715 = vpack.c.bf16 %v3688, %v3687
        %v3716 = vpack.c.bf16 %v3690, %v3689
        %v3717 = vpack.c.bf16 %v3692, %v3691
        %v3718 = vpack.c.bf16 %v3694, %v3693
        %v3719 = vpack.c.bf16 %v3696, %v3695
        %v3720 = vpack.c.bf16 %v3698, %v3697
        %v3721 = vpack.c.bf16 %v3700, %v3699
        %v3722 = vpack.c.bf16 %v3702, %v3701
        %v3723 = vpack.c.bf16 %v3704, %v3703
        %v3724 = vpack.c.bf16 %v3706, %v3705
        %v3725 = vpack.c.bf16 %v3708, %v3707
        %v3726 = vpack.c.bf16 %v3710, %v3709
        %v3743 = vunpack.c.l.b16 %v3711
        %v3744 = vunpack.c.h.b16 %v3711
        %v3745 = vunpack.c.l.b16 %v3712
        %v3746 = vunpack.c.h.b16 %v3712
        %v3747 = vunpack.c.l.b16 %v3713
        %v3748 = vunpack.c.h.b16 %v3713
        %v3749 = vunpack.c.l.b16 %v3714
        %v3750 = vunpack.c.h.b16 %v3714
        %v3751 = vunpack.c.l.b16 %v3715
        %v3752 = vunpack.c.h.b16 %v3715
        %v3753 = vunpack.c.l.b16 %v3716
        %v3754 = vunpack.c.h.b16 %v3716
        %v3755 = vunpack.c.l.b16 %v3717
        %v3756 = vunpack.c.h.b16 %v3717
        %v3757 = vunpack.c.l.b16 %v3718
        %v3758 = vunpack.c.h.b16 %v3718
        %v3759 = vunpack.c.l.b16 %v3719
        %v3760 = vunpack.c.h.b16 %v3719
        %v3761 = vunpack.c.l.b16 %v3720
        %v3762 = vunpack.c.h.b16 %v3720
        %v3763 = vunpack.c.l.b16 %v3721
        %v3764 = vunpack.c.h.b16 %v3721
        %v3765 = vunpack.c.l.b16 %v3722
        %v3766 = vunpack.c.h.b16 %v3722
        %v3767 = vunpack.c.l.b16 %v3723
        %v3768 = vunpack.c.h.b16 %v3723
        %v3769 = vunpack.c.l.b16 %v3724
        %v3770 = vunpack.c.h.b16 %v3724
        %v3771 = vunpack.c.l.b16 %v3725
        %v3772 = vunpack.c.h.b16 %v3725
        %v3773 = vunpack.c.l.b16 %v3726
        %v3774 = vunpack.c.h.b16 %v3726
        %v3775 = vpack.c.b16 %v3743, %v3743
        %v3776 = vpack.c.b16 %v3744, %v3744
        %v3777 = vpack.c.b16 %v3745, %v3745
        %v3778 = vpack.c.b16 %v3746, %v3746
        %v3779 = vpack.c.b16 %v3747, %v3747
        %v3780 = vpack.c.b16 %v3748, %v3748
        %v3781 = vpack.c.b16 %v3749, %v3749
        %v3782 = vpack.c.b16 %v3750, %v3750
        %v3783 = vpack.c.b16 %v3751, %v3751
        %v3784 = vpack.c.b16 %v3752, %v3752
        %v3785 = vpack.c.b16 %v3753, %v3753
        %v3786 = vpack.c.b16 %v3754, %v3754
        %v3787 = vpack.c.b16 %v3755, %v3755
        %v3788 = vpack.c.b16 %v3756, %v3756
        %v3789 = vpack.c.b16 %v3757, %v3757
        %v3790 = vpack.c.b16 %v3758, %v3758
        %v3791 = vpack.c.b16 %v3759, %v3759
        %v3792 = vpack.c.b16 %v3760, %v3760
        %v3793 = vpack.c.b16 %v3761, %v3761
        %v3794 = vpack.c.b16 %v3762, %v3762
        %v3795 = vpack.c.b16 %v3763, %v3763
        %v3796 = vpack.c.b16 %v3764, %v3764
        %v3797 = vpack.c.b16 %v3765, %v3765
        %v3798 = vpack.c.b16 %v3766, %v3766
        %v3799 = vpack.c.b16 %v3767, %v3767
        %v3800 = vpack.c.b16 %v3768, %v3768
        %v3801 = vpack.c.b16 %v3769, %v3769
        %v3802 = vpack.c.b16 %v3770, %v3770
        %v3803 = vpack.c.b16 %v3771, %v3771
        %v3804 = vpack.c.b16 %v3772, %v3772
        %v3805 = vpack.c.b16 %v3773, %v3773
        %v3806 = vpack.c.b16 %v3774, %v3774
        %v3808 = vshrl.u32 %v3775, 16
        %v3810 = vrot.slane %v3808, 7
        %v3811 = vshll.u32 %v3775, 16
        %v3813 = vor.u32 %v3810, %v3811
        %v3814 = vrot.slane %v3810, 4
        %v3816 = vshrl.u32 %v3776, 16
        %v3818 = vrot.slane %v3816, 7
        %v3819 = vshll.u32 %v3776, 16
        %v3821 = vor.u32 %v3818, %v3819
        %v3822 = vsel %vm834, %v3814, %v3821
        %v3823 = vrot.slane %v3818, 4
        %v3825 = vshrl.u32 %v3777, 16
        %v3827 = vrot.slane %v3825, 7
        %v3828 = vshll.u32 %v3777, 16
        %v3830 = vor.u32 %v3827, %v3828
        %v3831 = vsel %vm834, %v3823, %v3830
        %v3832 = vrot.slane %v3827, 4
        %v3834 = vshrl.u32 %v3778, 16
        %v3836 = vrot.slane %v3834, 7
        %v3837 = vshll.u32 %v3778, 16
        %v3839 = vor.u32 %v3836, %v3837
        %v3840 = vsel %vm834, %v3832, %v3839
        %v3841 = vrot.slane %v3836, 4
        %v3843 = vshrl.u32 %v3779, 16
        %v3845 = vrot.slane %v3843, 7
        %v3846 = vshll.u32 %v3779, 16
        %v3848 = vor.u32 %v3845, %v3846
        %v3849 = vsel %vm834, %v3841, %v3848
        %v3850 = vrot.slane %v3845, 4
        %v3852 = vshrl.u32 %v3780, 16
        %v3854 = vrot.slane %v3852, 7
        %v3855 = vshll.u32 %v3780, 16
        %v3857 = vor.u32 %v3854, %v3855
        %v3858 = vsel %vm834, %v3850, %v3857
        %v3859 = vrot.slane %v3854, 4
        %v3861 = vshrl.u32 %v3781, 16
        %v3863 = vrot.slane %v3861, 7
        %v3864 = vshll.u32 %v3781, 16
        %v3866 = vor.u32 %v3863, %v3864
        %v3867 = vsel %vm834, %v3859, %v3866
        %v3868 = vrot.slane %v3863, 4
        %v3870 = vshrl.u32 %v3782, 16
        %v3872 = vrot.slane %v3870, 7
        %v3873 = vshll.u32 %v3782, 16
        %v3875 = vor.u32 %v3872, %v3873
        %v3876 = vsel %vm834, %v3868, %v3875
        %v3877 = vrot.slane %v3872, 4
        %v3879 = vshrl.u32 %v3783, 16
        %v3881 = vrot.slane %v3879, 7
        %v3882 = vshll.u32 %v3783, 16
        %v3884 = vor.u32 %v3881, %v3882
        %v3885 = vsel %vm834, %v3877, %v3884
        %v3886 = vrot.slane %v3881, 4
        %v3888 = vshrl.u32 %v3784, 16
        %v3890 = vrot.slane %v3888, 7
        %v3891 = vshll.u32 %v3784, 16
        %v3893 = vor.u32 %v3890, %v3891
        %v3894 = vsel %vm834, %v3886, %v3893
        %v3895 = vrot.slane %v3890, 4
        %v3897 = vshrl.u32 %v3785, 16
        %v3899 = vrot.slane %v3897, 7
        %v3900 = vshll.u32 %v3785, 16
        %v3902 = vor.u32 %v3899, %v3900
        %v3903 = vsel %vm834, %v3895, %v3902
        %v3904 = vrot.slane %v3899, 4
        %v3906 = vshrl.u32 %v3786, 16
        %v3908 = vrot.slane %v3906, 7
        %v3909 = vshll.u32 %v3786, 16
        %v3911 = vor.u32 %v3908, %v3909
        %v3912 = vsel %vm834, %v3904, %v3911
        %v3913 = vrot.slane %v3908, 4
        %v3915 = vshrl.u32 %v3787, 16
        %v3917 = vrot.slane %v3915, 7
        %v3918 = vshll.u32 %v3787, 16
        %v3920 = vor.u32 %v3917, %v3918
        %v3921 = vsel %vm834, %v3913, %v3920
        %v3922 = vrot.slane %v3917, 4
        %v3924 = vshrl.u32 %v3788, 16
        %v3926 = vrot.slane %v3924, 7
        %v3927 = vshll.u32 %v3788, 16
        %v3929 = vor.u32 %v3926, %v3927
        %v3930 = vsel %vm834, %v3922, %v3929
        %v3931 = vrot.slane %v3926, 4
        %v3933 = vshrl.u32 %v3789, 16
        %v3935 = vrot.slane %v3933, 7
        %v3936 = vshll.u32 %v3789, 16
        %v3938 = vor.u32 %v3935, %v3936
        %v3939 = vsel %vm834, %v3931, %v3938
        %v3940 = vrot.slane %v3935, 4
        %v3942 = vshrl.u32 %v3790, 16
        %v3944 = vrot.slane %v3942, 7
        %v3945 = vshll.u32 %v3790, 16
        %v3947 = vor.u32 %v3944, %v3945
        %v3948 = vsel %vm834, %v3940, %v3947
        %v3949 = vrot.slane %v3944, 4
        %v3951 = vshrl.u32 %v3791, 16
        %v3953 = vrot.slane %v3951, 7
        %v3954 = vshll.u32 %v3791, 16
        %v3956 = vor.u32 %v3953, %v3954
        %v3957 = vsel %vm834, %v3949, %v3956
        %v3958 = vrot.slane %v3953, 4
        %v3960 = vshrl.u32 %v3792, 16
        %v3962 = vrot.slane %v3960, 7
        %v3963 = vshll.u32 %v3792, 16
        %v3965 = vor.u32 %v3962, %v3963
        %v3966 = vsel %vm834, %v3958, %v3965
        %v3967 = vrot.slane %v3962, 4
        %v3969 = vshrl.u32 %v3793, 16
        %v3971 = vrot.slane %v3969, 7
        %v3972 = vshll.u32 %v3793, 16
        %v3974 = vor.u32 %v3971, %v3972
        %v3975 = vsel %vm834, %v3967, %v3974
        %v3976 = vrot.slane %v3971, 4
        %v3978 = vshrl.u32 %v3794, 16
        %v3980 = vrot.slane %v3978, 7
        %v3981 = vshll.u32 %v3794, 16
        %v3983 = vor.u32 %v3980, %v3981
        %v3984 = vsel %vm834, %v3976, %v3983
        %v3985 = vrot.slane %v3980, 4
        %v3987 = vshrl.u32 %v3795, 16
        %v3989 = vrot.slane %v3987, 7
        %v3990 = vshll.u32 %v3795, 16
        %v3992 = vor.u32 %v3989, %v3990
        %v3993 = vsel %vm834, %v3985, %v3992
        %v3994 = vrot.slane %v3989, 4
        %v3996 = vshrl.u32 %v3796, 16
        %v3998 = vrot.slane %v3996, 7
        %v3999 = vshll.u32 %v3796, 16
        %v4001 = vor.u32 %v3998, %v3999
        %v4002 = vsel %vm834, %v3994, %v4001
        %v4003 = vrot.slane %v3998, 4
        %v4005 = vshrl.u32 %v3797, 16
        %v4007 = vrot.slane %v4005, 7
        %v4008 = vshll.u32 %v3797, 16
        %v4010 = vor.u32 %v4007, %v4008
        %v4011 = vsel %vm834, %v4003, %v4010
        %v4012 = vrot.slane %v4007, 4
        %v4014 = vshrl.u32 %v3798, 16
        %v4016 = vrot.slane %v4014, 7
        %v4017 = vshll.u32 %v3798, 16
        %v4019 = vor.u32 %v4016, %v4017
        %v4020 = vsel %vm834, %v4012, %v4019
        %v4021 = vrot.slane %v4016, 4
        %v4023 = vshrl.u32 %v3799, 16
        %v4025 = vrot.slane %v4023, 7
        %v4026 = vshll.u32 %v3799, 16
        %v4028 = vor.u32 %v4025, %v4026
        %v4029 = vsel %vm834, %v4021, %v4028
        %v4030 = vrot.slane %v4025, 4
        %v4032 = vshrl.u32 %v3800, 16
        %v4034 = vrot.slane %v4032, 7
        %v4035 = vshll.u32 %v3800, 16
        %v4037 = vor.u32 %v4034, %v4035
        %v4038 = vsel %vm834, %v4030, %v4037
        %v4039 = vrot.slane %v4034, 4
        %v4041 = vshrl.u32 %v3801, 16
        %v4043 = vrot.slane %v4041, 7
        %v4044 = vshll.u32 %v3801, 16
        %v4046 = vor.u32 %v4043, %v4044
        %v4047 = vsel %vm834, %v4039, %v4046
        %v4048 = vrot.slane %v4043, 4
        %v4050 = vshrl.u32 %v3802, 16
        %v4052 = vrot.slane %v4050, 7
        %v4053 = vshll.u32 %v3802, 16
        %v4055 = vor.u32 %v4052, %v4053
        %v4056 = vsel %vm834, %v4048, %v4055
        %v4057 = vrot.slane %v4052, 4
        %v4059 = vshrl.u32 %v3803, 16
        %v4061 = vrot.slane %v4059, 7
        %v4062 = vshll.u32 %v3803, 16
        %v4064 = vor.u32 %v4061, %v4062
        %v4065 = vsel %vm834, %v4057, %v4064
        %v4066 = vrot.slane %v4061, 4
        %v4068 = vshrl.u32 %v3804, 16
        %v4070 = vrot.slane %v4068, 7
        %v4071 = vshll.u32 %v3804, 16
        %v4073 = vor.u32 %v4070, %v4071
        %v4074 = vsel %vm834, %v4066, %v4073
        %v4075 = vrot.slane %v4070, 4
        %v4077 = vshrl.u32 %v3805, 16
        %v4079 = vrot.slane %v4077, 7
        %v4080 = vshll.u32 %v3805, 16
        %v4082 = vor.u32 %v4079, %v4080
        %v4083 = vsel %vm834, %v4075, %v4082
        %v4084 = vrot.slane %v4079, 4
        %v4086 = vshrl.u32 %v3806, 16
        %v4088 = vrot.slane %v4086, 7
        %v4089 = vshll.u32 %v3806, 16
        %v4091 = vor.u32 %v4088, %v4089
        %v4092 = vsel %vm834, %v4084, %v4091
        %v4093 = vrot.slane %v4088, 4
        %v4127 = vsel %vm1157, %v3813, %v1199
        %4128 = vst [vmem:[#allocation2 + $0x8] sm:$0xf] %v4127
        %4129 = vst.msk [vmem:[#allocation2 + $0xc] sm:$0xf] %vm761, %v3822
        %4130 = vst.msk [vmem:[#allocation2 + $0x10] sm:$0xf] %vm761, %v3831
        %4131 = vst.msk [vmem:[#allocation2 + $0x14] sm:$0xf] %vm761, %v3840
        %4132 = vst.msk [vmem:[#allocation2 + $0x18] sm:$0xf] %vm761, %v3849
        %4133 = vst.msk [vmem:[#allocation2 + $0x1c] sm:$0xf] %vm761, %v3858
        %4134 = vst.msk [vmem:[#allocation2 + $0x20] sm:$0xf] %vm761, %v3867
        %4135 = vst.msk [vmem:[#allocation2 + $0x24] sm:$0xf] %vm761, %v3876
        %4136 = vst.msk [vmem:[#allocation2 + $0x28] sm:$0xf] %vm761, %v3885
        %4137 = vst.msk [vmem:[#allocation2 + $0x2c] sm:$0xf] %vm761, %v3894
        %4138 = vst.msk [vmem:[#allocation2 + $0x30] sm:$0xf] %vm761, %v3903
        %4139 = vst.msk [vmem:[#allocation2 + $0x34] sm:$0xf] %vm761, %v3912
        %4140 = vst.msk [vmem:[#allocation2 + $0x38] sm:$0xf] %vm761, %v3921
        %4141 = vst.msk [vmem:[#allocation2 + $0x3c] sm:$0xf] %vm761, %v3930
        %4142 = vst.msk [vmem:[#allocation2 + $0x40] sm:$0xf] %vm761, %v3939
        %4143 = vst.msk [vmem:[#allocation2 + $0x44] sm:$0xf] %vm761, %v3948
        %4144 = vst.msk [vmem:[#allocation2 + $0x48] sm:$0xf] %vm761, %v3957
        %4145 = vst.msk [vmem:[#allocation2 + $0x4c] sm:$0xf] %vm761, %v3966
        %4146 = vst.msk [vmem:[#allocation2 + $0x50] sm:$0xf] %vm761, %v3975
        %4147 = vst.msk [vmem:[#allocation2 + $0x54] sm:$0xf] %vm761, %v3984
        %4148 = vst.msk [vmem:[#allocation2 + $0x58] sm:$0xf] %vm761, %v3993
        %4149 = vst.msk [vmem:[#allocation2 + $0x5c] sm:$0xf] %vm761, %v4002
        %4150 = vst.msk [vmem:[#allocation2 + $0x60] sm:$0xf] %vm761, %v4011
        %4151 = vst.msk [vmem:[#allocation2 + $0x64] sm:$0xf] %vm761, %v4020
        %4152 = vst.msk [vmem:[#allocation2 + $0x68] sm:$0xf] %vm761, %v4029
        %4153 = vst.msk [vmem:[#allocation2 + $0x6c] sm:$0xf] %vm761, %v4038
        %4154 = vst.msk [vmem:[#allocation2 + $0x70] sm:$0xf] %vm761, %v4047
        %4155 = vst.msk [vmem:[#allocation2 + $0x74] sm:$0xf] %vm761, %v4056
        %4156 = vst.msk [vmem:[#allocation2 + $0x78] sm:$0xf] %vm761, %v4065
        %4157 = vst.msk [vmem:[#allocation2 + $0x7c] sm:$0xf] %vm761, %v4074
        %4158 = vst.msk [vmem:[#allocation2 + $0x80] sm:$0xf] %vm761, %v4083
        %4159 = vst.msk [vmem:[#allocation2 + $0x84] sm:$0xf] %vm761, %v4092
        %v4160 = vld [vmem:[#allocation2 + $0x88] sm:$0x1]
        %v4161 = vsel %vm1193, %v4093, %v4160
        %4162 = vst [vmem:[#allocation2 + $0x88] sm:$0x1] %v4161
        %v4163 = vld [vmem:[#allocation2] sm:$0xf]
        %v4164 = vld [vmem:[#allocation2 + $0x4] sm:$0xf]
        %v4165 = vld [vmem:[#allocation2 + $0x8] sm:$0xf]
        %v4166 = vld [vmem:[#allocation2 + $0xc] sm:$0xf]
        %v4167 = vld [vmem:[#allocation2 + $0x10] sm:$0xf]
        %v4168 = vld [vmem:[#allocation2 + $0x14] sm:$0xf]
        %v4169 = vld [vmem:[#allocation2 + $0x18] sm:$0xf]
        %v4170 = vld [vmem:[#allocation2 + $0x1c] sm:$0xf]
        %v4171 = vld [vmem:[#allocation2 + $0x20] sm:$0xf]
        %v4172 = vld [vmem:[#allocation2 + $0x24] sm:$0xf]
        %v4173 = vld [vmem:[#allocation2 + $0x28] sm:$0xf]
        %v4174 = vld [vmem:[#allocation2 + $0x2c] sm:$0xf]
        %v4175 = vld [vmem:[#allocation2 + $0x30] sm:$0xf]
        %v4176 = vld [vmem:[#allocation2 + $0x34] sm:$0xf]
        %v4177 = vld [vmem:[#allocation2 + $0x38] sm:$0xf]
        %v4178 = vld [vmem:[#allocation2 + $0x3c] sm:$0xf]
        %v4179 = vld [vmem:[#allocation2 + $0x40] sm:$0xf]
        %v4180 = vld [vmem:[#allocation2 + $0x44] sm:$0xf]
        %v4181 = vld [vmem:[#allocation2 + $0x48] sm:$0xf]
        %v4182 = vld [vmem:[#allocation2 + $0x4c] sm:$0xf]
        %v4183 = vld [vmem:[#allocation2 + $0x50] sm:$0xf]
        %v4184 = vld [vmem:[#allocation2 + $0x54] sm:$0xf]
        %v4185 = vld [vmem:[#allocation2 + $0x58] sm:$0xf]
        %v4186 = vld [vmem:[#allocation2 + $0x5c] sm:$0xf]
        %v4187 = vld [vmem:[#allocation2 + $0x60] sm:$0xf]
        %v4188 = vld [vmem:[#allocation2 + $0x64] sm:$0xf]
        %v4189 = vld [vmem:[#allocation2 + $0x68] sm:$0xf]
        %v4190 = vld [vmem:[#allocation2 + $0x6c] sm:$0xf]
        %v4191 = vld [vmem:[#allocation2 + $0x70] sm:$0xf]
        %v4192 = vld [vmem:[#allocation2 + $0x74] sm:$0xf]
        %v4193 = vld [vmem:[#allocation2 + $0x78] sm:$0xf]
        %v4194 = vld [vmem:[#allocation2 + $0x7c] sm:$0xf]
        %v4195 = vsel %vm1293, %v4163, 0
        %v4196 = vsel %vm1294, %v4164, 0
        %v4197 = vsel %vm1295, %v4165, 0
        %v4198 = vsel %vm1296, %v4166, 0
        %v4199 = vsel %vm1297, %v4167, 0
        %v4200 = vsel %vm1298, %v4168, 0
        %v4201 = vsel %vm1299, %v4169, 0
        %v4202 = vsel %vm1300, %v4170, 0
        %v4203 = vsel %vm1301, %v4171, 0
        %v4204 = vsel %vm1302, %v4172, 0
        %v4205 = vsel %vm1303, %v4173, 0
        %v4206 = vsel %vm1304, %v4174, 0
        %v4207 = vsel %vm1305, %v4175, 0
        %v4208 = vsel %vm1306, %v4176, 0
        %v4209 = vsel %vm1307, %v4177, 0
        %v4210 = vsel %vm1308, %v4178, 0
        %v4211 = vsel %vm1309, %v4179, 0
        %v4212 = vsel %vm1310, %v4180, 0
        %v4213 = vsel %vm1311, %v4181, 0
        %v4214 = vsel %vm1312, %v4182, 0
        %v4215 = vsel %vm1313, %v4183, 0
        %v4216 = vsel %vm1314, %v4184, 0
        %v4217 = vsel %vm1315, %v4185, 0
        %v4218 = vsel %vm1316, %v4186, 0
        %v4219 = vsel %vm1317, %v4187, 0
        %v4220 = vsel %vm1318, %v4188, 0
        %v4221 = vsel %vm1319, %v4189, 0
        %v4222 = vsel %vm1320, %v4190, 0
        %v4223 = vsel %vm1321, %v4191, 0
        %v4224 = vsel %vm1322, %v4192, 0
        %v4225 = vsel %vm1323, %v4193, 0
        %v4226 = vsel %vm1324, %v4194, 0
        %v4227 = vld [vmem:[#allocation2 + $0x80] sm:$0x1]
        %v4228 = vld [vmem:[#allocation2] sm:$0xe]
        %v4229 = vsel %vm1585, %v4228, 0
        %v4230 = vsel %vm1586, %v4164, 0
        %v4231 = vsel %vm1587, %v4165, 0
        %v4232 = vsel %vm1588, %v4166, 0
        %v4233 = vsel %vm1589, %v4167, 0
        %v4234 = vsel %vm1590, %v4168, 0
        %v4235 = vsel %vm1591, %v4169, 0
        %v4236 = vsel %vm1592, %v4170, 0
        %v4237 = vsel %vm1593, %v4171, 0
        %v4238 = vsel %vm1594, %v4172, 0
        %v4239 = vsel %vm1595, %v4173, 0
        %v4240 = vsel %vm1596, %v4174, 0
        %v4241 = vsel %vm1597, %v4175, 0
        %v4242 = vsel %vm1598, %v4176, 0
        %v4243 = vsel %vm1599, %v4177, 0
        %v4244 = vsel %vm1600, %v4178, 0
        %v4245 = vsel %vm1601, %v4179, 0
        %v4246 = vsel %vm1602, %v4180, 0
        %v4247 = vsel %vm1603, %v4181, 0
        %v4248 = vsel %vm1604, %v4182, 0
        %v4249 = vsel %vm1605, %v4183, 0
        %v4250 = vsel %vm1606, %v4184, 0
        %v4251 = vsel %vm1607, %v4185, 0
        %v4252 = vsel %vm1608, %v4186, 0
        %v4253 = vsel %vm1609, %v4187, 0
        %v4254 = vsel %vm1610, %v4188, 0
        %v4255 = vsel %vm1611, %v4189, 0
        %v4256 = vsel %vm1612, %v4190, 0
        %v4257 = vsel %vm1613, %v4191, 0
        %v4258 = vsel %vm1614, %v4192, 0
        %v4259 = vsel %vm1615, %v4193, 0
        %v4260 = vsel %vm1616, %v4194, 0
        %v4261 = vsel %vm1617, %v4227, 0
        %v4262 = vld [vmem:[#allocation2 + $0x80] sm:$0xf]
        %v4263 = vld [vmem:[#allocation2 + $0x84] sm:$0xf]
        %v4264 = vsel %vm1293, %v4165, 0
        %v4265 = vsel %vm1294, %v4166, 0
        %v4266 = vsel %vm1295, %v4167, 0
        %v4267 = vsel %vm1296, %v4168, 0
        %v4268 = vsel %vm1297, %v4169, 0
        %v4269 = vsel %vm1298, %v4170, 0
        %v4270 = vsel %vm1299, %v4171, 0
        %v4271 = vsel %vm1300, %v4172, 0
        %v4272 = vsel %vm1301, %v4173, 0
        %v4273 = vsel %vm1302, %v4174, 0
        %v4274 = vsel %vm1303, %v4175, 0
        %v4275 = vsel %vm1304, %v4176, 0
        %v4276 = vsel %vm1305, %v4177, 0
        %v4277 = vsel %vm1306, %v4178, 0
        %v4278 = vsel %vm1307, %v4179, 0
        %v4279 = vsel %vm1308, %v4180, 0
        %v4280 = vsel %vm1309, %v4181, 0
        %v4281 = vsel %vm1310, %v4182, 0
        %v4282 = vsel %vm1311, %v4183, 0
        %v4283 = vsel %vm1312, %v4184, 0
        %v4284 = vsel %vm1313, %v4185, 0
        %v4285 = vsel %vm1314, %v4186, 0
        %v4286 = vsel %vm1315, %v4187, 0
        %v4287 = vsel %vm1316, %v4188, 0
        %v4288 = vsel %vm1317, %v4189, 0
        %v4289 = vsel %vm1318, %v4190, 0
        %v4290 = vsel %vm1319, %v4191, 0
        %v4291 = vsel %vm1320, %v4192, 0
        %v4292 = vsel %vm1321, %v4193, 0
        %v4293 = vsel %vm1322, %v4194, 0
        %v4294 = vsel %vm1323, %v4262, 0
        %v4295 = vsel %vm1324, %v4263, 0
        %v4296 = vld [vmem:[#allocation2 + $0x88] sm:$0x1]
        %v4297 = vld [vmem:[#allocation2 + $0x8] sm:$0xe]
        %v4298 = vsel %vm1585, %v4297, 0
        %v4299 = vsel %vm1586, %v4166, 0
        %v4300 = vsel %vm1587, %v4167, 0
        %v4301 = vsel %vm1588, %v4168, 0
        %v4302 = vsel %vm1589, %v4169, 0
        %v4303 = vsel %vm1590, %v4170, 0
        %v4304 = vsel %vm1591, %v4171, 0
        %v4305 = vsel %vm1592, %v4172, 0
        %v4306 = vsel %vm1593, %v4173, 0
        %v4307 = vsel %vm1594, %v4174, 0
        %v4308 = vsel %vm1595, %v4175, 0
        %v4309 = vsel %vm1596, %v4176, 0
        %v4310 = vsel %vm1597, %v4177, 0
        %v4311 = vsel %vm1598, %v4178, 0
        %v4312 = vsel %vm1599, %v4179, 0
        %v4313 = vsel %vm1600, %v4180, 0
        %v4314 = vsel %vm1601, %v4181, 0
        %v4315 = vsel %vm1602, %v4182, 0
        %v4316 = vsel %vm1603, %v4183, 0
        %v4317 = vsel %vm1604, %v4184, 0
        %v4318 = vsel %vm1605, %v4185, 0
        %v4319 = vsel %vm1606, %v4186, 0
        %v4320 = vsel %vm1607, %v4187, 0
        %v4321 = vsel %vm1608, %v4188, 0
        %v4322 = vsel %vm1609, %v4189, 0
        %v4323 = vsel %vm1610, %v4190, 0
        %v4324 = vsel %vm1611, %v4191, 0
        %v4325 = vsel %vm1612, %v4192, 0
        %v4326 = vsel %vm1613, %v4193, 0
        %v4327 = vsel %vm1614, %v4194, 0
        %v4328 = vsel %vm1615, %v4262, 0
        %v4329 = vsel %vm1616, %v4263, 0
        %v4330 = vsel %vm1617, %v4296, 0
        %v4331 = vld [vmem:[#allocation2 + $0x88] sm:$0xf]
        %v4332 = vld [vmem:[#allocation2 + $0x8c] sm:$0xf]
        %v4333 = vsel %vm1293, %v4167, 0
        %v4334 = vsel %vm1294, %v4168, 0
        %v4335 = vsel %vm1295, %v4169, 0
        %v4336 = vsel %vm1296, %v4170, 0
        %v4337 = vsel %vm1297, %v4171, 0
        %v4338 = vsel %vm1298, %v4172, 0
        %v4339 = vsel %vm1299, %v4173, 0
        %v4340 = vsel %vm1300, %v4174, 0
        %v4341 = vsel %vm1301, %v4175, 0
        %v4342 = vsel %vm1302, %v4176, 0
        %v4343 = vsel %vm1303, %v4177, 0
        %v4344 = vsel %vm1304, %v4178, 0
        %v4345 = vsel %vm1305, %v4179, 0
        %v4346 = vsel %vm1306, %v4180, 0
        %v4347 = vsel %vm1307, %v4181, 0
        %v4348 = vsel %vm1308, %v4182, 0
        %v4349 = vsel %vm1309, %v4183, 0
        %v4350 = vsel %vm1310, %v4184, 0
        %v4351 = vsel %vm1311, %v4185, 0
        %v4352 = vsel %vm1312, %v4186, 0
        %v4353 = vsel %vm1313, %v4187, 0
        %v4354 = vsel %vm1314, %v4188, 0
        %v4355 = vsel %vm1315, %v4189, 0
        %v4356 = vsel %vm1316, %v4190, 0
        %v4357 = vsel %vm1317, %v4191, 0
        %v4358 = vsel %vm1318, %v4192, 0
        %v4359 = vsel %vm1319, %v4193, 0
        %v4360 = vsel %vm1320, %v4194, 0
        %v4361 = vsel %vm1321, %v4262, 0
        %v4362 = vsel %vm1322, %v4263, 0
        %v4363 = vsel %vm1323, %v4331, 0
        %v4364 = vsel %vm1324, %v4332, 0
        %v4365 = vld [vmem:[#allocation2 + $0x90] sm:$0x1]
        %v4366 = vld [vmem:[#allocation2 + $0x10] sm:$0xe]
        %v4367 = vsel %vm1585, %v4366, 0
        %v4368 = vsel %vm1586, %v4168, 0
        %v4369 = vsel %vm1587, %v4169, 0
        %v4370 = vsel %vm1588, %v4170, 0
        %v4371 = vsel %vm1589, %v4171, 0
        %v4372 = vsel %vm1590, %v4172, 0
        %v4373 = vsel %vm1591, %v4173, 0
        %v4374 = vsel %vm1592, %v4174, 0
        %v4375 = vsel %vm1593, %v4175, 0
        %v4376 = vsel %vm1594, %v4176, 0
        %v4377 = vsel %vm1595, %v4177, 0
        %v4378 = vsel %vm1596, %v4178, 0
        %v4379 = vsel %vm1597, %v4179, 0
        %v4380 = vsel %vm1598, %v4180, 0
        %v4381 = vsel %vm1599, %v4181, 0
        %v4382 = vsel %vm1600, %v4182, 0
        %v4383 = vsel %vm1601, %v4183, 0
        %v4384 = vsel %vm1602, %v4184, 0
        %v4385 = vsel %vm1603, %v4185, 0
        %v4386 = vsel %vm1604, %v4186, 0
        %v4387 = vsel %vm1605, %v4187, 0
        %v4388 = vsel %vm1606, %v4188, 0
        %v4389 = vsel %vm1607, %v4189, 0
        %v4390 = vsel %vm1608, %v4190, 0
        %v4391 = vsel %vm1609, %v4191, 0
        %v4392 = vsel %vm1610, %v4192, 0
        %v4393 = vsel %vm1611, %v4193, 0
        %v4394 = vsel %vm1612, %v4194, 0
        %v4395 = vsel %vm1613, %v4262, 0
        %v4396 = vsel %vm1614, %v4263, 0
        %v4397 = vsel %vm1615, %v4331, 0
        %v4398 = vsel %vm1616, %v4332, 0
        %v4399 = vsel %vm1617, %v4365, 0
        %v4432 = vunpack.c.l.b16 %v4195
        %v4433 = vunpack.c.l.b16 %v4196
        %v4434 = vunpack.c.l.b16 %v4197
        %v4435 = vunpack.c.l.b16 %v4198
        %v4436 = vunpack.c.l.b16 %v4199
        %v4437 = vunpack.c.l.b16 %v4200
        %v4438 = vunpack.c.l.b16 %v4201
        %v4439 = vunpack.c.l.b16 %v4202
        %v4440 = vunpack.c.l.b16 %v4203
        %v4441 = vunpack.c.l.b16 %v4204
        %v4442 = vunpack.c.l.b16 %v4205
        %v4443 = vunpack.c.l.b16 %v4206
        %v4444 = vunpack.c.l.b16 %v4207
        %v4445 = vunpack.c.l.b16 %v4208
        %v4446 = vunpack.c.l.b16 %v4209
        %v4447 = vunpack.c.l.b16 %v4210
        %v4448 = vunpack.c.l.b16 %v4211
        %v4449 = vunpack.c.l.b16 %v4212
        %v4450 = vunpack.c.l.b16 %v4213
        %v4451 = vunpack.c.l.b16 %v4214
        %v4452 = vunpack.c.l.b16 %v4215
        %v4453 = vunpack.c.l.b16 %v4216
        %v4454 = vunpack.c.l.b16 %v4217
        %v4455 = vunpack.c.l.b16 %v4218
        %v4456 = vunpack.c.l.b16 %v4219
        %v4457 = vunpack.c.l.b16 %v4220
        %v4458 = vunpack.c.l.b16 %v4221
        %v4459 = vunpack.c.l.b16 %v4222
        %v4460 = vunpack.c.l.b16 %v4223
        %v4461 = vunpack.c.l.b16 %v4224
        %v4462 = vunpack.c.l.b16 %v4225
        %v4463 = vunpack.c.l.b16 %v4226
        %v4464 = vpack.c.b16 %v4433, %v4432
        %v4465 = vpack.c.b16 %v4435, %v4434
        %v4466 = vpack.c.b16 %v4437, %v4436
        %v4467 = vpack.c.b16 %v4439, %v4438
        %v4468 = vpack.c.b16 %v4441, %v4440
        %v4469 = vpack.c.b16 %v4443, %v4442
        %v4470 = vpack.c.b16 %v4445, %v4444
        %v4471 = vpack.c.b16 %v4447, %v4446
        %v4472 = vpack.c.b16 %v4449, %v4448
        %v4473 = vpack.c.b16 %v4451, %v4450
        %v4474 = vpack.c.b16 %v4453, %v4452
        %v4475 = vpack.c.b16 %v4455, %v4454
        %v4476 = vpack.c.b16 %v4457, %v4456
        %v4477 = vpack.c.b16 %v4459, %v4458
        %v4478 = vpack.c.b16 %v4461, %v4460
        %v4479 = vpack.c.b16 %v4463, %v4462
        %v4513 = vunpack.c.l.b16 %v4163
        %v4514 = vunpack.c.l.b16 %v4164
        %v4515 = vunpack.c.l.b16 %v4165
        %v4516 = vunpack.c.l.b16 %v4166
        %v4517 = vunpack.c.l.b16 %v4167
        %v4518 = vunpack.c.l.b16 %v4168
        %v4519 = vunpack.c.l.b16 %v4169
        %v4520 = vunpack.c.l.b16 %v4170
        %v4521 = vunpack.c.l.b16 %v4171
        %v4522 = vunpack.c.l.b16 %v4172
        %v4523 = vunpack.c.l.b16 %v4173
        %v4524 = vunpack.c.l.b16 %v4174
        %v4525 = vunpack.c.l.b16 %v4175
        %v4526 = vunpack.c.l.b16 %v4176
        %v4527 = vunpack.c.l.b16 %v4177
        %v4528 = vunpack.c.l.b16 %v4178
        %v4529 = vunpack.c.l.b16 %v4179
        %v4530 = vunpack.c.l.b16 %v4180
        %v4531 = vunpack.c.l.b16 %v4181
        %v4532 = vunpack.c.l.b16 %v4182
        %v4533 = vunpack.c.l.b16 %v4183
        %v4534 = vunpack.c.l.b16 %v4184
        %v4535 = vunpack.c.l.b16 %v4185
        %v4536 = vunpack.c.l.b16 %v4186
        %v4537 = vunpack.c.l.b16 %v4187
        %v4538 = vunpack.c.l.b16 %v4188
        %v4539 = vunpack.c.l.b16 %v4189
        %v4540 = vunpack.c.l.b16 %v4190
        %v4541 = vunpack.c.l.b16 %v4191
        %v4542 = vunpack.c.l.b16 %v4192
        %v4543 = vunpack.c.l.b16 %v4193
        %v4544 = vunpack.c.l.b16 %v4194
        %v4545 = vunpack.c.l.b16 %v4227
        %v4546 = vpack.c.b16 %v4514, %v4513
        %v4547 = vpack.c.b16 %v4516, %v4515
        %v4548 = vpack.c.b16 %v4518, %v4517
        %v4549 = vpack.c.b16 %v4520, %v4519
        %v4550 = vpack.c.b16 %v4522, %v4521
        %v4551 = vpack.c.b16 %v4524, %v4523
        %v4552 = vpack.c.b16 %v4526, %v4525
        %v4553 = vpack.c.b16 %v4528, %v4527
        %v4554 = vpack.c.b16 %v4530, %v4529
        %v4555 = vpack.c.b16 %v4532, %v4531
        %v4556 = vpack.c.b16 %v4534, %v4533
        %v4557 = vpack.c.b16 %v4536, %v4535
        %v4558 = vpack.c.b16 %v4538, %v4537
        %v4559 = vpack.c.b16 %v4540, %v4539
        %v4560 = vpack.c.b16 %v4542, %v4541
        %v4561 = vpack.c.b16 %v4544, %v4543
        %v4562 = vpack.c.b16 %v4545, %v4545
        %v4564 = vshrl.u32 %v4546, 16
        %v4566 = vshll.u32 %v4546, 16
        %v4568 = vrot.slane %v4566, 1
        %v4569 = vor.u32 %v4564, %v4568
        %v4571 = vshll.u32 %v4547, 16
        %v4573 = vrot.slane %v4571, 1
        %v4574 = vsel %vm1952, %v4569, %v4573
        %v4575 = vshrl.u32 %v4547, 16
        %v4577 = vor.u32 %v4575, %v4573
        %v4579 = vshll.u32 %v4548, 16
        %v4581 = vrot.slane %v4579, 1
        %v4582 = vsel %vm1952, %v4577, %v4581
        %v4583 = vshrl.u32 %v4548, 16
        %v4585 = vor.u32 %v4583, %v4581
        %v4587 = vshll.u32 %v4549, 16
        %v4589 = vrot.slane %v4587, 1
        %v4590 = vsel %vm1952, %v4585, %v4589
        %v4591 = vshrl.u32 %v4549, 16
        %v4593 = vor.u32 %v4591, %v4589
        %v4595 = vshll.u32 %v4550, 16
        %v4597 = vrot.slane %v4595, 1
        %v4598 = vsel %vm1952, %v4593, %v4597
        %v4599 = vshrl.u32 %v4550, 16
        %v4601 = vor.u32 %v4599, %v4597
        %v4603 = vshll.u32 %v4551, 16
        %v4605 = vrot.slane %v4603, 1
        %v4606 = vsel %vm1952, %v4601, %v4605
        %v4607 = vshrl.u32 %v4551, 16
        %v4609 = vor.u32 %v4607, %v4605
        %v4611 = vshll.u32 %v4552, 16
        %v4613 = vrot.slane %v4611, 1
        %v4614 = vsel %vm1952, %v4609, %v4613
        %v4615 = vshrl.u32 %v4552, 16
        %v4617 = vor.u32 %v4615, %v4613
        %v4619 = vshll.u32 %v4553, 16
        %v4621 = vrot.slane %v4619, 1
        %v4622 = vsel %vm1952, %v4617, %v4621
        %v4623 = vshrl.u32 %v4553, 16
        %v4625 = vor.u32 %v4623, %v4621
        %v4627 = vshll.u32 %v4554, 16
        %v4629 = vrot.slane %v4627, 1
        %v4630 = vsel %vm1952, %v4625, %v4629
        %v4631 = vshrl.u32 %v4554, 16
        %v4633 = vor.u32 %v4631, %v4629
        %v4635 = vshll.u32 %v4555, 16
        %v4637 = vrot.slane %v4635, 1
        %v4638 = vsel %vm1952, %v4633, %v4637
        %v4639 = vshrl.u32 %v4555, 16
        %v4641 = vor.u32 %v4639, %v4637
        %v4643 = vshll.u32 %v4556, 16
        %v4645 = vrot.slane %v4643, 1
        %v4646 = vsel %vm1952, %v4641, %v4645
        %v4647 = vshrl.u32 %v4556, 16
        %v4649 = vor.u32 %v4647, %v4645
        %v4651 = vshll.u32 %v4557, 16
        %v4653 = vrot.slane %v4651, 1
        %v4654 = vsel %vm1952, %v4649, %v4653
        %v4655 = vshrl.u32 %v4557, 16
        %v4657 = vor.u32 %v4655, %v4653
        %v4659 = vshll.u32 %v4558, 16
        %v4661 = vrot.slane %v4659, 1
        %v4662 = vsel %vm1952, %v4657, %v4661
        %v4663 = vshrl.u32 %v4558, 16
        %v4665 = vor.u32 %v4663, %v4661
        %v4667 = vshll.u32 %v4559, 16
        %v4669 = vrot.slane %v4667, 1
        %v4670 = vsel %vm1952, %v4665, %v4669
        %v4671 = vshrl.u32 %v4559, 16
        %v4673 = vor.u32 %v4671, %v4669
        %v4675 = vshll.u32 %v4560, 16
        %v4677 = vrot.slane %v4675, 1
        %v4678 = vsel %vm1952, %v4673, %v4677
        %v4679 = vshrl.u32 %v4560, 16
        %v4681 = vor.u32 %v4679, %v4677
        %v4683 = vshll.u32 %v4561, 16
        %v4685 = vrot.slane %v4683, 1
        %v4686 = vsel %vm1952, %v4681, %v4685
        %v4687 = vshrl.u32 %v4561, 16
        %v4689 = vor.u32 %v4687, %v4685
        %v4691 = vshll.u32 %v4562, 16
        %v4693 = vrot.slane %v4691, 1
        %v4694 = vsel %vm1952, %v4689, %v4693
        %4695 = vrot.lane.b32.xlu0 %v4574, 32
        %v4696 = vpop.permute.xlu0 %4695
        %4697 = vrot.lane.b32.xlu0 %v4582, 32
        %v4698 = vpop.permute.xlu0 %4697
        %4699 = vrot.lane.b32.xlu0 %v4590, 32
        %v4700 = vpop.permute.xlu0 %4699
        %4701 = vrot.lane.b32.xlu0 %v4598, 32
        %v4702 = vpop.permute.xlu0 %4701
        %4703 = vrot.lane.b32.xlu0 %v4606, 32
        %v4704 = vpop.permute.xlu0 %4703
        %4705 = vrot.lane.b32.xlu0 %v4614, 32
        %v4706 = vpop.permute.xlu0 %4705
        %4707 = vrot.lane.b32.xlu0 %v4622, 32
        %v4708 = vpop.permute.xlu0 %4707
        %4709 = vrot.lane.b32.xlu0 %v4630, 32
        %v4710 = vpop.permute.xlu0 %4709
        %4711 = vrot.lane.b32.xlu0 %v4638, 32
        %v4712 = vpop.permute.xlu0 %4711
        %4713 = vrot.lane.b32.xlu0 %v4646, 32
        %v4714 = vpop.permute.xlu0 %4713
        %4715 = vrot.lane.b32.xlu0 %v4654, 32
        %v4716 = vpop.permute.xlu0 %4715
        %4717 = vrot.lane.b32.xlu0 %v4662, 32
        %v4718 = vpop.permute.xlu0 %4717
        %4719 = vrot.lane.b32.xlu0 %v4670, 32
        %v4720 = vpop.permute.xlu0 %4719
        %4721 = vrot.lane.b32.xlu0 %v4678, 32
        %v4722 = vpop.permute.xlu0 %4721
        %4723 = vrot.lane.b32.xlu0 %v4686, 32
        %v4724 = vpop.permute.xlu0 %4723
        %4725 = vrot.lane.b32.xlu0 %v4694, 32
        %v4726 = vpop.permute.xlu0 %4725
        %v4760 = vunpack.c.l.b16 %v4229
        %v4761 = vunpack.c.l.b16 %v4230
        %v4762 = vunpack.c.l.b16 %v4231
        %v4763 = vunpack.c.l.b16 %v4232
        %v4764 = vunpack.c.l.b16 %v4233
        %v4765 = vunpack.c.l.b16 %v4234
        %v4766 = vunpack.c.l.b16 %v4235
        %v4767 = vunpack.c.l.b16 %v4236
        %v4768 = vunpack.c.l.b16 %v4237
        %v4769 = vunpack.c.l.b16 %v4238
        %v4770 = vunpack.c.l.b16 %v4239
        %v4771 = vunpack.c.l.b16 %v4240
        %v4772 = vunpack.c.l.b16 %v4241
        %v4773 = vunpack.c.l.b16 %v4242
        %v4774 = vunpack.c.l.b16 %v4243
        %v4775 = vunpack.c.l.b16 %v4244
        %v4776 = vunpack.c.l.b16 %v4245
        %v4777 = vunpack.c.l.b16 %v4246
        %v4778 = vunpack.c.l.b16 %v4247
        %v4779 = vunpack.c.l.b16 %v4248
        %v4780 = vunpack.c.l.b16 %v4249
        %v4781 = vunpack.c.l.b16 %v4250
        %v4782 = vunpack.c.l.b16 %v4251
        %v4783 = vunpack.c.l.b16 %v4252
        %v4784 = vunpack.c.l.b16 %v4253
        %v4785 = vunpack.c.l.b16 %v4254
        %v4786 = vunpack.c.l.b16 %v4255
        %v4787 = vunpack.c.l.b16 %v4256
        %v4788 = vunpack.c.l.b16 %v4257
        %v4789 = vunpack.c.l.b16 %v4258
        %v4790 = vunpack.c.l.b16 %v4259
        %v4791 = vunpack.c.l.b16 %v4260
        %v4792 = vunpack.c.l.b16 %v4261
        %v4793 = vpack.c.b16 %v4761, %v4760
        %v4794 = vpack.c.b16 %v4763, %v4762
        %v4795 = vpack.c.b16 %v4765, %v4764
        %v4796 = vpack.c.b16 %v4767, %v4766
        %v4797 = vpack.c.b16 %v4769, %v4768
        %v4798 = vpack.c.b16 %v4771, %v4770
        %v4799 = vpack.c.b16 %v4773, %v4772
        %v4800 = vpack.c.b16 %v4775, %v4774
        %v4801 = vpack.c.b16 %v4777, %v4776
        %v4802 = vpack.c.b16 %v4779, %v4778
        %v4803 = vpack.c.b16 %v4781, %v4780
        %v4804 = vpack.c.b16 %v4783, %v4782
        %v4805 = vpack.c.b16 %v4785, %v4784
        %v4806 = vpack.c.b16 %v4787, %v4786
        %v4807 = vpack.c.b16 %v4789, %v4788
        %v4808 = vpack.c.b16 %v4791, %v4790
        %v4809 = vpack.c.b16 %v4792, %v4792
        %v4810 = vrot.slane %v4793, 1
        %v4811 = vrot.slane %v4794, 1
        %v4812 = vsel %vm2200, %v4810, %v4811
        %v4813 = vrot.slane %v4795, 1
        %v4814 = vsel %vm2200, %v4811, %v4813
        %v4815 = vrot.slane %v4796, 1
        %v4816 = vsel %vm2200, %v4813, %v4815
        %v4817 = vrot.slane %v4797, 1
        %v4818 = vsel %vm2200, %v4815, %v4817
        %v4819 = vrot.slane %v4798, 1
        %v4820 = vsel %vm2200, %v4817, %v4819
        %v4821 = vrot.slane %v4799, 1
        %v4822 = vsel %vm2200, %v4819, %v4821
        %v4823 = vrot.slane %v4800, 1
        %v4824 = vsel %vm2200, %v4821, %v4823
        %v4825 = vrot.slane %v4801, 1
        %v4826 = vsel %vm2200, %v4823, %v4825
        %v4827 = vrot.slane %v4802, 1
        %v4828 = vsel %vm2200, %v4825, %v4827
        %v4829 = vrot.slane %v4803, 1
        %v4830 = vsel %vm2200, %v4827, %v4829
        %v4831 = vrot.slane %v4804, 1
        %v4832 = vsel %vm2200, %v4829, %v4831
        %v4833 = vrot.slane %v4805, 1
        %v4834 = vsel %vm2200, %v4831, %v4833
        %v4835 = vrot.slane %v4806, 1
        %v4836 = vsel %vm2200, %v4833, %v4835
        %v4837 = vrot.slane %v4807, 1
        %v4838 = vsel %vm2200, %v4835, %v4837
        %v4839 = vrot.slane %v4808, 1
        %v4840 = vsel %vm2200, %v4837, %v4839
        %v4841 = vrot.slane %v4809, 1
        %v4842 = vsel %vm2200, %v4839, %v4841
        %4843 = vrot.lane.b32.xlu0 %v4812, 64
        %v4844 = vpop.permute.xlu0 %4843
        %4845 = vrot.lane.b32.xlu0 %v4814, 64
        %v4846 = vpop.permute.xlu0 %4845
        %4847 = vrot.lane.b32.xlu0 %v4816, 64
        %v4848 = vpop.permute.xlu0 %4847
        %4849 = vrot.lane.b32.xlu0 %v4818, 64
        %v4850 = vpop.permute.xlu0 %4849
        %4851 = vrot.lane.b32.xlu0 %v4820, 64
        %v4852 = vpop.permute.xlu0 %4851
        %4853 = vrot.lane.b32.xlu0 %v4822, 64
        %v4854 = vpop.permute.xlu0 %4853
        %4855 = vrot.lane.b32.xlu0 %v4824, 64
        %v4856 = vpop.permute.xlu0 %4855
        %4857 = vrot.lane.b32.xlu0 %v4826, 64
        %v4858 = vpop.permute.xlu0 %4857
        %4859 = vrot.lane.b32.xlu0 %v4828, 64
        %v4860 = vpop.permute.xlu0 %4859
        %4861 = vrot.lane.b32.xlu0 %v4830, 64
        %v4862 = vpop.permute.xlu0 %4861
        %4863 = vrot.lane.b32.xlu0 %v4832, 64
        %v4864 = vpop.permute.xlu0 %4863
        %4865 = vrot.lane.b32.xlu0 %v4834, 64
        %v4866 = vpop.permute.xlu0 %4865
        %4867 = vrot.lane.b32.xlu0 %v4836, 64
        %v4868 = vpop.permute.xlu0 %4867
        %4869 = vrot.lane.b32.xlu0 %v4838, 64
        %v4870 = vpop.permute.xlu0 %4869
        %4871 = vrot.lane.b32.xlu0 %v4840, 64
        %v4872 = vpop.permute.xlu0 %4871
        %4873 = vrot.lane.b32.xlu0 %v4842, 64
        %v4874 = vpop.permute.xlu0 %4873
        %v4907 = vunpack.c.l.b16 %v4264
        %v4908 = vunpack.c.l.b16 %v4265
        %v4909 = vunpack.c.l.b16 %v4266
        %v4910 = vunpack.c.l.b16 %v4267
        %v4911 = vunpack.c.l.b16 %v4268
        %v4912 = vunpack.c.l.b16 %v4269
        %v4913 = vunpack.c.l.b16 %v4270
        %v4914 = vunpack.c.l.b16 %v4271
        %v4915 = vunpack.c.l.b16 %v4272
        %v4916 = vunpack.c.l.b16 %v4273
        %v4917 = vunpack.c.l.b16 %v4274
        %v4918 = vunpack.c.l.b16 %v4275
        %v4919 = vunpack.c.l.b16 %v4276
        %v4920 = vunpack.c.l.b16 %v4277
        %v4921 = vunpack.c.l.b16 %v4278
        %v4922 = vunpack.c.l.b16 %v4279
        %v4923 = vunpack.c.l.b16 %v4280
        %v4924 = vunpack.c.l.b16 %v4281
        %v4925 = vunpack.c.l.b16 %v4282
        %v4926 = vunpack.c.l.b16 %v4283
        %v4927 = vunpack.c.l.b16 %v4284
        %v4928 = vunpack.c.l.b16 %v4285
        %v4929 = vunpack.c.l.b16 %v4286
        %v4930 = vunpack.c.l.b16 %v4287
        %v4931 = vunpack.c.l.b16 %v4288
        %v4932 = vunpack.c.l.b16 %v4289
        %v4933 = vunpack.c.l.b16 %v4290
        %v4934 = vunpack.c.l.b16 %v4291
        %v4935 = vunpack.c.l.b16 %v4292
        %v4936 = vunpack.c.l.b16 %v4293
        %v4937 = vunpack.c.l.b16 %v4294
        %v4938 = vunpack.c.l.b16 %v4295
        %v4939 = vpack.c.b16 %v4908, %v4907
        %v4940 = vpack.c.b16 %v4910, %v4909
        %v4941 = vpack.c.b16 %v4912, %v4911
        %v4942 = vpack.c.b16 %v4914, %v4913
        %v4943 = vpack.c.b16 %v4916, %v4915
        %v4944 = vpack.c.b16 %v4918, %v4917
        %v4945 = vpack.c.b16 %v4920, %v4919
        %v4946 = vpack.c.b16 %v4922, %v4921
        %v4947 = vpack.c.b16 %v4924, %v4923
        %v4948 = vpack.c.b16 %v4926, %v4925
        %v4949 = vpack.c.b16 %v4928, %v4927
        %v4950 = vpack.c.b16 %v4930, %v4929
        %v4951 = vpack.c.b16 %v4932, %v4931
        %v4952 = vpack.c.b16 %v4934, %v4933
        %v4953 = vpack.c.b16 %v4936, %v4935
        %v4954 = vpack.c.b16 %v4938, %v4937
        %4955 = vrot.lane.b32.xlu0 %v4939, 96
        %v4956 = vpop.permute.xlu0 %4955
        %4957 = vrot.lane.b32.xlu0 %v4940, 96
        %v4958 = vpop.permute.xlu0 %4957
        %4959 = vrot.lane.b32.xlu0 %v4941, 96
        %v4960 = vpop.permute.xlu0 %4959
        %4961 = vrot.lane.b32.xlu0 %v4942, 96
        %v4962 = vpop.permute.xlu0 %4961
        %4963 = vrot.lane.b32.xlu0 %v4943, 96
        %v4964 = vpop.permute.xlu0 %4963
        %4965 = vrot.lane.b32.xlu0 %v4944, 96
        %v4966 = vpop.permute.xlu0 %4965
        %4967 = vrot.lane.b32.xlu0 %v4945, 96
        %v4968 = vpop.permute.xlu0 %4967
        %4969 = vrot.lane.b32.xlu0 %v4946, 96
        %v4970 = vpop.permute.xlu0 %4969
        %4971 = vrot.lane.b32.xlu0 %v4947, 96
        %v4972 = vpop.permute.xlu0 %4971
        %4973 = vrot.lane.b32.xlu0 %v4948, 96
        %v4974 = vpop.permute.xlu0 %4973
        %4975 = vrot.lane.b32.xlu0 %v4949, 96
        %v4976 = vpop.permute.xlu0 %4975
        %4977 = vrot.lane.b32.xlu0 %v4950, 96
        %v4978 = vpop.permute.xlu0 %4977
        %4979 = vrot.lane.b32.xlu0 %v4951, 96
        %v4980 = vpop.permute.xlu0 %4979
        %4981 = vrot.lane.b32.xlu0 %v4952, 96
        %v4982 = vpop.permute.xlu0 %4981
        %4983 = vrot.lane.b32.xlu0 %v4953, 96
        %v4984 = vpop.permute.xlu0 %4983
        %4985 = vrot.lane.b32.xlu0 %v4954, 96
        %v4986 = vpop.permute.xlu0 %4985
        %v4990 = vunpack.c.l.b16 %v4262
        %v4991 = vunpack.c.l.b16 %v4263
        %v4992 = vunpack.c.l.b16 %v4296
        %v4993 = vpack.c.b16 %v4991, %v4990
        %v4994 = vpack.c.b16 %v4992, %v4992
        %v4996 = vshll.u32 %v4993, 16
        %v4998 = vrot.slane %v4996, 1
        %v4999 = vsel %vm1952, %v4689, %v4998
        %v5000 = vshrl.u32 %v4993, 16
        %v5002 = vor.u32 %v5000, %v4998
        %v5004 = vshll.u32 %v4994, 16
        %v5006 = vrot.slane %v5004, 1
        %v5007 = vsel %vm1952, %v5002, %v5006
        %v5041 = vunpack.c.l.b16 %v4298
        %v5042 = vunpack.c.l.b16 %v4299
        %v5043 = vunpack.c.l.b16 %v4300
        %v5044 = vunpack.c.l.b16 %v4301
        %v5045 = vunpack.c.l.b16 %v4302
        %v5046 = vunpack.c.l.b16 %v4303
        %v5047 = vunpack.c.l.b16 %v4304
        %v5048 = vunpack.c.l.b16 %v4305
        %v5049 = vunpack.c.l.b16 %v4306
        %v5050 = vunpack.c.l.b16 %v4307
        %v5051 = vunpack.c.l.b16 %v4308
        %v5052 = vunpack.c.l.b16 %v4309
        %v5053 = vunpack.c.l.b16 %v4310
        %v5054 = vunpack.c.l.b16 %v4311
        %v5055 = vunpack.c.l.b16 %v4312
        %v5056 = vunpack.c.l.b16 %v4313
        %v5057 = vunpack.c.l.b16 %v4314
        %v5058 = vunpack.c.l.b16 %v4315
        %v5059 = vunpack.c.l.b16 %v4316
        %v5060 = vunpack.c.l.b16 %v4317
        %v5061 = vunpack.c.l.b16 %v4318
        %v5062 = vunpack.c.l.b16 %v4319
        %v5063 = vunpack.c.l.b16 %v4320
        %v5064 = vunpack.c.l.b16 %v4321
        %v5065 = vunpack.c.l.b16 %v4322
        %v5066 = vunpack.c.l.b16 %v4323
        %v5067 = vunpack.c.l.b16 %v4324
        %v5068 = vunpack.c.l.b16 %v4325
        %v5069 = vunpack.c.l.b16 %v4326
        %v5070 = vunpack.c.l.b16 %v4327
        %v5071 = vunpack.c.l.b16 %v4328
        %v5072 = vunpack.c.l.b16 %v4329
        %v5073 = vunpack.c.l.b16 %v4330
        %v5074 = vpack.c.b16 %v5042, %v5041
        %v5075 = vpack.c.b16 %v5044, %v5043
        %v5076 = vpack.c.b16 %v5046, %v5045
        %v5077 = vpack.c.b16 %v5048, %v5047
        %v5078 = vpack.c.b16 %v5050, %v5049
        %v5079 = vpack.c.b16 %v5052, %v5051
        %v5080 = vpack.c.b16 %v5054, %v5053
        %v5081 = vpack.c.b16 %v5056, %v5055
        %v5082 = vpack.c.b16 %v5058, %v5057
        %v5083 = vpack.c.b16 %v5060, %v5059
        %v5084 = vpack.c.b16 %v5062, %v5061
        %v5085 = vpack.c.b16 %v5064, %v5063
        %v5086 = vpack.c.b16 %v5066, %v5065
        %v5087 = vpack.c.b16 %v5068, %v5067
        %v5088 = vpack.c.b16 %v5070, %v5069
        %v5089 = vpack.c.b16 %v5072, %v5071
        %v5090 = vpack.c.b16 %v5073, %v5073
        %v5091 = vrot.slane %v5074, 1
        %v5092 = vrot.slane %v5075, 1
        %v5093 = vsel %vm2200, %v5091, %v5092
        %v5094 = vrot.slane %v5076, 1
        %v5095 = vsel %vm2200, %v5092, %v5094
        %v5096 = vrot.slane %v5077, 1
        %v5097 = vsel %vm2200, %v5094, %v5096
        %v5098 = vrot.slane %v5078, 1
        %v5099 = vsel %vm2200, %v5096, %v5098
        %v5100 = vrot.slane %v5079, 1
        %v5101 = vsel %vm2200, %v5098, %v5100
        %v5102 = vrot.slane %v5080, 1
        %v5103 = vsel %vm2200, %v5100, %v5102
        %v5104 = vrot.slane %v5081, 1
        %v5105 = vsel %vm2200, %v5102, %v5104
        %v5106 = vrot.slane %v5082, 1
        %v5107 = vsel %vm2200, %v5104, %v5106
        %v5108 = vrot.slane %v5083, 1
        %v5109 = vsel %vm2200, %v5106, %v5108
        %v5110 = vrot.slane %v5084, 1
        %v5111 = vsel %vm2200, %v5108, %v5110
        %v5112 = vrot.slane %v5085, 1
        %v5113 = vsel %vm2200, %v5110, %v5112
        %v5114 = vrot.slane %v5086, 1
        %v5115 = vsel %vm2200, %v5112, %v5114
        %v5116 = vrot.slane %v5087, 1
        %v5117 = vsel %vm2200, %v5114, %v5116
        %v5118 = vrot.slane %v5088, 1
        %v5119 = vsel %vm2200, %v5116, %v5118
        %v5120 = vrot.slane %v5089, 1
        %v5121 = vsel %vm2200, %v5118, %v5120
        %v5122 = vrot.slane %v5090, 1
        %v5123 = vsel %vm2200, %v5120, %v5122
        %5124 = vrot.lane.b32.xlu0 %v5093, 32
        %v5125 = vpop.permute.xlu0 %5124
        %5126 = vrot.lane.b32.xlu0 %v5095, 32
        %v5127 = vpop.permute.xlu0 %5126
        %5128 = vrot.lane.b32.xlu0 %v5097, 32
        %v5129 = vpop.permute.xlu0 %5128
        %5130 = vrot.lane.b32.xlu0 %v5099, 32
        %v5131 = vpop.permute.xlu0 %5130
        %5132 = vrot.lane.b32.xlu0 %v5101, 32
        %v5133 = vpop.permute.xlu0 %5132
        %5134 = vrot.lane.b32.xlu0 %v5103, 32
        %v5135 = vpop.permute.xlu0 %5134
        %5136 = vrot.lane.b32.xlu0 %v5105, 32
        %v5137 = vpop.permute.xlu0 %5136
        %5138 = vrot.lane.b32.xlu0 %v5107, 32
        %v5139 = vpop.permute.xlu0 %5138
        %5140 = vrot.lane.b32.xlu0 %v5109, 32
        %v5141 = vpop.permute.xlu0 %5140
        %5142 = vrot.lane.b32.xlu0 %v5111, 32
        %v5143 = vpop.permute.xlu0 %5142
        %5144 = vrot.lane.b32.xlu0 %v5113, 32
        %v5145 = vpop.permute.xlu0 %5144
        %5146 = vrot.lane.b32.xlu0 %v5115, 32
        %v5147 = vpop.permute.xlu0 %5146
        %5148 = vrot.lane.b32.xlu0 %v5117, 32
        %v5149 = vpop.permute.xlu0 %5148
        %5150 = vrot.lane.b32.xlu0 %v5119, 32
        %v5151 = vpop.permute.xlu0 %5150
        %5152 = vrot.lane.b32.xlu0 %v5121, 32
        %v5153 = vpop.permute.xlu0 %5152
        %5154 = vrot.lane.b32.xlu0 %v5123, 32
        %v5155 = vpop.permute.xlu0 %5154
        %v5188 = vunpack.c.l.b16 %v4333
        %v5189 = vunpack.c.l.b16 %v4334
        %v5190 = vunpack.c.l.b16 %v4335
        %v5191 = vunpack.c.l.b16 %v4336
        %v5192 = vunpack.c.l.b16 %v4337
        %v5193 = vunpack.c.l.b16 %v4338
        %v5194 = vunpack.c.l.b16 %v4339
        %v5195 = vunpack.c.l.b16 %v4340
        %v5196 = vunpack.c.l.b16 %v4341
        %v5197 = vunpack.c.l.b16 %v4342
        %v5198 = vunpack.c.l.b16 %v4343
        %v5199 = vunpack.c.l.b16 %v4344
        %v5200 = vunpack.c.l.b16 %v4345
        %v5201 = vunpack.c.l.b16 %v4346
        %v5202 = vunpack.c.l.b16 %v4347
        %v5203 = vunpack.c.l.b16 %v4348
        %v5204 = vunpack.c.l.b16 %v4349
        %v5205 = vunpack.c.l.b16 %v4350
        %v5206 = vunpack.c.l.b16 %v4351
        %v5207 = vunpack.c.l.b16 %v4352
        %v5208 = vunpack.c.l.b16 %v4353
        %v5209 = vunpack.c.l.b16 %v4354
        %v5210 = vunpack.c.l.b16 %v4355
        %v5211 = vunpack.c.l.b16 %v4356
        %v5212 = vunpack.c.l.b16 %v4357
        %v5213 = vunpack.c.l.b16 %v4358
        %v5214 = vunpack.c.l.b16 %v4359
        %v5215 = vunpack.c.l.b16 %v4360
        %v5216 = vunpack.c.l.b16 %v4361
        %v5217 = vunpack.c.l.b16 %v4362
        %v5218 = vunpack.c.l.b16 %v4363
        %v5219 = vunpack.c.l.b16 %v4364
        %v5220 = vpack.c.b16 %v5189, %v5188
        %v5221 = vpack.c.b16 %v5191, %v5190
        %v5222 = vpack.c.b16 %v5193, %v5192
        %v5223 = vpack.c.b16 %v5195, %v5194
        %v5224 = vpack.c.b16 %v5197, %v5196
        %v5225 = vpack.c.b16 %v5199, %v5198
        %v5226 = vpack.c.b16 %v5201, %v5200
        %v5227 = vpack.c.b16 %v5203, %v5202
        %v5228 = vpack.c.b16 %v5205, %v5204
        %v5229 = vpack.c.b16 %v5207, %v5206
        %v5230 = vpack.c.b16 %v5209, %v5208
        %v5231 = vpack.c.b16 %v5211, %v5210
        %v5232 = vpack.c.b16 %v5213, %v5212
        %v5233 = vpack.c.b16 %v5215, %v5214
        %v5234 = vpack.c.b16 %v5217, %v5216
        %v5235 = vpack.c.b16 %v5219, %v5218
        %5236 = vrot.lane.b32.xlu0 %v5220, 64
        %v5237 = vpop.permute.xlu0 %5236
        %5238 = vrot.lane.b32.xlu0 %v5221, 64
        %v5239 = vpop.permute.xlu0 %5238
        %5240 = vrot.lane.b32.xlu0 %v5222, 64
        %v5241 = vpop.permute.xlu0 %5240
        %5242 = vrot.lane.b32.xlu0 %v5223, 64
        %v5243 = vpop.permute.xlu0 %5242
        %5244 = vrot.lane.b32.xlu0 %v5224, 64
        %v5245 = vpop.permute.xlu0 %5244
        %5246 = vrot.lane.b32.xlu0 %v5225, 64
        %v5247 = vpop.permute.xlu0 %5246
        %5248 = vrot.lane.b32.xlu0 %v5226, 64
        %v5249 = vpop.permute.xlu0 %5248
        %5250 = vrot.lane.b32.xlu0 %v5227, 64
        %v5251 = vpop.permute.xlu0 %5250
        %5252 = vrot.lane.b32.xlu0 %v5228, 64
        %v5253 = vpop.permute.xlu0 %5252
        %5254 = vrot.lane.b32.xlu0 %v5229, 64
        %v5255 = vpop.permute.xlu0 %5254
        %5256 = vrot.lane.b32.xlu0 %v5230, 64
        %v5257 = vpop.permute.xlu0 %5256
        %5258 = vrot.lane.b32.xlu0 %v5231, 64
        %v5259 = vpop.permute.xlu0 %5258
        %5260 = vrot.lane.b32.xlu0 %v5232, 64
        %v5261 = vpop.permute.xlu0 %5260
        %5262 = vrot.lane.b32.xlu0 %v5233, 64
        %v5263 = vpop.permute.xlu0 %5262
        %5264 = vrot.lane.b32.xlu0 %v5234, 64
        %v5265 = vpop.permute.xlu0 %5264
        %5266 = vrot.lane.b32.xlu0 %v5235, 64
        %v5267 = vpop.permute.xlu0 %5266
        %v5271 = vunpack.c.l.b16 %v4331
        %v5272 = vunpack.c.l.b16 %v4332
        %v5273 = vunpack.c.l.b16 %v4365
        %v5274 = vpack.c.b16 %v5272, %v5271
        %v5275 = vpack.c.b16 %v5273, %v5273
        %v5277 = vshll.u32 %v5274, 16
        %v5279 = vrot.slane %v5277, 1
        %v5280 = vsel %vm1952, %v5002, %v5279
        %v5281 = vshrl.u32 %v5274, 16
        %v5283 = vor.u32 %v5281, %v5279
        %v5285 = vshll.u32 %v5275, 16
        %v5287 = vrot.slane %v5285, 1
        %v5288 = vsel %vm1952, %v5283, %v5287
        %5289 = vrot.lane.b32.xlu0 %v4590, 96
        %v5290 = vpop.permute.xlu0 %5289
        %5291 = vrot.lane.b32.xlu0 %v4598, 96
        %v5292 = vpop.permute.xlu0 %5291
        %5293 = vrot.lane.b32.xlu0 %v4606, 96
        %v5294 = vpop.permute.xlu0 %5293
        %5295 = vrot.lane.b32.xlu0 %v4614, 96
        %v5296 = vpop.permute.xlu0 %5295
        %5297 = vrot.lane.b32.xlu0 %v4622, 96
        %v5298 = vpop.permute.xlu0 %5297
        %5299 = vrot.lane.b32.xlu0 %v4630, 96
        %v5300 = vpop.permute.xlu0 %5299
        %5301 = vrot.lane.b32.xlu0 %v4638, 96
        %v5302 = vpop.permute.xlu0 %5301
        %5303 = vrot.lane.b32.xlu0 %v4646, 96
        %v5304 = vpop.permute.xlu0 %5303
        %5305 = vrot.lane.b32.xlu0 %v4654, 96
        %v5306 = vpop.permute.xlu0 %5305
        %5307 = vrot.lane.b32.xlu0 %v4662, 96
        %v5308 = vpop.permute.xlu0 %5307
        %5309 = vrot.lane.b32.xlu0 %v4670, 96
        %v5310 = vpop.permute.xlu0 %5309
        %5311 = vrot.lane.b32.xlu0 %v4678, 96
        %v5312 = vpop.permute.xlu0 %5311
        %5313 = vrot.lane.b32.xlu0 %v4686, 96
        %v5314 = vpop.permute.xlu0 %5313
        %5315 = vrot.lane.b32.xlu0 %v4999, 96
        %v5316 = vpop.permute.xlu0 %5315
        %5317 = vrot.lane.b32.xlu0 %v5280, 96
        %v5318 = vpop.permute.xlu0 %5317
        %5319 = vrot.lane.b32.xlu0 %v5288, 96
        %v5320 = vpop.permute.xlu0 %5319
        %v5354 = vunpack.c.l.b16 %v4367
        %v5355 = vunpack.c.l.b16 %v4368
        %v5356 = vunpack.c.l.b16 %v4369
        %v5357 = vunpack.c.l.b16 %v4370
        %v5358 = vunpack.c.l.b16 %v4371
        %v5359 = vunpack.c.l.b16 %v4372
        %v5360 = vunpack.c.l.b16 %v4373
        %v5361 = vunpack.c.l.b16 %v4374
        %v5362 = vunpack.c.l.b16 %v4375
        %v5363 = vunpack.c.l.b16 %v4376
        %v5364 = vunpack.c.l.b16 %v4377
        %v5365 = vunpack.c.l.b16 %v4378
        %v5366 = vunpack.c.l.b16 %v4379
        %v5367 = vunpack.c.l.b16 %v4380
        %v5368 = vunpack.c.l.b16 %v4381
        %v5369 = vunpack.c.l.b16 %v4382
        %v5370 = vunpack.c.l.b16 %v4383
        %v5371 = vunpack.c.l.b16 %v4384
        %v5372 = vunpack.c.l.b16 %v4385
        %v5373 = vunpack.c.l.b16 %v4386
        %v5374 = vunpack.c.l.b16 %v4387
        %v5375 = vunpack.c.l.b16 %v4388
        %v5376 = vunpack.c.l.b16 %v4389
        %v5377 = vunpack.c.l.b16 %v4390
        %v5378 = vunpack.c.l.b16 %v4391
        %v5379 = vunpack.c.l.b16 %v4392
        %v5380 = vunpack.c.l.b16 %v4393
        %v5381 = vunpack.c.l.b16 %v4394
        %v5382 = vunpack.c.l.b16 %v4395
        %v5383 = vunpack.c.l.b16 %v4396
        %v5384 = vunpack.c.l.b16 %v4397
        %v5385 = vunpack.c.l.b16 %v4398
        %v5386 = vunpack.c.l.b16 %v4399
        %v5387 = vpack.c.b16 %v5355, %v5354
        %v5388 = vpack.c.b16 %v5357, %v5356
        %v5389 = vpack.c.b16 %v5359, %v5358
        %v5390 = vpack.c.b16 %v5361, %v5360
        %v5391 = vpack.c.b16 %v5363, %v5362
        %v5392 = vpack.c.b16 %v5365, %v5364
        %v5393 = vpack.c.b16 %v5367, %v5366
        %v5394 = vpack.c.b16 %v5369, %v5368
        %v5395 = vpack.c.b16 %v5371, %v5370
        %v5396 = vpack.c.b16 %v5373, %v5372
        %v5397 = vpack.c.b16 %v5375, %v5374
        %v5398 = vpack.c.b16 %v5377, %v5376
        %v5399 = vpack.c.b16 %v5379, %v5378
        %v5400 = vpack.c.b16 %v5381, %v5380
        %v5401 = vpack.c.b16 %v5383, %v5382
        %v5402 = vpack.c.b16 %v5385, %v5384
        %v5403 = vpack.c.b16 %v5386, %v5386
        %v5404 = vrot.slane %v5387, 1
        %v5405 = vrot.slane %v5388, 1
        %v5406 = vsel %vm2200, %v5404, %v5405
        %v5407 = vrot.slane %v5389, 1
        %v5408 = vsel %vm2200, %v5405, %v5407
        %v5409 = vrot.slane %v5390, 1
        %v5410 = vsel %vm2200, %v5407, %v5409
        %v5411 = vrot.slane %v5391, 1
        %v5412 = vsel %vm2200, %v5409, %v5411
        %v5413 = vrot.slane %v5392, 1
        %v5414 = vsel %vm2200, %v5411, %v5413
        %v5415 = vrot.slane %v5393, 1
        %v5416 = vsel %vm2200, %v5413, %v5415
        %v5417 = vrot.slane %v5394, 1
        %v5418 = vsel %vm2200, %v5415, %v5417
        %v5419 = vrot.slane %v5395, 1
        %v5420 = vsel %vm2200, %v5417, %v5419
        %v5421 = vrot.slane %v5396, 1
        %v5422 = vsel %vm2200, %v5419, %v5421
        %v5423 = vrot.slane %v5397, 1
        %v5424 = vsel %vm2200, %v5421, %v5423
        %v5425 = vrot.slane %v5398, 1
        %v5426 = vsel %vm2200, %v5423, %v5425
        %v5427 = vrot.slane %v5399, 1
        %v5428 = vsel %vm2200, %v5425, %v5427
        %v5429 = vrot.slane %v5400, 1
        %v5430 = vsel %vm2200, %v5427, %v5429
        %v5431 = vrot.slane %v5401, 1
        %v5432 = vsel %vm2200, %v5429, %v5431
        %v5433 = vrot.slane %v5402, 1
        %v5434 = vsel %vm2200, %v5431, %v5433
        %v5435 = vrot.slane %v5403, 1
        %v5436 = vsel %vm2200, %v5433, %v5435
        %v5439 = vsel %vm2828, %v4464, %v4696
        %v5442 = vsel %vm2828, %v4465, %v4698
        %v5445 = vsel %vm2828, %v4466, %v4700
        %v5448 = vsel %vm2828, %v4467, %v4702
        %v5451 = vsel %vm2828, %v4468, %v4704
        %v5454 = vsel %vm2828, %v4469, %v4706
        %v5457 = vsel %vm2828, %v4470, %v4708
        %v5460 = vsel %vm2828, %v4471, %v4710
        %v5463 = vsel %vm2828, %v4472, %v4712
        %v5466 = vsel %vm2828, %v4473, %v4714
        %v5469 = vsel %vm2828, %v4474, %v4716
        %v5472 = vsel %vm2828, %v4475, %v4718
        %v5475 = vsel %vm2828, %v4476, %v4720
        %v5478 = vsel %vm2828, %v4477, %v4722
        %v5481 = vsel %vm2828, %v4478, %v4724
        %v5484 = vsel %vm2828, %v4479, %v4726
        %v5486 = vsel %vm2877, %v5439, %v4844
        %v5488 = vsel %vm2877, %v5442, %v4846
        %v5490 = vsel %vm2877, %v5445, %v4848
        %v5492 = vsel %vm2877, %v5448, %v4850
        %v5494 = vsel %vm2877, %v5451, %v4852
        %v5496 = vsel %vm2877, %v5454, %v4854
        %v5498 = vsel %vm2877, %v5457, %v4856
        %v5500 = vsel %vm2877, %v5460, %v4858
        %v5502 = vsel %vm2877, %v5463, %v4860
        %v5504 = vsel %vm2877, %v5466, %v4862
        %v5506 = vsel %vm2877, %v5469, %v4864
        %v5508 = vsel %vm2877, %v5472, %v4866
        %v5510 = vsel %vm2877, %v5475, %v4868
        %v5512 = vsel %vm2877, %v5478, %v4870
        %v5514 = vsel %vm2877, %v5481, %v4872
        %v5516 = vsel %vm2877, %v5484, %v4874
        %v5518 = vsel %vm2910, %v5486, %v4956
        %v5521 = vsel %vm2910, %v5488, %v4958
        %v5524 = vsel %vm2910, %v5490, %v4960
        %v5527 = vsel %vm2910, %v5492, %v4962
        %v5530 = vsel %vm2910, %v5494, %v4964
        %v5533 = vsel %vm2910, %v5496, %v4966
        %v5536 = vsel %vm2910, %v5498, %v4968
        %v5539 = vsel %vm2910, %v5500, %v4970
        %v5542 = vsel %vm2910, %v5502, %v4972
        %v5545 = vsel %vm2910, %v5504, %v4974
        %v5548 = vsel %vm2910, %v5506, %v4976
        %v5551 = vsel %vm2910, %v5508, %v4978
        %v5554 = vsel %vm2910, %v5510, %v4980
        %v5557 = vsel %vm2910, %v5512, %v4982
        %v5560 = vsel %vm2910, %v5514, %v4984
        %v5563 = vsel %vm2910, %v5516, %v4986
        %v5567 = vsel %vm2828, %v4582, %v5125
        %v5570 = vsel %vm2828, %v4590, %v5127
        %v5573 = vsel %vm2828, %v4598, %v5129
        %v5576 = vsel %vm2828, %v4606, %v5131
        %v5579 = vsel %vm2828, %v4614, %v5133
        %v5582 = vsel %vm2828, %v4622, %v5135
        %v5585 = vsel %vm2828, %v4630, %v5137
        %v5588 = vsel %vm2828, %v4638, %v5139
        %v5591 = vsel %vm2828, %v4646, %v5141
        %v5594 = vsel %vm2828, %v4654, %v5143
        %v5597 = vsel %vm2828, %v4662, %v5145
        %v5600 = vsel %vm2828, %v4670, %v5147
        %v5603 = vsel %vm2828, %v4678, %v5149
        %v5606 = vsel %vm2828, %v4686, %v5151
        %v5609 = vsel %vm2828, %v4999, %v5153
        %v5612 = vsel %vm2828, %v5007, %v5155
        %v5614 = vsel %vm2877, %v5567, %v5237
        %v5616 = vsel %vm2877, %v5570, %v5239
        %v5618 = vsel %vm2877, %v5573, %v5241
        %v5620 = vsel %vm2877, %v5576, %v5243
        %v5622 = vsel %vm2877, %v5579, %v5245
        %v5624 = vsel %vm2877, %v5582, %v5247
        %v5626 = vsel %vm2877, %v5585, %v5249
        %v5628 = vsel %vm2877, %v5588, %v5251
        %v5630 = vsel %vm2877, %v5591, %v5253
        %v5632 = vsel %vm2877, %v5594, %v5255
        %v5634 = vsel %vm2877, %v5597, %v5257
        %v5636 = vsel %vm2877, %v5600, %v5259
        %v5638 = vsel %vm2877, %v5603, %v5261
        %v5640 = vsel %vm2877, %v5606, %v5263
        %v5642 = vsel %vm2877, %v5609, %v5265
        %v5644 = vsel %vm2877, %v5612, %v5267
        %v5646 = vsel %vm2910, %v5614, %v5290
        %v5649 = vsel %vm2910, %v5616, %v5292
        %v5652 = vsel %vm2910, %v5618, %v5294
        %v5655 = vsel %vm2910, %v5620, %v5296
        %v5658 = vsel %vm2910, %v5622, %v5298
        %v5661 = vsel %vm2910, %v5624, %v5300
        %v5664 = vsel %vm2910, %v5626, %v5302
        %v5667 = vsel %vm2910, %v5628, %v5304
        %v5670 = vsel %vm2910, %v5630, %v5306
        %v5673 = vsel %vm2910, %v5632, %v5308
        %v5676 = vsel %vm2910, %v5634, %v5310
        %v5679 = vsel %vm2910, %v5636, %v5312
        %v5682 = vsel %vm2910, %v5638, %v5314
        %v5685 = vsel %vm2910, %v5640, %v5316
        %v5688 = vsel %vm2910, %v5642, %v5318
        %v5691 = vsel %vm2910, %v5644, %v5320
        %v5693 = vld [vmem:[%s2] sm:$0xf]
        %v5694 = vld [vmem:[%s2 + $0x4] sm:$0xf]
        %v5695 = vld [vmem:[%s2 + $0x8] sm:$0xf]
        %v5696 = vld [vmem:[%s2 + $0xc] sm:$0xf]
        %v5697 = vld [vmem:[%s2 + $0x10] sm:$0xf]
        %v5698 = vld [vmem:[%s2 + $0x14] sm:$0xf]
        %v5699 = vld [vmem:[%s2 + $0x18] sm:$0xf]
        %v5700 = vld [vmem:[%s2 + $0x1c] sm:$0xf]
        %v5701 = vld [vmem:[%s2 + $0x20] sm:$0xf]
        %v5702 = vld [vmem:[%s2 + $0x24] sm:$0xf]
        %v5703 = vld [vmem:[%s2 + $0x28] sm:$0xf]
        %v5704 = vld [vmem:[%s2 + $0x2c] sm:$0xf]
        %v5705 = vld [vmem:[%s2 + $0x30] sm:$0xf]
        %v5706 = vld [vmem:[%s2 + $0x34] sm:$0xf]
        %v5707 = vld [vmem:[%s2 + $0x38] sm:$0xf]
        %v5708 = vld [vmem:[%s2 + $0x3c] sm:$0xf]
        %v5709 = vld [vmem:[%s2 + $0x40] sm:$0xf]
        %v5710 = vld [vmem:[%s2 + $0x44] sm:$0xf]
        %v5711 = vld [vmem:[%s2 + $0x48] sm:$0xf]
        %v5712 = vld [vmem:[%s2 + $0x4c] sm:$0xf]
        %v5713 = vld [vmem:[%s2 + $0x50] sm:$0xf]
        %v5714 = vld [vmem:[%s2 + $0x54] sm:$0xf]
        %v5715 = vld [vmem:[%s2 + $0x58] sm:$0xf]
        %v5716 = vld [vmem:[%s2 + $0x5c] sm:$0xf]
        %v5717 = vld [vmem:[%s2 + $0x60] sm:$0xf]
        %v5718 = vld [vmem:[%s2 + $0x64] sm:$0xf]
        %v5719 = vld [vmem:[%s2 + $0x68] sm:$0xf]
        %v5720 = vld [vmem:[%s2 + $0x6c] sm:$0xf]
        %v5721 = vld [vmem:[%s2 + $0x70] sm:$0xf]
        %v5722 = vld [vmem:[%s2 + $0x74] sm:$0xf]
        %v5723 = vld [vmem:[%s2 + $0x78] sm:$0xf]
        %v5724 = vld [vmem:[%s2 + $0x7c] sm:$0xf]
        %v5725 = vld [vmem:[%s2 + $0x80] sm:$0xf]
        %v5726 = vld [vmem:[%s2 + $0x84] sm:$0xf]
        %v5727 = vld [vmem:[%s2 + $0x88] sm:$0xf]
        %v5728 = vld [vmem:[%s2 + $0x8c] sm:$0xf]
        %v5765 = vunpack.c.l.b16 %v5693
        %v5766 = vunpack.c.l.b16 %v5694
        %v5767 = vunpack.c.l.b16 %v5695
        %v5768 = vunpack.c.l.b16 %v5696
        %v5769 = vunpack.c.l.b16 %v5697
        %v5770 = vunpack.c.l.b16 %v5698
        %v5771 = vunpack.c.l.b16 %v5699
        %v5772 = vunpack.c.l.b16 %v5700
        %v5773 = vunpack.c.l.b16 %v5701
        %v5774 = vunpack.c.l.b16 %v5702
        %v5775 = vunpack.c.l.b16 %v5703
        %v5776 = vunpack.c.l.b16 %v5704
        %v5777 = vunpack.c.l.b16 %v5705
        %v5778 = vunpack.c.l.b16 %v5706
        %v5779 = vunpack.c.l.b16 %v5707
        %v5780 = vunpack.c.l.b16 %v5708
        %v5781 = vunpack.c.l.b16 %v5709
        %v5782 = vunpack.c.l.b16 %v5710
        %v5783 = vunpack.c.l.b16 %v5711
        %v5784 = vunpack.c.l.b16 %v5712
        %v5785 = vunpack.c.l.b16 %v5713
        %v5786 = vunpack.c.l.b16 %v5714
        %v5787 = vunpack.c.l.b16 %v5715
        %v5788 = vunpack.c.l.b16 %v5716
        %v5789 = vunpack.c.l.b16 %v5717
        %v5790 = vunpack.c.l.b16 %v5718
        %v5791 = vunpack.c.l.b16 %v5719
        %v5792 = vunpack.c.l.b16 %v5720
        %v5793 = vunpack.c.l.b16 %v5721
        %v5794 = vunpack.c.l.b16 %v5722
        %v5795 = vunpack.c.l.b16 %v5723
        %v5796 = vunpack.c.l.b16 %v5724
        %v5797 = vunpack.c.l.b16 %v5725
        %v5798 = vunpack.c.l.b16 %v5726
        %v5799 = vunpack.c.l.b16 %v5727
        %v5800 = vunpack.c.l.b16 %v5728
        %v5801 = vpack.c.b16 %v5766, %v5765
        %v5802 = vpack.c.b16 %v5768, %v5767
        %v5803 = vpack.c.b16 %v5770, %v5769
        %v5804 = vpack.c.b16 %v5772, %v5771
        %v5805 = vpack.c.b16 %v5774, %v5773
        %v5806 = vpack.c.b16 %v5776, %v5775
        %v5807 = vpack.c.b16 %v5778, %v5777
        %v5808 = vpack.c.b16 %v5780, %v5779
        %v5809 = vpack.c.b16 %v5782, %v5781
        %v5810 = vpack.c.b16 %v5784, %v5783
        %v5811 = vpack.c.b16 %v5786, %v5785
        %v5812 = vpack.c.b16 %v5788, %v5787
        %v5813 = vpack.c.b16 %v5790, %v5789
        %v5814 = vpack.c.b16 %v5792, %v5791
        %v5815 = vpack.c.b16 %v5794, %v5793
        %v5816 = vpack.c.b16 %v5796, %v5795
        %v5817 = vpack.c.b16 %v5798, %v5797
        %v5818 = vpack.c.b16 %v5800, %v5799
        %v5838 = vsel %vm2828, %v5406, 0
        %v5841 = vsel %vm2828, %v5408, 0
        %v5844 = vsel %vm2828, %v5410, 0
        %v5847 = vsel %vm2828, %v5412, 0
        %v5850 = vsel %vm2828, %v5414, 0
        %v5853 = vsel %vm2828, %v5416, 0
        %v5856 = vsel %vm2828, %v5418, 0
        %v5859 = vsel %vm2828, %v5420, 0
        %v5862 = vsel %vm2828, %v5422, 0
        %v5865 = vsel %vm2828, %v5424, 0
        %v5868 = vsel %vm2828, %v5426, 0
        %v5871 = vsel %vm2828, %v5428, 0
        %v5874 = vsel %vm2828, %v5430, 0
        %v5877 = vsel %vm2828, %v5432, 0
        %v5880 = vsel %vm2828, %v5434, 0
        %v5883 = vsel %vm2828, %v5436, 0
        %5885 = vmatprep.subr.bf16.mxu0 0
        %5886 = vmatpush1.bf16.msra.mxu0 %v5808
        %5887 = vmatprep.subr.bf16.mxu0 0
        %5888 = vmatpush1.bf16.msra.mxu0 %v5807
        %5889 = vmatprep.subr.bf16.mxu0 0
        %5890 = vmatpush1.bf16.msra.mxu0 %v5806
        %5891 = vmatprep.subr.bf16.mxu0 0
        %5892 = vmatpush1.bf16.msra.mxu0 %v5805
        %5893 = vmatprep.subr.bf16.mxu0 0
        %5894 = vmatpush1.bf16.msra.mxu0 %v5804
        %5895 = vmatprep.subr.bf16.mxu0 0
        %5896 = vmatpush1.bf16.msra.mxu0 %v5803
        %5897 = vmatprep.subr.bf16.mxu0 0
        %5898 = vmatpush1.bf16.msra.mxu0 %v5802
        %5899 = vmatprep.subr.bf16.mxu0 0
        %5900 = vmatpush1.bf16.msra.mxu0 %v5801
        %5901 = vmatprep.subr.bf16.mxu0 0
        %5902 = vmatpush2.bf16.msra.mxu0 %v5816
        %5903 = vmatprep.subr.bf16.mxu0 0
        %5904 = vmatpush2.bf16.msra.mxu0 %v5815
        %5905 = vmatprep.subr.bf16.mxu0 0
        %5906 = vmatpush2.bf16.msra.mxu0 %v5814
        %5907 = vmatprep.subr.bf16.mxu0 0
        %5908 = vmatpush2.bf16.msra.mxu0 %v5813
        %5909 = vmatprep.subr.bf16.mxu0 0
        %5910 = vmatpush2.bf16.msra.mxu0 %v5812
        %5911 = vmatprep.subr.bf16.mxu0 0
        %5912 = vmatpush2.bf16.msra.mxu0 %v5811
        %5913 = vmatprep.subr.bf16.mxu0 0
        %5914 = vmatpush2.bf16.msra.mxu0 %v5810
        %5915 = vmatprep.subr.bf16.mxu0 0
        %5916 = vmatpush2.bf16.msra.mxu0 %v5809
        %5917 = vmatprep.mubr.bf16.mxu0 %v5646
        %5918 = vmatmul.mubr.bf16.gmra.mxu0 %v5518
        %v5919 = vpop.f32.mrf.mxu0
        %v5920 = vadd.f32 0.0, %v5919
        %v5921 = vpop.f32.mrf.mxu0
        %v5922 = vpop.f32.mrf.mxu0
        %v5923 = vadd.f32 0.0, %v5922
        %v5924 = vpop.f32.mrf.mxu0
        %5925 = vmatprep.mubr.bf16.mxu0 %v5649
        %5926 = vmatmul.mubr.bf16.gmra.mxu0 %v5521
        %v5927 = vpop.f32.mrf.mxu0
        %v5928 = vadd.f32 0.0, %v5927
        %v5929 = vpop.f32.mrf.mxu0
        %v5930 = vpop.f32.mrf.mxu0
        %v5931 = vadd.f32 0.0, %v5930
        %v5932 = vpop.f32.mrf.mxu0
        %5933 = vmatprep.mubr.bf16.mxu0 %v5652
        %5934 = vmatmul.mubr.bf16.gmra.mxu0 %v5524
        %v5935 = vpop.f32.mrf.mxu0
        %v5936 = vadd.f32 0.0, %v5935
        %v5937 = vpop.f32.mrf.mxu0
        %v5938 = vpop.f32.mrf.mxu0
        %v5939 = vadd.f32 0.0, %v5938
        %v5940 = vpop.f32.mrf.mxu0
        %5941 = vmatprep.mubr.bf16.mxu0 %v5655
        %5942 = vmatmul.mubr.bf16.gmra.mxu0 %v5527
        %v5943 = vpop.f32.mrf.mxu0
        %v5944 = vadd.f32 0.0, %v5943
        %v5945 = vpop.f32.mrf.mxu0
        %v5946 = vpop.f32.mrf.mxu0
        %v5947 = vadd.f32 0.0, %v5946
        %v5948 = vpop.f32.mrf.mxu0
        %5949 = vmatprep.mubr.bf16.mxu0 %v5658
        %5950 = vmatmul.mubr.bf16.gmra.mxu0 %v5530
        %v5951 = vpop.f32.mrf.mxu0
        %v5952 = vadd.f32 0.0, %v5951
        %v5953 = vpop.f32.mrf.mxu0
        %v5954 = vpop.f32.mrf.mxu0
        %v5955 = vadd.f32 0.0, %v5954
        %v5956 = vpop.f32.mrf.mxu0
        %5957 = vmatprep.mubr.bf16.mxu0 %v5661
        %5958 = vmatmul.mubr.bf16.gmra.mxu0 %v5533
        %v5959 = vpop.f32.mrf.mxu0
        %v5960 = vadd.f32 0.0, %v5959
        %v5961 = vpop.f32.mrf.mxu0
        %v5962 = vpop.f32.mrf.mxu0
        %v5963 = vadd.f32 0.0, %v5962
        %v5964 = vpop.f32.mrf.mxu0
        %5965 = vmatprep.mubr.bf16.mxu0 %v5664
        %5966 = vmatmul.mubr.bf16.gmra.mxu0 %v5536
        %v5967 = vpop.f32.mrf.mxu0
        %v5968 = vadd.f32 0.0, %v5967
        %v5969 = vpop.f32.mrf.mxu0
        %v5970 = vpop.f32.mrf.mxu0
        %v5971 = vadd.f32 0.0, %v5970
        %v5972 = vpop.f32.mrf.mxu0
        %5973 = vmatprep.mubr.bf16.mxu0 %v5667
        %5974 = vmatmul.mubr.bf16.gmra.mxu0 %v5539
        %v5975 = vpop.f32.mrf.mxu0
        %v5976 = vadd.f32 0.0, %v5975
        %v5977 = vpop.f32.mrf.mxu0
        %v5978 = vpop.f32.mrf.mxu0
        %v5979 = vadd.f32 0.0, %v5978
        %v5980 = vpop.f32.mrf.mxu0
        %5981 = vmatprep.mubr.bf16.mxu0 %v5670
        %5982 = vmatmul.mubr.bf16.gmra.mxu0 %v5542
        %v5983 = vpop.f32.mrf.mxu0
        %v5984 = vadd.f32 0.0, %v5983
        %v5985 = vpop.f32.mrf.mxu0
        %v5986 = vpop.f32.mrf.mxu0
        %v5987 = vadd.f32 0.0, %v5986
        %v5988 = vpop.f32.mrf.mxu0
        %5989 = vmatprep.mubr.bf16.mxu0 %v5673
        %5990 = vmatmul.mubr.bf16.gmra.mxu0 %v5545
        %v5991 = vpop.f32.mrf.mxu0
        %v5992 = vadd.f32 0.0, %v5991
        %v5993 = vpop.f32.mrf.mxu0
        %v5994 = vpop.f32.mrf.mxu0
        %v5995 = vadd.f32 0.0, %v5994
        %v5996 = vpop.f32.mrf.mxu0
        %5997 = vmatprep.mubr.bf16.mxu0 %v5676
        %5998 = vmatmul.mubr.bf16.gmra.mxu0 %v5548
        %v5999 = vpop.f32.mrf.mxu0
        %v6000 = vadd.f32 0.0, %v5999
        %v6001 = vpop.f32.mrf.mxu0
        %v6002 = vpop.f32.mrf.mxu0
        %v6003 = vadd.f32 0.0, %v6002
        %v6004 = vpop.f32.mrf.mxu0
        %6005 = vmatprep.mubr.bf16.mxu0 %v5679
        %6006 = vmatmul.mubr.bf16.gmra.mxu0 %v5551
        %v6007 = vpop.f32.mrf.mxu0
        %v6008 = vadd.f32 0.0, %v6007
        %v6009 = vpop.f32.mrf.mxu0
        %v6010 = vpop.f32.mrf.mxu0
        %v6011 = vadd.f32 0.0, %v6010
        %v6012 = vpop.f32.mrf.mxu0
        %6013 = vmatprep.mubr.bf16.mxu0 %v5682
        %6014 = vmatmul.mubr.bf16.gmra.mxu0 %v5554
        %v6015 = vpop.f32.mrf.mxu0
        %v6016 = vadd.f32 0.0, %v6015
        %v6017 = vpop.f32.mrf.mxu0
        %v6018 = vpop.f32.mrf.mxu0
        %v6019 = vadd.f32 0.0, %v6018
        %v6020 = vpop.f32.mrf.mxu0
        %6021 = vmatprep.mubr.bf16.mxu0 %v5685
        %6022 = vmatmul.mubr.bf16.gmra.mxu0 %v5557
        %v6023 = vpop.f32.mrf.mxu0
        %v6024 = vadd.f32 0.0, %v6023
        %v6025 = vpop.f32.mrf.mxu0
        %v6026 = vpop.f32.mrf.mxu0
        %v6027 = vadd.f32 0.0, %v6026
        %v6028 = vpop.f32.mrf.mxu0
        %6029 = vmatprep.mubr.bf16.mxu0 %v5688
        %6030 = vmatmul.mubr.bf16.gmra.mxu0 %v5560
        %v6031 = vpop.f32.mrf.mxu0
        %v6032 = vadd.f32 0.0, %v6031
        %v6033 = vpop.f32.mrf.mxu0
        %v6034 = vpop.f32.mrf.mxu0
        %v6035 = vadd.f32 0.0, %v6034
        %v6036 = vpop.f32.mrf.mxu0
        %6037 = vmatprep.mubr.bf16.mxu0 %v5691
        %6038 = vmatmul.mubr.bf16.gmra.mxu0 %v5563
        %v6039 = vpop.f32.mrf.mxu0
        %v6040 = vadd.f32 0.0, %v6039
        %v6041 = vpop.f32.mrf.mxu0
        %v6042 = vpop.f32.mrf.mxu0
        %v6043 = vadd.f32 0.0, %v6042
        %v6044 = vpop.f32.mrf.mxu0
        %6045 = vdwg.mxu0
        %6046 = vmatprep.subr.bf16.mxu0 0
        %6047 = vmatpush1.bf16.msra.mxu0 0
        %6048 = vmatprep.subr.bf16.mxu0 0
        %6049 = vmatpush1.bf16.msra.mxu0 0
        %6050 = vmatprep.subr.bf16.mxu0 0
        %6051 = vmatpush1.bf16.msra.mxu0 0
        %6052 = vmatprep.subr.bf16.mxu0 0
        %6053 = vmatpush1.bf16.msra.mxu0 0
        %6054 = vmatprep.subr.bf16.mxu0 0
        %6055 = vmatpush1.bf16.msra.mxu0 0
        %6056 = vmatprep.subr.bf16.mxu0 0
        %6057 = vmatpush1.bf16.msra.mxu0 0
        %6058 = vmatprep.subr.bf16.mxu0 0
        %6059 = vmatpush1.bf16.msra.mxu0 %v5818
        %6060 = vmatprep.subr.bf16.mxu0 0
        %6061 = vmatpush1.bf16.msra.mxu0 %v5817
        %6062 = vmatprep.subr.bf16.mxu0 0
        %6063 = vmatpush2.bf16.msra.mxu0 0
        %6064 = vmatprep.subr.bf16.mxu0 0
        %6065 = vmatpush2.bf16.msra.mxu0 0
        %6066 = vmatprep.subr.bf16.mxu0 0
        %6067 = vmatpush2.bf16.msra.mxu0 0
        %6068 = vmatprep.subr.bf16.mxu0 0
        %6069 = vmatpush2.bf16.msra.mxu0 0
        %6070 = vmatprep.subr.bf16.mxu0 0
        %6071 = vmatpush2.bf16.msra.mxu0 0
        %6072 = vmatprep.subr.bf16.mxu0 0
        %6073 = vmatpush2.bf16.msra.mxu0 0
        %6074 = vmatprep.subr.bf16.mxu0 0
        %6075 = vmatpush2.bf16.msra.mxu0 0
        %6076 = vmatprep.subr.bf16.mxu0 0
        %6077 = vmatpush2.bf16.msra.mxu0 0
        %6078 = vmatprep.mubr.bf16.mxu0 0
        %6079 = vmatmul.mubr.bf16.gmra.mxu0 %v5838
        %v6080 = vpop.f32.mrf.mxu0
        %v6081 = vadd.f32 %v5920, %v6080
        %v6082 = vpop.f32.mrf.mxu0
        %v6083 = vpop.f32.mrf.mxu0
        %v6084 = vadd.f32 %v5923, %v6083
        %v6085 = vpop.f32.mrf.mxu0
        %6086 = vmatprep.mubr.bf16.mxu0 0
        %6087 = vmatmul.mubr.bf16.gmra.mxu0 %v5841
        %v6088 = vpop.f32.mrf.mxu0
        %v6089 = vadd.f32 %v5928, %v6088
        %v6090 = vpop.f32.mrf.mxu0
        %v6091 = vpop.f32.mrf.mxu0
        %v6092 = vadd.f32 %v5931, %v6091
        %v6093 = vpop.f32.mrf.mxu0
        %6094 = vmatprep.mubr.bf16.mxu0 0
        %6095 = vmatmul.mubr.bf16.gmra.mxu0 %v5844
        %v6096 = vpop.f32.mrf.mxu0
        %v6097 = vadd.f32 %v5936, %v6096
        %v6098 = vpop.f32.mrf.mxu0
        %v6099 = vpop.f32.mrf.mxu0
        %v6100 = vadd.f32 %v5939, %v6099
        %v6101 = vpop.f32.mrf.mxu0
        %6102 = vmatprep.mubr.bf16.mxu0 0
        %6103 = vmatmul.mubr.bf16.gmra.mxu0 %v5847
        %v6104 = vpop.f32.mrf.mxu0
        %v6105 = vadd.f32 %v5944, %v6104
        %v6106 = vpop.f32.mrf.mxu0
        %v6107 = vpop.f32.mrf.mxu0
        %v6108 = vadd.f32 %v5947, %v6107
        %v6109 = vpop.f32.mrf.mxu0
        %6110 = vmatprep.mubr.bf16.mxu0 0
        %6111 = vmatmul.mubr.bf16.gmra.mxu0 %v5850
        %v6112 = vpop.f32.mrf.mxu0
        %v6113 = vadd.f32 %v5952, %v6112
        %v6114 = vpop.f32.mrf.mxu0
        %v6115 = vpop.f32.mrf.mxu0
        %v6116 = vadd.f32 %v5955, %v6115
        %v6117 = vpop.f32.mrf.mxu0
        %6118 = vmatprep.mubr.bf16.mxu0 0
        %6119 = vmatmul.mubr.bf16.gmra.mxu0 %v5853
        %v6120 = vpop.f32.mrf.mxu0
        %v6121 = vadd.f32 %v5960, %v6120
        %v6122 = vpop.f32.mrf.mxu0
        %v6123 = vpop.f32.mrf.mxu0
        %v6124 = vadd.f32 %v5963, %v6123
        %v6125 = vpop.f32.mrf.mxu0
        %6126 = vmatprep.mubr.bf16.mxu0 0
        %6127 = vmatmul.mubr.bf16.gmra.mxu0 %v5856
        %v6128 = vpop.f32.mrf.mxu0
        %v6129 = vadd.f32 %v5968, %v6128
        %v6130 = vpop.f32.mrf.mxu0
        %v6131 = vpop.f32.mrf.mxu0
        %v6132 = vadd.f32 %v5971, %v6131
        %v6133 = vpop.f32.mrf.mxu0
        %6134 = vmatprep.mubr.bf16.mxu0 0
        %6135 = vmatmul.mubr.bf16.gmra.mxu0 %v5859
        %v6136 = vpop.f32.mrf.mxu0
        %v6137 = vadd.f32 %v5976, %v6136
        %v6138 = vpop.f32.mrf.mxu0
        %v6139 = vpop.f32.mrf.mxu0
        %v6140 = vadd.f32 %v5979, %v6139
        %v6141 = vpop.f32.mrf.mxu0
        %6142 = vmatprep.mubr.bf16.mxu0 0
        %6143 = vmatmul.mubr.bf16.gmra.mxu0 %v5862
        %v6144 = vpop.f32.mrf.mxu0
        %v6145 = vadd.f32 %v5984, %v6144
        %v6146 = vpop.f32.mrf.mxu0
        %v6147 = vpop.f32.mrf.mxu0
        %v6148 = vadd.f32 %v5987, %v6147
        %v6149 = vpop.f32.mrf.mxu0
        %6150 = vmatprep.mubr.bf16.mxu0 0
        %6151 = vmatmul.mubr.bf16.gmra.mxu0 %v5865
        %v6152 = vpop.f32.mrf.mxu0
        %v6153 = vadd.f32 %v5992, %v6152
        %v6154 = vpop.f32.mrf.mxu0
        %v6155 = vpop.f32.mrf.mxu0
        %v6156 = vadd.f32 %v5995, %v6155
        %v6157 = vpop.f32.mrf.mxu0
        %6158 = vmatprep.mubr.bf16.mxu0 0
        %6159 = vmatmul.mubr.bf16.gmra.mxu0 %v5868
        %v6160 = vpop.f32.mrf.mxu0
        %v6161 = vadd.f32 %v6000, %v6160
        %v6162 = vpop.f32.mrf.mxu0
        %v6163 = vpop.f32.mrf.mxu0
        %v6164 = vadd.f32 %v6003, %v6163
        %v6165 = vpop.f32.mrf.mxu0
        %6166 = vmatprep.mubr.bf16.mxu0 0
        %6167 = vmatmul.mubr.bf16.gmra.mxu0 %v5871
        %v6168 = vpop.f32.mrf.mxu0
        %v6169 = vadd.f32 %v6008, %v6168
        %v6170 = vpop.f32.mrf.mxu0
        %v6171 = vpop.f32.mrf.mxu0
        %v6172 = vadd.f32 %v6011, %v6171
        %v6173 = vpop.f32.mrf.mxu0
        %6174 = vmatprep.mubr.bf16.mxu0 0
        %6175 = vmatmul.mubr.bf16.gmra.mxu0 %v5874
        %v6176 = vpop.f32.mrf.mxu0
        %v6177 = vadd.f32 %v6016, %v6176
        %v6178 = vpop.f32.mrf.mxu0
        %v6179 = vpop.f32.mrf.mxu0
        %v6180 = vadd.f32 %v6019, %v6179
        %v6181 = vpop.f32.mrf.mxu0
        %6182 = vmatprep.mubr.bf16.mxu0 0
        %6183 = vmatmul.mubr.bf16.gmra.mxu0 %v5877
        %v6184 = vpop.f32.mrf.mxu0
        %v6185 = vadd.f32 %v6024, %v6184
        %v6186 = vpop.f32.mrf.mxu0
        %v6187 = vpop.f32.mrf.mxu0
        %v6188 = vadd.f32 %v6027, %v6187
        %v6189 = vpop.f32.mrf.mxu0
        %6190 = vmatprep.mubr.bf16.mxu0 0
        %6191 = vmatmul.mubr.bf16.gmra.mxu0 %v5880
        %v6192 = vpop.f32.mrf.mxu0
        %v6193 = vadd.f32 %v6032, %v6192
        %v6194 = vpop.f32.mrf.mxu0
        %v6195 = vpop.f32.mrf.mxu0
        %v6196 = vadd.f32 %v6035, %v6195
        %v6197 = vpop.f32.mrf.mxu0
        %6198 = vmatprep.mubr.bf16.mxu0 0
        %6199 = vmatmul.mubr.bf16.gmra.mxu0 %v5883
        %v6200 = vpop.f32.mrf.mxu0
        %v6201 = vadd.f32 %v6040, %v6200
        %v6202 = vpop.f32.mrf.mxu0
        %v6203 = vpop.f32.mrf.mxu0
        %v6204 = vadd.f32 %v6043, %v6203
        %v6205 = vpop.f32.mrf.mxu0
        %6206 = vdwg.mxu0
        %v6207 = vld [vmem:[%s5] sm:$0x1]
        %v6209 = vlaneseq
        %v6210 = vshrl.u32 %v6209, 7
        %v6211 = vsub.s32 0, %v6210
        %v6212 = vrot.slane %v6207, %v6211
        %v6214 = vmul.f32 %v6081, %v6212
        %v6215 = vmul.f32 %v6084, %v6212
        %v6216 = vmul.f32 %v6089, %v6212
        %v6217 = vmul.f32 %v6092, %v6212
        %v6218 = vmul.f32 %v6097, %v6212
        %v6219 = vmul.f32 %v6100, %v6212
        %v6220 = vmul.f32 %v6105, %v6212
        %v6221 = vmul.f32 %v6108, %v6212
        %v6222 = vmul.f32 %v6113, %v6212
        %v6223 = vmul.f32 %v6116, %v6212
        %v6224 = vmul.f32 %v6121, %v6212
        %v6225 = vmul.f32 %v6124, %v6212
        %v6226 = vmul.f32 %v6129, %v6212
        %v6227 = vmul.f32 %v6132, %v6212
        %v6228 = vmul.f32 %v6137, %v6212
        %v6229 = vmul.f32 %v6140, %v6212
        %v6230 = vmul.f32 %v6145, %v6212
        %v6231 = vmul.f32 %v6148, %v6212
        %v6232 = vmul.f32 %v6153, %v6212
        %v6233 = vmul.f32 %v6156, %v6212
        %v6234 = vmul.f32 %v6161, %v6212
        %v6235 = vmul.f32 %v6164, %v6212
        %v6236 = vmul.f32 %v6169, %v6212
        %v6237 = vmul.f32 %v6172, %v6212
        %v6238 = vmul.f32 %v6177, %v6212
        %v6239 = vmul.f32 %v6180, %v6212
        %v6240 = vmul.f32 %v6185, %v6212
        %v6241 = vmul.f32 %v6188, %v6212
        %v6242 = vmul.f32 %v6193, %v6212
        %v6243 = vmul.f32 %v6196, %v6212
        %v6244 = vmul.f32 %v6201, %v6212
        %v6245 = vmul.f32 %v6204, %v6212
        %v6246 = vld [vmem:[%s6] sm:$0x1]
        %v6248 = vlaneseq
        %v6249 = vshrl.u32 %v6248, 7
        %v6250 = vsub.s32 0, %v6249
        %v6251 = vrot.slane %v6246, %v6250
        %v6253 = vadd.f32 %v6214, %v6251
        %v6254 = vadd.f32 %v6215, %v6251
        %v6255 = vadd.f32 %v6216, %v6251
        %v6256 = vadd.f32 %v6217, %v6251
        %v6257 = vadd.f32 %v6218, %v6251
        %v6258 = vadd.f32 %v6219, %v6251
        %v6259 = vadd.f32 %v6220, %v6251
        %v6260 = vadd.f32 %v6221, %v6251
        %v6261 = vadd.f32 %v6222, %v6251
        %v6262 = vadd.f32 %v6223, %v6251
        %v6263 = vadd.f32 %v6224, %v6251
        %v6264 = vadd.f32 %v6225, %v6251
        %v6265 = vadd.f32 %v6226, %v6251
        %v6266 = vadd.f32 %v6227, %v6251
        %v6267 = vadd.f32 %v6228, %v6251
        %v6268 = vadd.f32 %v6229, %v6251
        %v6269 = vadd.f32 %v6230, %v6251
        %v6270 = vadd.f32 %v6231, %v6251
        %v6271 = vadd.f32 %v6232, %v6251
        %v6272 = vadd.f32 %v6233, %v6251
        %v6273 = vadd.f32 %v6234, %v6251
        %v6274 = vadd.f32 %v6235, %v6251
        %v6275 = vadd.f32 %v6236, %v6251
        %v6276 = vadd.f32 %v6237, %v6251
        %v6277 = vadd.f32 %v6238, %v6251
        %v6278 = vadd.f32 %v6239, %v6251
        %v6279 = vadd.f32 %v6240, %v6251
        %v6280 = vadd.f32 %v6241, %v6251
        %v6281 = vadd.f32 %v6242, %v6251
        %v6282 = vadd.f32 %v6243, %v6251
        %v6283 = vadd.f32 %v6244, %v6251
        %v6284 = vadd.f32 %v6245, %v6251
        %v6285 = vld [vmem:[%s276] sm:$0xf]
        %v6286 = vld [vmem:[%s276 + $0x4] sm:$0xf]
        %v6287 = vld [vmem:[%s276 + $0x8] sm:$0xf]
        %v6288 = vld [vmem:[%s276 + $0xc] sm:$0xf]
        %v6289 = vld [vmem:[%s276 + $0x10] sm:$0xf]
        %v6290 = vld [vmem:[%s276 + $0x14] sm:$0xf]
        %v6291 = vld [vmem:[%s276 + $0x18] sm:$0xf]
        %v6292 = vld [vmem:[%s276 + $0x1c] sm:$0xf]
        %v6293 = vld [vmem:[%s276 + $0x20] sm:$0xf]
        %v6294 = vld [vmem:[%s276 + $0x24] sm:$0xf]
        %v6295 = vld [vmem:[%s276 + $0x28] sm:$0xf]
        %v6296 = vld [vmem:[%s276 + $0x2c] sm:$0xf]
        %v6297 = vld [vmem:[%s276 + $0x30] sm:$0xf]
        %v6298 = vld [vmem:[%s276 + $0x34] sm:$0xf]
        %v6299 = vld [vmem:[%s276 + $0x38] sm:$0xf]
        %v6300 = vld [vmem:[%s276 + $0x3c] sm:$0xf]
        %v6301 = vld [vmem:[%s276 + $0x40] sm:$0xf]
        %v6302 = vld [vmem:[%s276 + $0x44] sm:$0xf]
        %v6303 = vld [vmem:[%s276 + $0x48] sm:$0xf]
        %v6304 = vld [vmem:[%s276 + $0x4c] sm:$0xf]
        %v6305 = vld [vmem:[%s276 + $0x50] sm:$0xf]
        %v6306 = vld [vmem:[%s276 + $0x54] sm:$0xf]
        %v6307 = vld [vmem:[%s276 + $0x58] sm:$0xf]
        %v6308 = vld [vmem:[%s276 + $0x5c] sm:$0xf]
        %v6309 = vld [vmem:[%s276 + $0x60] sm:$0xf]
        %v6310 = vld [vmem:[%s276 + $0x64] sm:$0xf]
        %v6311 = vld [vmem:[%s276 + $0x68] sm:$0xf]
        %v6312 = vld [vmem:[%s276 + $0x6c] sm:$0xf]
        %v6313 = vld [vmem:[%s276 + $0x70] sm:$0xf]
        %v6314 = vld [vmem:[%s276 + $0x74] sm:$0xf]
        %v6315 = vld [vmem:[%s276 + $0x78] sm:$0xf]
        %v6316 = vld [vmem:[%s276 + $0x7c] sm:$0xf]
        %v6317 = vunpack.c.l.bf16 %v6285
        %v6318 = vunpack.c.l.bf16 %v6286
        %v6319 = vunpack.c.l.bf16 %v6287
        %v6320 = vunpack.c.l.bf16 %v6288
        %v6321 = vunpack.c.l.bf16 %v6289
        %v6322 = vunpack.c.l.bf16 %v6290
        %v6323 = vunpack.c.l.bf16 %v6291
        %v6324 = vunpack.c.l.bf16 %v6292
        %v6325 = vunpack.c.l.bf16 %v6293
        %v6326 = vunpack.c.l.bf16 %v6294
        %v6327 = vunpack.c.l.bf16 %v6295
        %v6328 = vunpack.c.l.bf16 %v6296
        %v6329 = vunpack.c.l.bf16 %v6297
        %v6330 = vunpack.c.l.bf16 %v6298
        %v6331 = vunpack.c.l.bf16 %v6299
        %v6332 = vunpack.c.l.bf16 %v6300
        %v6333 = vunpack.c.l.bf16 %v6301
        %v6334 = vunpack.c.l.bf16 %v6302
        %v6335 = vunpack.c.l.bf16 %v6303
        %v6336 = vunpack.c.l.bf16 %v6304
        %v6337 = vunpack.c.l.bf16 %v6305
        %v6338 = vunpack.c.l.bf16 %v6306
        %v6339 = vunpack.c.l.bf16 %v6307
        %v6340 = vunpack.c.l.bf16 %v6308
        %v6341 = vunpack.c.l.bf16 %v6309
        %v6342 = vunpack.c.l.bf16 %v6310
        %v6343 = vunpack.c.l.bf16 %v6311
        %v6344 = vunpack.c.l.bf16 %v6312
        %v6345 = vunpack.c.l.bf16 %v6313
        %v6346 = vunpack.c.l.bf16 %v6314
        %v6347 = vunpack.c.l.bf16 %v6315
        %v6348 = vunpack.c.l.bf16 %v6316
        %v6349 = vadd.f32 %v6253, %v6317
        %v6350 = vadd.f32 %v6254, %v6318
        %v6351 = vadd.f32 %v6255, %v6319
        %v6352 = vadd.f32 %v6256, %v6320
        %v6353 = vadd.f32 %v6257, %v6321
        %v6354 = vadd.f32 %v6258, %v6322
        %v6355 = vadd.f32 %v6259, %v6323
        %v6356 = vadd.f32 %v6260, %v6324
        %v6357 = vadd.f32 %v6261, %v6325
        %v6358 = vadd.f32 %v6262, %v6326
        %v6359 = vadd.f32 %v6263, %v6327
        %v6360 = vadd.f32 %v6264, %v6328
        %v6361 = vadd.f32 %v6265, %v6329
        %v6362 = vadd.f32 %v6266, %v6330
        %v6363 = vadd.f32 %v6267, %v6331
        %v6364 = vadd.f32 %v6268, %v6332
        %v6365 = vadd.f32 %v6269, %v6333
        %v6366 = vadd.f32 %v6270, %v6334
        %v6367 = vadd.f32 %v6271, %v6335
        %v6368 = vadd.f32 %v6272, %v6336
        %v6369 = vadd.f32 %v6273, %v6337
        %v6370 = vadd.f32 %v6274, %v6338
        %v6371 = vadd.f32 %v6275, %v6339
        %v6372 = vadd.f32 %v6276, %v6340
        %v6373 = vadd.f32 %v6277, %v6341
        %v6374 = vadd.f32 %v6278, %v6342
        %v6375 = vadd.f32 %v6279, %v6343
        %v6376 = vadd.f32 %v6280, %v6344
        %v6377 = vadd.f32 %v6281, %v6345
        %v6378 = vadd.f32 %v6282, %v6346
        %v6379 = vadd.f32 %v6283, %v6347
        %v6380 = vadd.f32 %v6284, %v6348
        %v6381 = vmax.f32 %v6349, 0.0
        %v6382 = vmax.f32 %v6350, 0.0
        %v6383 = vmax.f32 %v6351, 0.0
        %v6384 = vmax.f32 %v6352, 0.0
        %v6385 = vmax.f32 %v6353, 0.0
        %v6386 = vmax.f32 %v6354, 0.0
        %v6387 = vmax.f32 %v6355, 0.0
        %v6388 = vmax.f32 %v6356, 0.0
        %v6389 = vmax.f32 %v6357, 0.0
        %v6390 = vmax.f32 %v6358, 0.0
        %v6391 = vmax.f32 %v6359, 0.0
        %v6392 = vmax.f32 %v6360, 0.0
        %v6393 = vmax.f32 %v6361, 0.0
        %v6394 = vmax.f32 %v6362, 0.0
        %v6395 = vmax.f32 %v6363, 0.0
        %v6396 = vmax.f32 %v6364, 0.0
        %v6397 = vmax.f32 %v6365, 0.0
        %v6398 = vmax.f32 %v6366, 0.0
        %v6399 = vmax.f32 %v6367, 0.0
        %v6400 = vmax.f32 %v6368, 0.0
        %v6401 = vmax.f32 %v6369, 0.0
        %v6402 = vmax.f32 %v6370, 0.0
        %v6403 = vmax.f32 %v6371, 0.0
        %v6404 = vmax.f32 %v6372, 0.0
        %v6405 = vmax.f32 %v6373, 0.0
        %v6406 = vmax.f32 %v6374, 0.0
        %v6407 = vmax.f32 %v6375, 0.0
        %v6408 = vmax.f32 %v6376, 0.0
        %v6409 = vmax.f32 %v6377, 0.0
        %v6410 = vmax.f32 %v6378, 0.0
        %v6411 = vmax.f32 %v6379, 0.0
        %v6412 = vmax.f32 %v6380, 0.0
        %6413 = vst.msk [vmem:[%s271] sm:$0xff] %vm2828, %v6381
        %6414 = vst.msk [vmem:[%s271 + $0x8] sm:$0xff] %vm2828, %v6382
        %6415 = vst.msk [vmem:[%s271 + $0x10] sm:$0xff] %vm2828, %v6383
        %6416 = vst.msk [vmem:[%s271 + $0x18] sm:$0xff] %vm2828, %v6384
        %6417 = vst.msk [vmem:[%s271 + $0x20] sm:$0xff] %vm2828, %v6385
        %6418 = vst.msk [vmem:[%s271 + $0x28] sm:$0xff] %vm2828, %v6386
        %6419 = vst.msk [vmem:[%s271 + $0x30] sm:$0xff] %vm2828, %v6387
        %6420 = vst.msk [vmem:[%s271 + $0x38] sm:$0xff] %vm2828, %v6388
        %6421 = vst.msk [vmem:[%s271 + $0x40] sm:$0xff] %vm2828, %v6389
        %6422 = vst.msk [vmem:[%s271 + $0x48] sm:$0xff] %vm2828, %v6390
        %6423 = vst.msk [vmem:[%s271 + $0x50] sm:$0xff] %vm2828, %v6391
        %6424 = vst.msk [vmem:[%s271 + $0x58] sm:$0xff] %vm2828, %v6392
        %6425 = vst.msk [vmem:[%s271 + $0x60] sm:$0xff] %vm2828, %v6393
        %6426 = vst.msk [vmem:[%s271 + $0x68] sm:$0xff] %vm2828, %v6394
        %6427 = vst.msk [vmem:[%s271 + $0x70] sm:$0xff] %vm2828, %v6395
        %6428 = vst.msk [vmem:[%s271 + $0x78] sm:$0xff] %vm2828, %v6396
        %6429 = vst.msk [vmem:[%s271 + $0x80] sm:$0xff] %vm2828, %v6397
        %6430 = vst.msk [vmem:[%s271 + $0x88] sm:$0xff] %vm2828, %v6398
        %6431 = vst.msk [vmem:[%s271 + $0x90] sm:$0xff] %vm2828, %v6399
        %6432 = vst.msk [vmem:[%s271 + $0x98] sm:$0xff] %vm2828, %v6400
        %6433 = vst.msk [vmem:[%s271 + $0xa0] sm:$0xff] %vm2828, %v6401
        %6434 = vst.msk [vmem:[%s271 + $0xa8] sm:$0xff] %vm2828, %v6402
        %6435 = vst.msk [vmem:[%s271 + $0xb0] sm:$0xff] %vm2828, %v6403
        %6436 = vst.msk [vmem:[%s271 + $0xb8] sm:$0xff] %vm2828, %v6404
        %6437 = vst.msk [vmem:[%s271 + $0xc0] sm:$0xff] %vm2828, %v6405
        %6438 = vst.msk [vmem:[%s271 + $0xc8] sm:$0xff] %vm2828, %v6406
        %6439 = vst.msk [vmem:[%s271 + $0xd0] sm:$0xff] %vm2828, %v6407
        %6440 = vst.msk [vmem:[%s271 + $0xd8] sm:$0xff] %vm2828, %v6408
        %6441 = vst.msk [vmem:[%s271 + $0xe0] sm:$0xff] %vm2828, %v6409
        %6442 = vst.msk [vmem:[%s271 + $0xe8] sm:$0xff] %vm2828, %v6410
        %6443 = vst.msk [vmem:[%s271 + $0xf0] sm:$0xff] %vm2828, %v6411
        %6444 = vst.msk [vmem:[%s271 + $0xf8] sm:$0xff] %vm2828, %v6412
        %s6445 = sand.u32 %s181, 1
        %s6446 = scalar_lea.sflag [#allocation4], %s6445
        %s6447 = sand.u32 %s181, 1
        %s6448 = smul.addr %s6447, 256
        %s6449 = scalar_lea.vmem [#allocation3], %s6448
        // Predicated region
        $region49: #{resblock_forward.1} parent=47 // pred_check
          %p6450 = pneg %p191
        $region50: #{resblock_forward.1} parent=47 // pred_check_branch
          %6452 = sbr.rel (%p6450) target = $region52
        $region51: #{resblock_forward.1} parent=47 // pred_region
          %s6454 = ssub.s32 4096, 4096
          %6455 = vsyncadd %s6446, %s6454
          %s6456 = smul.addr %s21, 32
          %s6457 = smul.addr %s6456, 128
          %s6458 = scalar_lea.hbm %s7, %s6457
          %s6459 = sshll.u32 %s6449, 4
          %s6460 = int_to_ptr.vmem [resolvable:$true] %s6459
          %6465 = dma.vmem_to_hbm [thread:$0]  %s6460, 4096, %s6458, %s6446, 128, 128, 8
        $region52: #{resblock_forward.1} parent=47 // pred_fallthru
          _
      $region48: #{resblock_forward.1} parent=5 // pred_fallthru
        _
      %p6466 = scmp.le.s32.totalorder 2, %s16
      // Predicated region
      $region53: #{resblock_forward.1} parent=5 // pred_check
        %p6467 = pneg %p6466
      $region54: #{resblock_forward.1} parent=5 // pred_check_branch
        %6469 = sbr.rel (%p6467) target = $region56
      $region55: #{resblock_forward.1} parent=5 // pred_region
        %s6470 = ssub.s32 %s16, 2
        // Predicated region
        $region57: #{resblock_forward.1} parent=55 // pred_check
          %p6471 = pneg %p197
        $region58: #{resblock_forward.1} parent=55 // pred_check_branch
          %6473 = sbr.rel (%p6471) target = $region60
        $region59: #{resblock_forward.1} parent=55 // pred_region
          %s6474 = sand.u32 %s182, 1
          %s6475 = scalar_lea.sflag [#allocation4], %s6474
          %s6476 = sand.u32 %s182, 1
          %s6477 = smul.addr %s6476, 256
          %s6478 = scalar_lea.vmem [#allocation3], %s6477
          %6479 = dma.done %s6475, 4096
        $region60: #{resblock_forward.1} parent=55 // pred_fallthru
          _
      $region56: #{resblock_forward.1} parent=5 // pred_fallthru
        _
    $region6: #{resblock_forward.1} parent=1 // loop_footer
      %s20 = sadd.s32 1, %s16
    $region7: #{resblock_forward.1} parent=1 // loop_footer_branch
      %15 = sbr.rel target = $region3
    $region8: #{resblock_forward.1} parent=1 // loop_exit
      _
    %6480 = vsyncpa [#allocation4], 1
    %s6481 = scalar_lea.sflag [#allocation4], 1
    %6482 = vsyncpa %s6481, 1

</llo_original>
